<compile_context>
chip_gen: v6e
topology: v6e:2x2x1
jax: 0.10.0
libtpu: 0.0.40
codegen_flags: <defaults>
</compile_context>

<pallas_src>
import functools

import numpy as np
import jax
import jax.numpy as jnp
from jax import lax
from jax.experimental import pallas as pl
from jax.experimental.pallas import tpu as pltpu


# ---------------------------------------------------------------------------
# MaxPool3d geometry (PyTorch semantics, dilation=1)
# ---------------------------------------------------------------------------

def _triple(v):
    if isinstance(v, (tuple, list)):
        assert len(v) == 3
        return tuple(int(t) for t in v)
    return (int(v),) * 3


def _pool_geom(spatial, ks, st, pd, ceil_mode):
    """Per-dim output size + extra right padding so every kept window fits."""
    out_sz, extra = [], []
    for i in range(3):
        n, k, s, p = int(spatial[i]), ks[i], st[i], pd[i]
        if ceil_mode:
            o = -(-(n + 2 * p - k) // s) + 1
            # PyTorch: the last window must start inside input + left padding.
            if (o - 1) * s >= n + p:
                o -= 1
        else:
            o = (n + 2 * p - k) // s + 1
        assert o >= 1
        out_sz.append(o)
        extra.append(max(0, (o - 1) * s + k - (n + 2 * p)))
    return tuple(out_sz), tuple(extra)


# The 7 nn.MaxPool3d layers of the module: (kernel, stride, padding, ceil_mode).
# pool_5 has return_indices=True in torch, but the indices are discarded.
_POOLS = (
    (3,         None,      0,         False),   # pool_0
    (4,         2,         2,         False),   # pool_1
    ((1, 2, 3), 1,         (0, 0, 1), False),   # pool_2
    ((3, 4, 5), (1, 2, 2), (1, 2, 2), True),    # pool_3
    ((2, 3, 3), 1,         1,         False),   # pool_4
    (2,         1,         0,         True),    # pool_5
    ((5, 4, 4), 1,         2,         False),   # pool_6
)


def _chain_geometry(spatial):
    """Static per-stage geometry of the fused chain."""
    stages = []
    cur = tuple(int(s) for s in spatial)
    for (k, s, p, ceil) in _POOLS:
        ks = _triple(k)
        st = _triple(s) if s is not None else ks
        pd = _triple(p)
        out_sz, extra = _pool_geom(cur, ks, st, pd, ceil)
        padded = tuple(cur[i] + 2 * pd[i] + extra[i] for i in range(3))
        stages.append(dict(ks=ks, st=st, pad=pd, in_sz=cur, padded=padded,
                           out_sz=out_sz, needs_pad=(padded != cur)))
        cur = out_sz
    return stages, cur


# ---------------------------------------------------------------------------
# Kernel
# ---------------------------------------------------------------------------

def _subsample_cols(val, stride, n_out, sub_ref):
    """Keep lane columns 0, stride, 2*stride, ... via a small VMEM gather buf."""
    rows = val.shape[0]
    for o in range(n_out):
        sub_ref[0:rows, o:o + 1] = val[:, o * stride:o * stride + 1]
    return sub_ref[0:rows, 0:n_out]


def _subsample_rows(val, stride, n_out, sub_ref):
    """Keep sublane rows 0, stride, 2*stride, ... via the same gather buffer."""
    cols = val.shape[1]
    for o in range(n_out):
        sub_ref[o:o + 1, 0:cols] = val[o * stride:o * stride + 1, :]
    return sub_ref[0:n_out, 0:cols]


def _pool_stage(src_ref, dst_ref, sub_ref, ks, st, out_sz):
    """One MaxPool3d: src_ref is the (-inf padded) input volume, dst_ref gets
    the (Do, Ho, Wo) result.  Separable D -> W -> H, stride applied in-kernel."""
    KD, KH, KW = ks
    SD, SH, SW = st
    Do, Ho, Wo = out_sz
    LW = (Wo - 1) * SW + 1      # stride-1 dense extent needed along W
    LH = (Ho - 1) * SH + 1      # ... along H

    def body(od, carry):
        d0 = od * SD
        # D axis (leading dim): max over KD planes -- pure addressing.
        p = src_ref[d0]
        for kd in range(1, KD):
            p = jnp.maximum(p, src_ref[d0 + kd])
        # W axis (lanes): dense stride-1 max over KW offsets, then subsample.
        dw = p[:, 0:LW]
        for kw in range(1, KW):
            dw = jnp.maximum(dw, p[:, kw:kw + LW])
        if SW > 1:
            dw = _subsample_cols(dw, SW, Wo, sub_ref)        # (Hp, Wo)
        # H axis (sublanes): dense stride-1 max over KH offsets, then subsample.
        dh = dw[0:LH, :]
        for kh in range(1, KH):
            dh = jnp.maximum(dh, dw[kh:kh + LH, :])
        if SH > 1:
            dh = _subsample_rows(dh, SH, Ho, sub_ref)        # (Ho, Wo)
        dst_ref[od] = dh.astype(dst_ref.dtype)
        return carry

    lax.fori_loop(0, Do, body, 0)


def _fused_chain_kernel(x_ref, o_ref, *scratch, stages):
    """Runs the whole 7-pool chain for one channel volume, all in VMEM."""
    n = len(stages)
    out_bufs = list(scratch[:n - 1])
    rest = list(scratch[n - 1:])
    pad_bufs = {i: rest.pop(0) for i, g in enumerate(stages) if g["needs_pad"]}
    sub_ref = rest.pop(0)

    src = x_ref
    for i, g in enumerate(stages):
        if g["needs_pad"]:
            pb = pad_bufs[i]
            pb[...] = jnp.full(g["padded"], -jnp.inf, dtype=pb.dtype)
            (pd, ph, pw), (D, H, W) = g["pad"], g["in_sz"]
            pb[pd:pd + D, ph:ph + H, pw:pw + W] = src[...]
            src = pb
        dst = o_ref if i == n - 1 else out_bufs[i]
        _pool_stage(src, dst, sub_ref, g["ks"], g["st"], g["out_sz"])
        src = dst


# ---------------------------------------------------------------------------
# Wrapper
# ---------------------------------------------------------------------------

def _pool_chain_fused(x4):
    """Full 7-layer MaxPool3d chain on (NC, D, H, W) in a single pallas_call."""
    NC, D, H, W = x4.shape
    stages, out_sz = _chain_geometry((D, H, W))

    scratch = []
    # Un-padded per-stage outputs (last stage writes straight to o_ref).
    for g in stages[:-1]:
        scratch.append(pltpu.VMEM(g["out_sz"], x4.dtype))
    # Padded (-inf) input buffers, only for layers that actually pad.
    for g in stages:
        if g["needs_pad"]:
            scratch.append(pltpu.VMEM(g["padded"], x4.dtype))
    # Shared gather buffer used to apply the window stride along W / H.
    max_rows = max(max(g["padded"][1] for g in stages),
                   max(g["out_sz"][1] for g in stages))
    max_cols = max(g["out_sz"][2] for g in stages)
    scratch.append(pltpu.VMEM((max_rows, max_cols), x4.dtype))

    kernel = functools.partial(_fused_chain_kernel, stages=stages)
    return pl.pallas_call(
        kernel,
        out_shape=jax.ShapeDtypeStruct((NC,) + out_sz, x4.dtype),
        grid=(NC,),
        in_specs=[pl.BlockSpec((None, D, H, W), lambda c: (c, 0, 0, 0))],
        out_specs=pl.BlockSpec((None,) + out_sz, lambda c: (c, 0, 0, 0)),
        scratch_shapes=tuple(scratch),
        compiler_params=pltpu.CompilerParams(
            dimension_semantics=("parallel",)),   # shards channels across TCs on v7x
    )(x4)


def model_forward(x):
    """Matches Model.forward.  y = x.reshape(12,64,64,64) contains exactly the
    same 12 channel volumes as the 5-D x, and MaxPool3d pools each (D,H,W)
    volume independently -> run the chain once and produce both outputs."""
    N, C, D, H, W = x.shape
    out = _pool_chain_fused(x.reshape(N * C, D, H, W))    # (N*C, 11, 6, 6)
    out_x = out.reshape((N, C) + out.shape[1:])
    out_y = out                                           # == chain(x.reshape(12,64,64,64))
    return out_x, out_y


# ---------------------------------------------------------------------------
# Pure-JAX reference (lax.reduce_window) for verification
# ---------------------------------------------------------------------------

def _ref_maxpool3d(x, kernel_size, stride=None, padding=0, ceil_mode=False):
    ks = _triple(kernel_size)
    st = _triple(stride) if stride is not None else ks
    pd = _triple(padding)
    lead, spatial = x.shape[:-3], x.shape[-3:]
    out_sz, extra = _pool_geom(spatial, ks, st, pd, ceil_mode)
    nb = len(lead)
    res = lax.reduce_window(
        x, -jnp.inf, lax.max,
        window_dimensions=(1,) * nb + ks,
        window_strides=(1,) * nb + st,
        padding=((0, 0),) * nb + tuple(
            (pd[i], pd[i] + extra[i]) for i in range(3)))
    return res[..., :out_sz[0], :out_sz[1], :out_sz[2]]


def _ref_chain(t):
    for (k, s, p, ceil) in _POOLS:
        t = _ref_maxpool3d(t, k, s, p, ceil)
    return t


def model_forward_ref(x):
    y = x.reshape(12, 64, 64, 64)
    return _ref_chain(x), _ref_chain(y)


if __name__ == "__main__":
    key = jax.random.PRNGKey(0)
    # Shape is pinned by the module's hard-coded y = x.reshape(12, 64, 64, 64).
    x = jax.random.uniform(key, (1, 12, 64, 64, 64), dtype=jnp.float32)

    out_x, out_y = jax.jit(model_forward)(x)
    jax.block_until_ready((out_x, out_y))

    assert out_x.shape == (1, 12, 11, 6, 6), out_x.shape
    assert out_y.shape == (12, 11, 6, 6), out_y.shape

    # Verify against a pure-JAX reduce_window reference (both outputs).
    ref_x, ref_y = model_forward_ref(x)
    np.testing.assert_allclose(np.asarray(out_x), np.asarray(ref_x))
    np.testing.assert_allclose(np.asarray(out_y), np.asarray(ref_y))

    print("KERNEL_OK")
</pallas_src>

<mosaic_0001>
module attributes {stable_mosaic.version = 11 : i64} {
  func.func @_fused_chain_kernel(%arg0: i32, %arg1: memref<1x64x64x64xf32, #tpu.memory_space<vmem>>, %arg2: memref<1x11x6x6xf32, #tpu.memory_space<vmem>>, %arg3: memref<21x21x21xf32, #tpu.memory_space<vmem>>, %arg4: memref<11x11x11xf32, #tpu.memory_space<vmem>>, %arg5: memref<11x10x11xf32, #tpu.memory_space<vmem>>, %arg6: memref<11x6x6xf32, #tpu.memory_space<vmem>>, %arg7: memref<12x6x6xf32, #tpu.memory_space<vmem>>, %arg8: memref<11x5x5xf32, #tpu.memory_space<vmem>>, %arg9: memref<25x25x25xf32, #tpu.memory_space<vmem>>, %arg10: memref<11x11x13xf32, #tpu.memory_space<vmem>>, %arg11: memref<13x14x15xf32, #tpu.memory_space<vmem>>, %arg12: memref<13x8x8xf32, #tpu.memory_space<vmem>>, %arg13: memref<15x9x9xf32, #tpu.memory_space<vmem>>, %arg14: memref<64x21xf32, #tpu.memory_space<vmem>>) attributes {dimension_semantics = [#tpu.dimension_semantics<parallel>], iteration_bounds = array<i64: 12>, scalar_prefetch = 0 : i64, scratch_operands = 12 : i64, tpu.core_type = #tpu.core_type<tc>, window_params = [{transform_indices = @transform_0, window_bounds = array<i64: 1, 64, 64, 64>}, {transform_indices = @transform_1, window_bounds = array<i64: 1, 11, 6, 6>}]} {
    %c0_i32 = arith.constant 0 : i32
    %c21_i32 = arith.constant 21 : i32
    %0 = arith.addi %c0_i32, %c21_i32 : i32
    %c1_i32 = arith.constant 1 : i32
    scf.for %arg15 = %c0_i32 to %0 step %c1_i32  : i32 {
      %c3_i32 = arith.constant 3 : i32
      %27 = arith.muli %arg15, %c3_i32 : i32
      %c0_69 = arith.constant 0 : index
      %28 = arith.index_cast %27 : i32 to index
      %c0_70 = arith.constant 0 : index
      %c0_71 = arith.constant 0 : index
      %29 = vector.load %arg1[%c0_69, %28, %c0_70, %c0_71] : memref<1x64x64x64xf32, #tpu.memory_space<vmem>>, vector<1x1x64x64xf32>
      %30 = vector.shape_cast %29 : vector<1x1x64x64xf32> to vector<64x64xf32>
      %c1_i32_72 = arith.constant 1 : i32
      %31 = arith.addi %27, %c1_i32_72 : i32
      %c0_73 = arith.constant 0 : index
      %32 = arith.index_cast %31 : i32 to index
      %c0_74 = arith.constant 0 : index
      %c0_75 = arith.constant 0 : index
      %33 = vector.load %arg1[%c0_73, %32, %c0_74, %c0_75] : memref<1x64x64x64xf32, #tpu.memory_space<vmem>>, vector<1x1x64x64xf32>
      %34 = vector.shape_cast %33 : vector<1x1x64x64xf32> to vector<64x64xf32>
      %35 = arith.maximumf %30, %34 : vector<64x64xf32>
      %c2_i32 = arith.constant 2 : i32
      %36 = arith.addi %27, %c2_i32 : i32
      %c0_76 = arith.constant 0 : index
      %37 = arith.index_cast %36 : i32 to index
      %c0_77 = arith.constant 0 : index
      %c0_78 = arith.constant 0 : index
      %38 = vector.load %arg1[%c0_76, %37, %c0_77, %c0_78] : memref<1x64x64x64xf32, #tpu.memory_space<vmem>>, vector<1x1x64x64xf32>
      %39 = vector.shape_cast %38 : vector<1x1x64x64xf32> to vector<64x64xf32>
      %40 = arith.maximumf %35, %39 : vector<64x64xf32>
      %41 = vector.extract_strided_slice %40 {offsets = [0, 0], sizes = [64, 61], strides = [1, 1]} : vector<64x64xf32> to vector<64x61xf32>
      %42 = vector.extract_strided_slice %40 {offsets = [0, 1], sizes = [64, 61], strides = [1, 1]} : vector<64x64xf32> to vector<64x61xf32>
      %43 = arith.maximumf %41, %42 : vector<64x61xf32>
      %44 = vector.extract_strided_slice %40 {offsets = [0, 2], sizes = [64, 61], strides = [1, 1]} : vector<64x64xf32> to vector<64x61xf32>
      %45 = arith.maximumf %43, %44 : vector<64x61xf32>
      %46 = vector.extract_strided_slice %45 {offsets = [0, 0], sizes = [64, 1], strides = [1, 1]} : vector<64x61xf32> to vector<64x1xf32>
      %c0_79 = arith.constant 0 : index
      %c0_80 = arith.constant 0 : index
      %47 = vector.load %arg14[%c0_79, %c0_80] : memref<64x21xf32, #tpu.memory_space<vmem>>, vector<64x1xf32>
      tpu.vector_store %arg14[%c0_79, %c0_80], %46 {strides = array<i32>} : memref<64x21xf32, #tpu.memory_space<vmem>>, vector<64x1xf32>,
      %48 = vector.extract_strided_slice %45 {offsets = [0, 3], sizes = [64, 1], strides = [1, 1]} : vector<64x61xf32> to vector<64x1xf32>
      %c0_81 = arith.constant 0 : index
      %c1_82 = arith.constant 1 : index
      %49 = vector.load %arg14[%c0_81, %c1_82] : memref<64x21xf32, #tpu.memory_space<vmem>>, vector<64x1xf32>
      tpu.vector_store %arg14[%c0_81, %c1_82], %48 {strides = array<i32>} : memref<64x21xf32, #tpu.memory_space<vmem>>, vector<64x1xf32>,
      %50 = vector.extract_strided_slice %45 {offsets = [0, 6], sizes = [64, 1], strides = [1, 1]} : vector<64x61xf32> to vector<64x1xf32>
      %c0_83 = arith.constant 0 : index
      %c2_84 = arith.constant 2 : index
      %51 = vector.load %arg14[%c0_83, %c2_84] : memref<64x21xf32, #tpu.memory_space<vmem>>, vector<64x1xf32>
      tpu.vector_store %arg14[%c0_83, %c2_84], %50 {strides = array<i32>} : memref<64x21xf32, #tpu.memory_space<vmem>>, vector<64x1xf32>,
      %52 = vector.extract_strided_slice %45 {offsets = [0, 9], sizes = [64, 1], strides = [1, 1]} : vector<64x61xf32> to vector<64x1xf32>
      %c0_85 = arith.constant 0 : index
      %c3 = arith.constant 3 : index
      %53 = vector.load %arg14[%c0_85, %c3] : memref<64x21xf32, #tpu.memory_space<vmem>>, vector<64x1xf32>
      tpu.vector_store %arg14[%c0_85, %c3], %52 {strides = array<i32>} : memref<64x21xf32, #tpu.memory_space<vmem>>, vector<64x1xf32>,
      %54 = vector.extract_strided_slice %45 {offsets = [0, 12], sizes = [64, 1], strides = [1, 1]} : vector<64x61xf32> to vector<64x1xf32>
      %c0_86 = arith.constant 0 : index
      %c4 = arith.constant 4 : index
      %55 = vector.load %arg14[%c0_86, %c4] : memref<64x21xf32, #tpu.memory_space<vmem>>, vector<64x1xf32>
      tpu.vector_store %arg14[%c0_86, %c4], %54 {strides = array<i32>} : memref<64x21xf32, #tpu.memory_space<vmem>>, vector<64x1xf32>,
      %56 = vector.extract_strided_slice %45 {offsets = [0, 15], sizes = [64, 1], strides = [1, 1]} : vector<64x61xf32> to vector<64x1xf32>
      %c0_87 = arith.constant 0 : index
      %c5 = arith.constant 5 : index
      %57 = vector.load %arg14[%c0_87, %c5] : memref<64x21xf32, #tpu.memory_space<vmem>>, vector<64x1xf32>
      tpu.vector_store %arg14[%c0_87, %c5], %56 {strides = array<i32>} : memref<64x21xf32, #tpu.memory_space<vmem>>, vector<64x1xf32>,
      %58 = vector.extract_strided_slice %45 {offsets = [0, 18], sizes = [64, 1], strides = [1, 1]} : vector<64x61xf32> to vector<64x1xf32>
      %c0_88 = arith.constant 0 : index
      %c6 = arith.constant 6 : index
      %59 = vector.load %arg14[%c0_88, %c6] : memref<64x21xf32, #tpu.memory_space<vmem>>, vector<64x1xf32>
      tpu.vector_store %arg14[%c0_88, %c6], %58 {strides = array<i32>} : memref<64x21xf32, #tpu.memory_space<vmem>>, vector<64x1xf32>,
      %60 = vector.extract_strided_slice %45 {offsets = [0, 21], sizes = [64, 1], strides = [1, 1]} : vector<64x61xf32> to vector<64x1xf32>
      %c0_89 = arith.constant 0 : index
      %c7 = arith.constant 7 : index
      %61 = vector.load %arg14[%c0_89, %c7] : memref<64x21xf32, #tpu.memory_space<vmem>>, vector<64x1xf32>
      tpu.vector_store %arg14[%c0_89, %c7], %60 {strides = array<i32>} : memref<64x21xf32, #tpu.memory_space<vmem>>, vector<64x1xf32>,
      %62 = vector.extract_strided_slice %45 {offsets = [0, 24], sizes = [64, 1], strides = [1, 1]} : vector<64x61xf32> to vector<64x1xf32>
      %c0_90 = arith.constant 0 : index
      %c8 = arith.constant 8 : index
      %63 = vector.load %arg14[%c0_90, %c8] : memref<64x21xf32, #tpu.memory_space<vmem>>, vector<64x1xf32>
      tpu.vector_store %arg14[%c0_90, %c8], %62 {strides = array<i32>} : memref<64x21xf32, #tpu.memory_space<vmem>>, vector<64x1xf32>,
      %64 = vector.extract_strided_slice %45 {offsets = [0, 27], sizes = [64, 1], strides = [1, 1]} : vector<64x61xf32> to vector<64x1xf32>
      %c0_91 = arith.constant 0 : index
      %c9 = arith.constant 9 : index
      %65 = vector.load %arg14[%c0_91, %c9] : memref<64x21xf32, #tpu.memory_space<vmem>>, vector<64x1xf32>
      tpu.vector_store %arg14[%c0_91, %c9], %64 {strides = array<i32>} : memref<64x21xf32, #tpu.memory_space<vmem>>, vector<64x1xf32>,
      %66 = vector.extract_strided_slice %45 {offsets = [0, 30], sizes = [64, 1], strides = [1, 1]} : vector<64x61xf32> to vector<64x1xf32>
      %c0_92 = arith.constant 0 : index
      %c10 = arith.constant 10 : index
      %67 = vector.load %arg14[%c0_92, %c10] : memref<64x21xf32, #tpu.memory_space<vmem>>, vector<64x1xf32>
      tpu.vector_store %arg14[%c0_92, %c10], %66 {strides = array<i32>} : memref<64x21xf32, #tpu.memory_space<vmem>>, vector<64x1xf32>,
      %68 = vector.extract_strided_slice %45 {offsets = [0, 33], sizes = [64, 1], strides = [1, 1]} : vector<64x61xf32> to vector<64x1xf32>
      %c0_93 = arith.constant 0 : index
      %c11 = arith.constant 11 : index
      %69 = vector.load %arg14[%c0_93, %c11] : memref<64x21xf32, #tpu.memory_space<vmem>>, vector<64x1xf32>
      tpu.vector_store %arg14[%c0_93, %c11], %68 {strides = array<i32>} : memref<64x21xf32, #tpu.memory_space<vmem>>, vector<64x1xf32>,
      %70 = vector.extract_strided_slice %45 {offsets = [0, 36], sizes = [64, 1], strides = [1, 1]} : vector<64x61xf32> to vector<64x1xf32>
      %c0_94 = arith.constant 0 : index
      %c12 = arith.constant 12 : index
      %71 = vector.load %arg14[%c0_94, %c12] : memref<64x21xf32, #tpu.memory_space<vmem>>, vector<64x1xf32>
      tpu.vector_store %arg14[%c0_94, %c12], %70 {strides = array<i32>} : memref<64x21xf32, #tpu.memory_space<vmem>>, vector<64x1xf32>,
      %72 = vector.extract_strided_slice %45 {offsets = [0, 39], sizes = [64, 1], strides = [1, 1]} : vector<64x61xf32> to vector<64x1xf32>
      %c0_95 = arith.constant 0 : index
      %c13 = arith.constant 13 : index
      %73 = vector.load %arg14[%c0_95, %c13] : memref<64x21xf32, #tpu.memory_space<vmem>>, vector<64x1xf32>
      tpu.vector_store %arg14[%c0_95, %c13], %72 {strides = array<i32>} : memref<64x21xf32, #tpu.memory_space<vmem>>, vector<64x1xf32>,
      %74 = vector.extract_strided_slice %45 {offsets = [0, 42], sizes = [64, 1], strides = [1, 1]} : vector<64x61xf32> to vector<64x1xf32>
      %c0_96 = arith.constant 0 : index
      %c14 = arith.constant 14 : index
      %75 = vector.load %arg14[%c0_96, %c14] : memref<64x21xf32, #tpu.memory_space<vmem>>, vector<64x1xf32>
      tpu.vector_store %arg14[%c0_96, %c14], %74 {strides = array<i32>} : memref<64x21xf32, #tpu.memory_space<vmem>>, vector<64x1xf32>,
      %76 = vector.extract_strided_slice %45 {offsets = [0, 45], sizes = [64, 1], strides = [1, 1]} : vector<64x61xf32> to vector<64x1xf32>
      %c0_97 = arith.constant 0 : index
      %c15 = arith.constant 15 : index
      %77 = vector.load %arg14[%c0_97, %c15] : memref<64x21xf32, #tpu.memory_space<vmem>>, vector<64x1xf32>
      tpu.vector_store %arg14[%c0_97, %c15], %76 {strides = array<i32>} : memref<64x21xf32, #tpu.memory_space<vmem>>, vector<64x1xf32>,
      %78 = vector.extract_strided_slice %45 {offsets = [0, 48], sizes = [64, 1], strides = [1, 1]} : vector<64x61xf32> to vector<64x1xf32>
      %c0_98 = arith.constant 0 : index
      %c16 = arith.constant 16 : index
      %79 = vector.load %arg14[%c0_98, %c16] : memref<64x21xf32, #tpu.memory_space<vmem>>, vector<64x1xf32>
      tpu.vector_store %arg14[%c0_98, %c16], %78 {strides = array<i32>} : memref<64x21xf32, #tpu.memory_space<vmem>>, vector<64x1xf32>,
      %80 = vector.extract_strided_slice %45 {offsets = [0, 51], sizes = [64, 1], strides = [1, 1]} : vector<64x61xf32> to vector<64x1xf32>
      %c0_99 = arith.constant 0 : index
      %c17 = arith.constant 17 : index
      %81 = vector.load %arg14[%c0_99, %c17] : memref<64x21xf32, #tpu.memory_space<vmem>>, vector<64x1xf32>
      tpu.vector_store %arg14[%c0_99, %c17], %80 {strides = array<i32>} : memref<64x21xf32, #tpu.memory_space<vmem>>, vector<64x1xf32>,
      %82 = vector.extract_strided_slice %45 {offsets = [0, 54], sizes = [64, 1], strides = [1, 1]} : vector<64x61xf32> to vector<64x1xf32>
      %c0_100 = arith.constant 0 : index
      %c18 = arith.constant 18 : index
      %83 = vector.load %arg14[%c0_100, %c18] : memref<64x21xf32, #tpu.memory_space<vmem>>, vector<64x1xf32>
      tpu.vector_store %arg14[%c0_100, %c18], %82 {strides = array<i32>} : memref<64x21xf32, #tpu.memory_space<vmem>>, vector<64x1xf32>,
      %84 = vector.extract_strided_slice %45 {offsets = [0, 57], sizes = [64, 1], strides = [1, 1]} : vector<64x61xf32> to vector<64x1xf32>
      %c0_101 = arith.constant 0 : index
      %c19 = arith.constant 19 : index
      %85 = vector.load %arg14[%c0_101, %c19] : memref<64x21xf32, #tpu.memory_space<vmem>>, vector<64x1xf32>
      tpu.vector_store %arg14[%c0_101, %c19], %84 {strides = array<i32>} : memref<64x21xf32, #tpu.memory_space<vmem>>, vector<64x1xf32>,
      %86 = vector.extract_strided_slice %45 {offsets = [0, 60], sizes = [64, 1], strides = [1, 1]} : vector<64x61xf32> to vector<64x1xf32>
      %c0_102 = arith.constant 0 : index
      %c20 = arith.constant 20 : index
      %87 = vector.load %arg14[%c0_102, %c20] : memref<64x21xf32, #tpu.memory_space<vmem>>, vector<64x1xf32>
      tpu.vector_store %arg14[%c0_102, %c20], %86 {strides = array<i32>} : memref<64x21xf32, #tpu.memory_space<vmem>>, vector<64x1xf32>,
      %c0_103 = arith.constant 0 : index
      %c0_104 = arith.constant 0 : index
      %88 = vector.load %arg14[%c0_103, %c0_104] : memref<64x21xf32, #tpu.memory_space<vmem>>, vector<64x21xf32>
      %89 = vector.extract_strided_slice %88 {offsets = [0, 0], sizes = [61, 21], strides = [1, 1]} : vector<64x21xf32> to vector<61x21xf32>
      %90 = vector.extract_strided_slice %88 {offsets = [1, 0], sizes = [61, 21], strides = [1, 1]} : vector<64x21xf32> to vector<61x21xf32>
      %91 = arith.maximumf %89, %90 : vector<61x21xf32>
      %92 = vector.extract_strided_slice %88 {offsets = [2, 0], sizes = [61, 21], strides = [1, 1]} : vector<64x21xf32> to vector<61x21xf32>
      %93 = arith.maximumf %91, %92 : vector<61x21xf32>
      %94 = vector.extract_strided_slice %93 {offsets = [0, 0], sizes = [1, 21], strides = [1, 1]} : vector<61x21xf32> to vector<1x21xf32>
      %c0_105 = arith.constant 0 : index
      %c0_106 = arith.constant 0 : index
      %95 = vector.load %arg14[%c0_105, %c0_106] : memref<64x21xf32, #tpu.memory_space<vmem>>, vector<1x21xf32>
      tpu.vector_store %arg14[%c0_105, %c0_106], %94 {strides = array<i32>} : memref<64x21xf32, #tpu.memory_space<vmem>>, vector<1x21xf32>,
      %96 = vector.extract_strided_slice %93 {offsets = [3, 0], sizes = [1, 21], strides = [1, 1]} : vector<61x21xf32> to vector<1x21xf32>
      %c1_107 = arith.constant 1 : index
      %c0_108 = arith.constant 0 : index
      %97 = vector.load %arg14[%c1_107, %c0_108] : memref<64x21xf32, #tpu.memory_space<vmem>>, vector<1x21xf32>
      tpu.vector_store %arg14[%c1_107, %c0_108], %96 {strides = array<i32>} : memref<64x21xf32, #tpu.memory_space<vmem>>, vector<1x21xf32>,
      %98 = vector.extract_strided_slice %93 {offsets = [6, 0], sizes = [1, 21], strides = [1, 1]} : vector<61x21xf32> to vector<1x21xf32>
      %c2_109 = arith.constant 2 : index
      %c0_110 = arith.constant 0 : index
      %99 = vector.load %arg14[%c2_109, %c0_110] : memref<64x21xf32, #tpu.memory_space<vmem>>, vector<1x21xf32>
      tpu.vector_store %arg14[%c2_109, %c0_110], %98 {strides = array<i32>} : memref<64x21xf32, #tpu.memory_space<vmem>>, vector<1x21xf32>,
      %100 = vector.extract_strided_slice %93 {offsets = [9, 0], sizes = [1, 21], strides = [1, 1]} : vector<61x21xf32> to vector<1x21xf32>
      %c3_111 = arith.constant 3 : index
      %c0_112 = arith.constant 0 : index
      %101 = vector.load %arg14[%c3_111, %c0_112] : memref<64x21xf32, #tpu.memory_space<vmem>>, vector<1x21xf32>
      tpu.vector_store %arg14[%c3_111, %c0_112], %100 {strides = array<i32>} : memref<64x21xf32, #tpu.memory_space<vmem>>, vector<1x21xf32>,
      %102 = vector.extract_strided_slice %93 {offsets = [12, 0], sizes = [1, 21], strides = [1, 1]} : vector<61x21xf32> to vector<1x21xf32>
      %c4_113 = arith.constant 4 : index
      %c0_114 = arith.constant 0 : index
      %103 = vector.load %arg14[%c4_113, %c0_114] : memref<64x21xf32, #tpu.memory_space<vmem>>, vector<1x21xf32>
      tpu.vector_store %arg14[%c4_113, %c0_114], %102 {strides = array<i32>} : memref<64x21xf32, #tpu.memory_space<vmem>>, vector<1x21xf32>,
      %104 = vector.extract_strided_slice %93 {offsets = [15, 0], sizes = [1, 21], strides = [1, 1]} : vector<61x21xf32> to vector<1x21xf32>
      %c5_115 = arith.constant 5 : index
      %c0_116 = arith.constant 0 : index
      %105 = vector.load %arg14[%c5_115, %c0_116] : memref<64x21xf32, #tpu.memory_space<vmem>>, vector<1x21xf32>
      tpu.vector_store %arg14[%c5_115, %c0_116], %104 {strides = array<i32>} : memref<64x21xf32, #tpu.memory_space<vmem>>, vector<1x21xf32>,
      %106 = vector.extract_strided_slice %93 {offsets = [18, 0], sizes = [1, 21], strides = [1, 1]} : vector<61x21xf32> to vector<1x21xf32>
      %c6_117 = arith.constant 6 : index
      %c0_118 = arith.constant 0 : index
      %107 = vector.load %arg14[%c6_117, %c0_118] : memref<64x21xf32, #tpu.memory_space<vmem>>, vector<1x21xf32>
      tpu.vector_store %arg14[%c6_117, %c0_118], %106 {strides = array<i32>} : memref<64x21xf32, #tpu.memory_space<vmem>>, vector<1x21xf32>,
      %108 = vector.extract_strided_slice %93 {offsets = [21, 0], sizes = [1, 21], strides = [1, 1]} : vector<61x21xf32> to vector<1x21xf32>
      %c7_119 = arith.constant 7 : index
      %c0_120 = arith.constant 0 : index
      %109 = vector.load %arg14[%c7_119, %c0_120] : memref<64x21xf32, #tpu.memory_space<vmem>>, vector<1x21xf32>
      tpu.vector_store %arg14[%c7_119, %c0_120], %108 {strides = array<i32>} : memref<64x21xf32, #tpu.memory_space<vmem>>, vector<1x21xf32>,
      %110 = vector.extract_strided_slice %93 {offsets = [24, 0], sizes = [1, 21], strides = [1, 1]} : vector<61x21xf32> to vector<1x21xf32>
      %c8_121 = arith.constant 8 : index
      %c0_122 = arith.constant 0 : index
      %111 = vector.load %arg14[%c8_121, %c0_122] : memref<64x21xf32, #tpu.memory_space<vmem>>, vector<1x21xf32>
      tpu.vector_store %arg14[%c8_121, %c0_122], %110 {strides = array<i32>} : memref<64x21xf32, #tpu.memory_space<vmem>>, vector<1x21xf32>,
      %112 = vector.extract_strided_slice %93 {offsets = [27, 0], sizes = [1, 21], strides = [1, 1]} : vector<61x21xf32> to vector<1x21xf32>
      %c9_123 = arith.constant 9 : index
      %c0_124 = arith.constant 0 : index
      %113 = vector.load %arg14[%c9_123, %c0_124] : memref<64x21xf32, #tpu.memory_space<vmem>>, vector<1x21xf32>
      tpu.vector_store %arg14[%c9_123, %c0_124], %112 {strides = array<i32>} : memref<64x21xf32, #tpu.memory_space<vmem>>, vector<1x21xf32>,
      %114 = vector.extract_strided_slice %93 {offsets = [30, 0], sizes = [1, 21], strides = [1, 1]} : vector<61x21xf32> to vector<1x21xf32>
      %c10_125 = arith.constant 10 : index
      %c0_126 = arith.constant 0 : index
      %115 = vector.load %arg14[%c10_125, %c0_126] : memref<64x21xf32, #tpu.memory_space<vmem>>, vector<1x21xf32>
      tpu.vector_store %arg14[%c10_125, %c0_126], %114 {strides = array<i32>} : memref<64x21xf32, #tpu.memory_space<vmem>>, vector<1x21xf32>,
      %116 = vector.extract_strided_slice %93 {offsets = [33, 0], sizes = [1, 21], strides = [1, 1]} : vector<61x21xf32> to vector<1x21xf32>
      %c11_127 = arith.constant 11 : index
      %c0_128 = arith.constant 0 : index
      %117 = vector.load %arg14[%c11_127, %c0_128] : memref<64x21xf32, #tpu.memory_space<vmem>>, vector<1x21xf32>
      tpu.vector_store %arg14[%c11_127, %c0_128], %116 {strides = array<i32>} : memref<64x21xf32, #tpu.memory_space<vmem>>, vector<1x21xf32>,
      %118 = vector.extract_strided_slice %93 {offsets = [36, 0], sizes = [1, 21], strides = [1, 1]} : vector<61x21xf32> to vector<1x21xf32>
      %c12_129 = arith.constant 12 : index
      %c0_130 = arith.constant 0 : index
      %119 = vector.load %arg14[%c12_129, %c0_130] : memref<64x21xf32, #tpu.memory_space<vmem>>, vector<1x21xf32>
      tpu.vector_store %arg14[%c12_129, %c0_130], %118 {strides = array<i32>} : memref<64x21xf32, #tpu.memory_space<vmem>>, vector<1x21xf32>,
      %120 = vector.extract_strided_slice %93 {offsets = [39, 0], sizes = [1, 21], strides = [1, 1]} : vector<61x21xf32> to vector<1x21xf32>
      %c13_131 = arith.constant 13 : index
      %c0_132 = arith.constant 0 : index
      %121 = vector.load %arg14[%c13_131, %c0_132] : memref<64x21xf32, #tpu.memory_space<vmem>>, vector<1x21xf32>
      tpu.vector_store %arg14[%c13_131, %c0_132], %120 {strides = array<i32>} : memref<64x21xf32, #tpu.memory_space<vmem>>, vector<1x21xf32>,
      %122 = vector.extract_strided_slice %93 {offsets = [42, 0], sizes = [1, 21], strides = [1, 1]} : vector<61x21xf32> to vector<1x21xf32>
      %c14_133 = arith.constant 14 : index
      %c0_134 = arith.constant 0 : index
      %123 = vector.load %arg14[%c14_133, %c0_134] : memref<64x21xf32, #tpu.memory_space<vmem>>, vector<1x21xf32>
      tpu.vector_store %arg14[%c14_133, %c0_134], %122 {strides = array<i32>} : memref<64x21xf32, #tpu.memory_space<vmem>>, vector<1x21xf32>,
      %124 = vector.extract_strided_slice %93 {offsets = [45, 0], sizes = [1, 21], strides = [1, 1]} : vector<61x21xf32> to vector<1x21xf32>
      %c15_135 = arith.constant 15 : index
      %c0_136 = arith.constant 0 : index
      %125 = vector.load %arg14[%c15_135, %c0_136] : memref<64x21xf32, #tpu.memory_space<vmem>>, vector<1x21xf32>
      tpu.vector_store %arg14[%c15_135, %c0_136], %124 {strides = array<i32>} : memref<64x21xf32, #tpu.memory_space<vmem>>, vector<1x21xf32>,
      %126 = vector.extract_strided_slice %93 {offsets = [48, 0], sizes = [1, 21], strides = [1, 1]} : vector<61x21xf32> to vector<1x21xf32>
      %c16_137 = arith.constant 16 : index
      %c0_138 = arith.constant 0 : index
      %127 = vector.load %arg14[%c16_137, %c0_138] : memref<64x21xf32, #tpu.memory_space<vmem>>, vector<1x21xf32>
      tpu.vector_store %arg14[%c16_137, %c0_138], %126 {strides = array<i32>} : memref<64x21xf32, #tpu.memory_space<vmem>>, vector<1x21xf32>,
      %128 = vector.extract_strided_slice %93 {offsets = [51, 0], sizes = [1, 21], strides = [1, 1]} : vector<61x21xf32> to vector<1x21xf32>
      %c17_139 = arith.constant 17 : index
      %c0_140 = arith.constant 0 : index
      %129 = vector.load %arg14[%c17_139, %c0_140] : memref<64x21xf32, #tpu.memory_space<vmem>>, vector<1x21xf32>
      tpu.vector_store %arg14[%c17_139, %c0_140], %128 {strides = array<i32>} : memref<64x21xf32, #tpu.memory_space<vmem>>, vector<1x21xf32>,
      %130 = vector.extract_strided_slice %93 {offsets = [54, 0], sizes = [1, 21], strides = [1, 1]} : vector<61x21xf32> to vector<1x21xf32>
      %c18_141 = arith.constant 18 : index
      %c0_142 = arith.constant 0 : index
      %131 = vector.load %arg14[%c18_141, %c0_142] : memref<64x21xf32, #tpu.memory_space<vmem>>, vector<1x21xf32>
      tpu.vector_store %arg14[%c18_141, %c0_142], %130 {strides = array<i32>} : memref<64x21xf32, #tpu.memory_space<vmem>>, vector<1x21xf32>,
      %132 = vector.extract_strided_slice %93 {offsets = [57, 0], sizes = [1, 21], strides = [1, 1]} : vector<61x21xf32> to vector<1x21xf32>
      %c19_143 = arith.constant 19 : index
      %c0_144 = arith.constant 0 : index
      %133 = vector.load %arg14[%c19_143, %c0_144] : memref<64x21xf32, #tpu.memory_space<vmem>>, vector<1x21xf32>
      tpu.vector_store %arg14[%c19_143, %c0_144], %132 {strides = array<i32>} : memref<64x21xf32, #tpu.memory_space<vmem>>, vector<1x21xf32>,
      %134 = vector.extract_strided_slice %93 {offsets = [60, 0], sizes = [1, 21], strides = [1, 1]} : vector<61x21xf32> to vector<1x21xf32>
      %c20_145 = arith.constant 20 : index
      %c0_146 = arith.constant 0 : index
      %135 = vector.load %arg14[%c20_145, %c0_146] : memref<64x21xf32, #tpu.memory_space<vmem>>, vector<1x21xf32>
      tpu.vector_store %arg14[%c20_145, %c0_146], %134 {strides = array<i32>} : memref<64x21xf32, #tpu.memory_space<vmem>>, vector<1x21xf32>,
      %c0_147 = arith.constant 0 : index
      %c0_148 = arith.constant 0 : index
      %136 = vector.load %arg14[%c0_147, %c0_148] : memref<64x21xf32, #tpu.memory_space<vmem>>, vector<21x21xf32>
      %137 = arith.index_cast %arg15 : i32 to index
      %c0_149 = arith.constant 0 : index
      %c0_150 = arith.constant 0 : index
      %138 = vector.load %arg3[%137, %c0_149, %c0_150] : memref<21x21x21xf32, #tpu.memory_space<vmem>>, vector<1x21x21xf32>
      %139 = vector.shape_cast %138 : vector<1x21x21xf32> to vector<21x21xf32>
      %140 = vector.shape_cast %136 : vector<21x21xf32> to vector<1x21x21xf32>
      tpu.vector_store %arg3[%137, %c0_149, %c0_150], %140 {strides = array<i32>} : memref<21x21x21xf32, #tpu.memory_space<vmem>>, vector<1x21x21xf32>,
    }
    %c21_i32_0 = arith.constant 21 : i32
    %cst = arith.constant 0xFF800000 : f32
    %1 = vector.broadcast %cst : f32 to vector<25x25x25xf32>
    %c0 = arith.constant 0 : index
    %c0_1 = arith.constant 0 : index
    %c0_2 = arith.constant 0 : index
    %2 = vector.load %arg9[%c0, %c0_1, %c0_2] : memref<25x25x25xf32, #tpu.memory_space<vmem>>, vector<25x25x25xf32>
    tpu.vector_store %arg9[%c0, %c0_1, %c0_2], %1 {strides = array<i32>} : memref<25x25x25xf32, #tpu.memory_space<vmem>>, vector<25x25x25xf32>,
    %c0_3 = arith.constant 0 : index
    %c0_4 = arith.constant 0 : index
    %c0_5 = arith.constant 0 : index
    %3 = vector.load %arg3[%c0_3, %c0_4, %c0_5] : memref<21x21x21xf32, #tpu.memory_space<vmem>>, vector<21x21x21xf32>
    %c2 = arith.constant 2 : index
    %c2_6 = arith.constant 2 : index
    %c2_7 = arith.constant 2 : index
    %4 = vector.load %arg9[%c2, %c2_6, %c2_7] : memref<25x25x25xf32, #tpu.memory_space<vmem>>, vector<21x21x21xf32>
    tpu.vector_store %arg9[%c2, %c2_6, %c2_7], %3 {strides = array<i32>} : memref<25x25x25xf32, #tpu.memory_space<vmem>>, vector<21x21x21xf32>,
    %c0_i32_8 = arith.constant 0 : i32
    %c11_i32 = arith.constant 11 : i32
    %5 = arith.addi %c0_i32_8, %c11_i32 : i32
    %c1_i32_9 = arith.constant 1 : i32
    scf.for %arg15 = %c0_i32_8 to %5 step %c1_i32_9  : i32 {
      %c2_i32 = arith.constant 2 : i32
      %27 = arith.muli %arg15, %c2_i32 : i32
      %28 = arith.index_cast %27 : i32 to index
      %c0_69 = arith.constant 0 : index
      %c0_70 = arith.constant 0 : index
      %29 = vector.load %arg9[%28, %c0_69, %c0_70] : memref<25x25x25xf32, #tpu.memory_space<vmem>>, vector<1x25x25xf32>
      %30 = vector.shape_cast %29 : vector<1x25x25xf32> to vector<25x25xf32>
      %c1_i32_71 = arith.constant 1 : i32
      %31 = arith.addi %27, %c1_i32_71 : i32
      %32 = arith.index_cast %31 : i32 to index
      %c0_72 = arith.constant 0 : index
      %c0_73 = arith.constant 0 : index
      %33 = vector.load %arg9[%32, %c0_72, %c0_73] : memref<25x25x25xf32, #tpu.memory_space<vmem>>, vector<1x25x25xf32>
      %34 = vector.shape_cast %33 : vector<1x25x25xf32> to vector<25x25xf32>
      %35 = arith.maximumf %30, %34 : vector<25x25xf32>
      %c2_i32_74 = arith.constant 2 : i32
      %36 = arith.addi %27, %c2_i32_74 : i32
      %37 = arith.index_cast %36 : i32 to index
      %c0_75 = arith.constant 0 : index
      %c0_76 = arith.constant 0 : index
      %38 = vector.load %arg9[%37, %c0_75, %c0_76] : memref<25x25x25xf32, #tpu.memory_space<vmem>>, vector<1x25x25xf32>
      %39 = vector.shape_cast %38 : vector<1x25x25xf32> to vector<25x25xf32>
      %40 = arith.maximumf %35, %39 : vector<25x25xf32>
      %c3_i32 = arith.constant 3 : i32
      %41 = arith.addi %27, %c3_i32 : i32
      %42 = arith.index_cast %41 : i32 to index
      %c0_77 = arith.constant 0 : index
      %c0_78 = arith.constant 0 : index
      %43 = vector.load %arg9[%42, %c0_77, %c0_78] : memref<25x25x25xf32, #tpu.memory_space<vmem>>, vector<1x25x25xf32>
      %44 = vector.shape_cast %43 : vector<1x25x25xf32> to vector<25x25xf32>
      %45 = arith.maximumf %40, %44 : vector<25x25xf32>
      %46 = vector.extract_strided_slice %45 {offsets = [0, 0], sizes = [25, 21], strides = [1, 1]} : vector<25x25xf32> to vector<25x21xf32>
      %47 = vector.extract_strided_slice %45 {offsets = [0, 1], sizes = [25, 21], strides = [1, 1]} : vector<25x25xf32> to vector<25x21xf32>
      %48 = arith.maximumf %46, %47 : vector<25x21xf32>
      %49 = vector.extract_strided_slice %45 {offsets = [0, 2], sizes = [25, 21], strides = [1, 1]} : vector<25x25xf32> to vector<25x21xf32>
      %50 = arith.maximumf %48, %49 : vector<25x21xf32>
      %51 = vector.extract_strided_slice %45 {offsets = [0, 3], sizes = [25, 21], strides = [1, 1]} : vector<25x25xf32> to vector<25x21xf32>
      %52 = arith.maximumf %50, %51 : vector<25x21xf32>
      %53 = vector.extract_strided_slice %52 {offsets = [0, 0], sizes = [25, 1], strides = [1, 1]} : vector<25x21xf32> to vector<25x1xf32>
      %c0_79 = arith.constant 0 : index
      %c0_80 = arith.constant 0 : index
      %54 = vector.load %arg14[%c0_79, %c0_80] : memref<64x21xf32, #tpu.memory_space<vmem>>, vector<25x1xf32>
      tpu.vector_store %arg14[%c0_79, %c0_80], %53 {strides = array<i32>} : memref<64x21xf32, #tpu.memory_space<vmem>>, vector<25x1xf32>,
      %55 = vector.extract_strided_slice %52 {offsets = [0, 2], sizes = [25, 1], strides = [1, 1]} : vector<25x21xf32> to vector<25x1xf32>
      %c0_81 = arith.constant 0 : index
      %c1_82 = arith.constant 1 : index
      %56 = vector.load %arg14[%c0_81, %c1_82] : memref<64x21xf32, #tpu.memory_space<vmem>>, vector<25x1xf32>
      tpu.vector_store %arg14[%c0_81, %c1_82], %55 {strides = array<i32>} : memref<64x21xf32, #tpu.memory_space<vmem>>, vector<25x1xf32>,
      %57 = vector.extract_strided_slice %52 {offsets = [0, 4], sizes = [25, 1], strides = [1, 1]} : vector<25x21xf32> to vector<25x1xf32>
      %c0_83 = arith.constant 0 : index
      %c2_84 = arith.constant 2 : index
      %58 = vector.load %arg14[%c0_83, %c2_84] : memref<64x21xf32, #tpu.memory_space<vmem>>, vector<25x1xf32>
      tpu.vector_store %arg14[%c0_83, %c2_84], %57 {strides = array<i32>} : memref<64x21xf32, #tpu.memory_space<vmem>>, vector<25x1xf32>,
      %59 = vector.extract_strided_slice %52 {offsets = [0, 6], sizes = [25, 1], strides = [1, 1]} : vector<25x21xf32> to vector<25x1xf32>
      %c0_85 = arith.constant 0 : index
      %c3 = arith.constant 3 : index
      %60 = vector.load %arg14[%c0_85, %c3] : memref<64x21xf32, #tpu.memory_space<vmem>>, vector<25x1xf32>
      tpu.vector_store %arg14[%c0_85, %c3], %59 {strides = array<i32>} : memref<64x21xf32, #tpu.memory_space<vmem>>, vector<25x1xf32>,
      %61 = vector.extract_strided_slice %52 {offsets = [0, 8], sizes = [25, 1], strides = [1, 1]} : vector<25x21xf32> to vector<25x1xf32>
      %c0_86 = arith.constant 0 : index
      %c4 = arith.constant 4 : index
      %62 = vector.load %arg14[%c0_86, %c4] : memref<64x21xf32, #tpu.memory_space<vmem>>, vector<25x1xf32>
      tpu.vector_store %arg14[%c0_86, %c4], %61 {strides = array<i32>} : memref<64x21xf32, #tpu.memory_space<vmem>>, vector<25x1xf32>,
      %63 = vector.extract_strided_slice %52 {offsets = [0, 10], sizes = [25, 1], strides = [1, 1]} : vector<25x21xf32> to vector<25x1xf32>
      %c0_87 = arith.constant 0 : index
      %c5 = arith.constant 5 : index
      %64 = vector.load %arg14[%c0_87, %c5] : memref<64x21xf32, #tpu.memory_space<vmem>>, vector<25x1xf32>
      tpu.vector_store %arg14[%c0_87, %c5], %63 {strides = array<i32>} : memref<64x21xf32, #tpu.memory_space<vmem>>, vector<25x1xf32>,
      %65 = vector.extract_strided_slice %52 {offsets = [0, 12], sizes = [25, 1], strides = [1, 1]} : vector<25x21xf32> to vector<25x1xf32>
      %c0_88 = arith.constant 0 : index
      %c6 = arith.constant 6 : index
      %66 = vector.load %arg14[%c0_88, %c6] : memref<64x21xf32, #tpu.memory_space<vmem>>, vector<25x1xf32>
      tpu.vector_store %arg14[%c0_88, %c6], %65 {strides = array<i32>} : memref<64x21xf32, #tpu.memory_space<vmem>>, vector<25x1xf32>,
      %67 = vector.extract_strided_slice %52 {offsets = [0, 14], sizes = [25, 1], strides = [1, 1]} : vector<25x21xf32> to vector<25x1xf32>
      %c0_89 = arith.constant 0 : index
      %c7 = arith.constant 7 : index
      %68 = vector.load %arg14[%c0_89, %c7] : memref<64x21xf32, #tpu.memory_space<vmem>>, vector<25x1xf32>
      tpu.vector_store %arg14[%c0_89, %c7], %67 {strides = array<i32>} : memref<64x21xf32, #tpu.memory_space<vmem>>, vector<25x1xf32>,
      %69 = vector.extract_strided_slice %52 {offsets = [0, 16], sizes = [25, 1], strides = [1, 1]} : vector<25x21xf32> to vector<25x1xf32>
      %c0_90 = arith.constant 0 : index
      %c8 = arith.constant 8 : index
      %70 = vector.load %arg14[%c0_90, %c8] : memref<64x21xf32, #tpu.memory_space<vmem>>, vector<25x1xf32>
      tpu.vector_store %arg14[%c0_90, %c8], %69 {strides = array<i32>} : memref<64x21xf32, #tpu.memory_space<vmem>>, vector<25x1xf32>,
      %71 = vector.extract_strided_slice %52 {offsets = [0, 18], sizes = [25, 1], strides = [1, 1]} : vector<25x21xf32> to vector<25x1xf32>
      %c0_91 = arith.constant 0 : index
      %c9 = arith.constant 9 : index
      %72 = vector.load %arg14[%c0_91, %c9] : memref<64x21xf32, #tpu.memory_space<vmem>>, vector<25x1xf32>
      tpu.vector_store %arg14[%c0_91, %c9], %71 {strides = array<i32>} : memref<64x21xf32, #tpu.memory_space<vmem>>, vector<25x1xf32>,
      %73 = vector.extract_strided_slice %52 {offsets = [0, 20], sizes = [25, 1], strides = [1, 1]} : vector<25x21xf32> to vector<25x1xf32>
      %c0_92 = arith.constant 0 : index
      %c10 = arith.constant 10 : index
      %74 = vector.load %arg14[%c0_92, %c10] : memref<64x21xf32, #tpu.memory_space<vmem>>, vector<25x1xf32>
      tpu.vector_store %arg14[%c0_92, %c10], %73 {strides = array<i32>} : memref<64x21xf32, #tpu.memory_space<vmem>>, vector<25x1xf32>,
      %c0_93 = arith.constant 0 : index
      %c0_94 = arith.constant 0 : index
      %75 = vector.load %arg14[%c0_93, %c0_94] : memref<64x21xf32, #tpu.memory_space<vmem>>, vector<25x11xf32>
      %76 = vector.extract_strided_slice %75 {offsets = [0, 0], sizes = [21, 11], strides = [1, 1]} : vector<25x11xf32> to vector<21x11xf32>
      %77 = vector.extract_strided_slice %75 {offsets = [1, 0], sizes = [21, 11], strides = [1, 1]} : vector<25x11xf32> to vector<21x11xf32>
      %78 = arith.maximumf %76, %77 : vector<21x11xf32>
      %79 = vector.extract_strided_slice %75 {offsets = [2, 0], sizes = [21, 11], strides = [1, 1]} : vector<25x11xf32> to vector<21x11xf32>
      %80 = arith.maximumf %78, %79 : vector<21x11xf32>
      %81 = vector.extract_strided_slice %75 {offsets = [3, 0], sizes = [21, 11], strides = [1, 1]} : vector<25x11xf32> to vector<21x11xf32>
      %82 = arith.maximumf %80, %81 : vector<21x11xf32>
      %83 = vector.extract_strided_slice %82 {offsets = [0, 0], sizes = [1, 11], strides = [1, 1]} : vector<21x11xf32> to vector<1x11xf32>
      %c0_95 = arith.constant 0 : index
      %c0_96 = arith.constant 0 : index
      %84 = vector.load %arg14[%c0_95, %c0_96] : memref<64x21xf32, #tpu.memory_space<vmem>>, vector<1x11xf32>
      tpu.vector_store %arg14[%c0_95, %c0_96], %83 {strides = array<i32>} : memref<64x21xf32, #tpu.memory_space<vmem>>, vector<1x11xf32>,
      %85 = vector.extract_strided_slice %82 {offsets = [2, 0], sizes = [1, 11], strides = [1, 1]} : vector<21x11xf32> to vector<1x11xf32>
      %c1_97 = arith.constant 1 : index
      %c0_98 = arith.constant 0 : index
      %86 = vector.load %arg14[%c1_97, %c0_98] : memref<64x21xf32, #tpu.memory_space<vmem>>, vector<1x11xf32>
      tpu.vector_store %arg14[%c1_97, %c0_98], %85 {strides = array<i32>} : memref<64x21xf32, #tpu.memory_space<vmem>>, vector<1x11xf32>,
      %87 = vector.extract_strided_slice %82 {offsets = [4, 0], sizes = [1, 11], strides = [1, 1]} : vector<21x11xf32> to vector<1x11xf32>
      %c2_99 = arith.constant 2 : index
      %c0_100 = arith.constant 0 : index
      %88 = vector.load %arg14[%c2_99, %c0_100] : memref<64x21xf32, #tpu.memory_space<vmem>>, vector<1x11xf32>
      tpu.vector_store %arg14[%c2_99, %c0_100], %87 {strides = array<i32>} : memref<64x21xf32, #tpu.memory_space<vmem>>, vector<1x11xf32>,
      %89 = vector.extract_strided_slice %82 {offsets = [6, 0], sizes = [1, 11], strides = [1, 1]} : vector<21x11xf32> to vector<1x11xf32>
      %c3_101 = arith.constant 3 : index
      %c0_102 = arith.constant 0 : index
      %90 = vector.load %arg14[%c3_101, %c0_102] : memref<64x21xf32, #tpu.memory_space<vmem>>, vector<1x11xf32>
      tpu.vector_store %arg14[%c3_101, %c0_102], %89 {strides = array<i32>} : memref<64x21xf32, #tpu.memory_space<vmem>>, vector<1x11xf32>,
      %91 = vector.extract_strided_slice %82 {offsets = [8, 0], sizes = [1, 11], strides = [1, 1]} : vector<21x11xf32> to vector<1x11xf32>
      %c4_103 = arith.constant 4 : index
      %c0_104 = arith.constant 0 : index
      %92 = vector.load %arg14[%c4_103, %c0_104] : memref<64x21xf32, #tpu.memory_space<vmem>>, vector<1x11xf32>
      tpu.vector_store %arg14[%c4_103, %c0_104], %91 {strides = array<i32>} : memref<64x21xf32, #tpu.memory_space<vmem>>, vector<1x11xf32>,
      %93 = vector.extract_strided_slice %82 {offsets = [10, 0], sizes = [1, 11], strides = [1, 1]} : vector<21x11xf32> to vector<1x11xf32>
      %c5_105 = arith.constant 5 : index
      %c0_106 = arith.constant 0 : index
      %94 = vector.load %arg14[%c5_105, %c0_106] : memref<64x21xf32, #tpu.memory_space<vmem>>, vector<1x11xf32>
      tpu.vector_store %arg14[%c5_105, %c0_106], %93 {strides = array<i32>} : memref<64x21xf32, #tpu.memory_space<vmem>>, vector<1x11xf32>,
      %95 = vector.extract_strided_slice %82 {offsets = [12, 0], sizes = [1, 11], strides = [1, 1]} : vector<21x11xf32> to vector<1x11xf32>
      %c6_107 = arith.constant 6 : index
      %c0_108 = arith.constant 0 : index
      %96 = vector.load %arg14[%c6_107, %c0_108] : memref<64x21xf32, #tpu.memory_space<vmem>>, vector<1x11xf32>
      tpu.vector_store %arg14[%c6_107, %c0_108], %95 {strides = array<i32>} : memref<64x21xf32, #tpu.memory_space<vmem>>, vector<1x11xf32>,
      %97 = vector.extract_strided_slice %82 {offsets = [14, 0], sizes = [1, 11], strides = [1, 1]} : vector<21x11xf32> to vector<1x11xf32>
      %c7_109 = arith.constant 7 : index
      %c0_110 = arith.constant 0 : index
      %98 = vector.load %arg14[%c7_109, %c0_110] : memref<64x21xf32, #tpu.memory_space<vmem>>, vector<1x11xf32>
      tpu.vector_store %arg14[%c7_109, %c0_110], %97 {strides = array<i32>} : memref<64x21xf32, #tpu.memory_space<vmem>>, vector<1x11xf32>,
      %99 = vector.extract_strided_slice %82 {offsets = [16, 0], sizes = [1, 11], strides = [1, 1]} : vector<21x11xf32> to vector<1x11xf32>
      %c8_111 = arith.constant 8 : index
      %c0_112 = arith.constant 0 : index
      %100 = vector.load %arg14[%c8_111, %c0_112] : memref<64x21xf32, #tpu.memory_space<vmem>>, vector<1x11xf32>
      tpu.vector_store %arg14[%c8_111, %c0_112], %99 {strides = array<i32>} : memref<64x21xf32, #tpu.memory_space<vmem>>, vector<1x11xf32>,
      %101 = vector.extract_strided_slice %82 {offsets = [18, 0], sizes = [1, 11], strides = [1, 1]} : vector<21x11xf32> to vector<1x11xf32>
      %c9_113 = arith.constant 9 : index
      %c0_114 = arith.constant 0 : index
      %102 = vector.load %arg14[%c9_113, %c0_114] : memref<64x21xf32, #tpu.memory_space<vmem>>, vector<1x11xf32>
      tpu.vector_store %arg14[%c9_113, %c0_114], %101 {strides = array<i32>} : memref<64x21xf32, #tpu.memory_space<vmem>>, vector<1x11xf32>,
      %103 = vector.extract_strided_slice %82 {offsets = [20, 0], sizes = [1, 11], strides = [1, 1]} : vector<21x11xf32> to vector<1x11xf32>
      %c10_115 = arith.constant 10 : index
      %c0_116 = arith.constant 0 : index
      %104 = vector.load %arg14[%c10_115, %c0_116] : memref<64x21xf32, #tpu.memory_space<vmem>>, vector<1x11xf32>
      tpu.vector_store %arg14[%c10_115, %c0_116], %103 {strides = array<i32>} : memref<64x21xf32, #tpu.memory_space<vmem>>, vector<1x11xf32>,
      %c0_117 = arith.constant 0 : index
      %c0_118 = arith.constant 0 : index
      %105 = vector.load %arg14[%c0_117, %c0_118] : memref<64x21xf32, #tpu.memory_space<vmem>>, vector<11x11xf32>
      %106 = arith.index_cast %arg15 : i32 to index
      %c0_119 = arith.constant 0 : index
      %c0_120 = arith.constant 0 : index
      %107 = vector.load %arg4[%106, %c0_119, %c0_120] : memref<11x11x11xf32, #tpu.memory_space<vmem>>, vector<1x11x11xf32>
      %108 = vector.shape_cast %107 : vector<1x11x11xf32> to vector<11x11xf32>
      %109 = vector.shape_cast %105 : vector<11x11xf32> to vector<1x11x11xf32>
      tpu.vector_store %arg4[%106, %c0_119, %c0_120], %109 {strides = array<i32>} : memref<11x11x11xf32, #tpu.memory_space<vmem>>, vector<1x11x11xf32>,
    }
    %c11_i32_10 = arith.constant 11 : i32
    %cst_11 = arith.constant 0xFF800000 : f32
    %6 = vector.broadcast %cst_11 : f32 to vector<11x11x13xf32>
    %c0_12 = arith.constant 0 : index
    %c0_13 = arith.constant 0 : index
    %c0_14 = arith.constant 0 : index
    %7 = vector.load %arg10[%c0_12, %c0_13, %c0_14] : memref<11x11x13xf32, #tpu.memory_space<vmem>>, vector<11x11x13xf32>
    tpu.vector_store %arg10[%c0_12, %c0_13, %c0_14], %6 {strides = array<i32>} : memref<11x11x13xf32, #tpu.memory_space<vmem>>, vector<11x11x13xf32>,
    %c0_15 = arith.constant 0 : index
    %c0_16 = arith.constant 0 : index
    %c0_17 = arith.constant 0 : index
    %8 = vector.load %arg4[%c0_15, %c0_16, %c0_17] : memref<11x11x11xf32, #tpu.memory_space<vmem>>, vector<11x11x11xf32>
    %c0_18 = arith.constant 0 : index
    %c0_19 = arith.constant 0 : index
    %c1 = arith.constant 1 : index
    %9 = vector.load %arg10[%c0_18, %c0_19, %c1] : memref<11x11x13xf32, #tpu.memory_space<vmem>>, vector<11x11x11xf32>
    tpu.vector_store %arg10[%c0_18, %c0_19, %c1], %8 {strides = array<i32>} : memref<11x11x13xf32, #tpu.memory_space<vmem>>, vector<11x11x11xf32>,
    %c0_i32_20 = arith.constant 0 : i32
    %c11_i32_21 = arith.constant 11 : i32
    %10 = arith.addi %c0_i32_20, %c11_i32_21 : i32
    %c1_i32_22 = arith.constant 1 : i32
    scf.for %arg15 = %c0_i32_20 to %10 step %c1_i32_22  : i32 {
      %c1_i32_69 = arith.constant 1 : i32
      %27 = arith.muli %arg15, %c1_i32_69 : i32
      %28 = arith.index_cast %27 : i32 to index
      %c0_70 = arith.constant 0 : index
      %c0_71 = arith.constant 0 : index
      %29 = vector.load %arg10[%28, %c0_70, %c0_71] : memref<11x11x13xf32, #tpu.memory_space<vmem>>, vector<1x11x13xf32>
      %30 = vector.shape_cast %29 : vector<1x11x13xf32> to vector<11x13xf32>
      %31 = vector.extract_strided_slice %30 {offsets = [0, 0], sizes = [11, 11], strides = [1, 1]} : vector<11x13xf32> to vector<11x11xf32>
      %32 = vector.extract_strided_slice %30 {offsets = [0, 1], sizes = [11, 11], strides = [1, 1]} : vector<11x13xf32> to vector<11x11xf32>
      %33 = arith.maximumf %31, %32 : vector<11x11xf32>
      %34 = vector.extract_strided_slice %30 {offsets = [0, 2], sizes = [11, 11], strides = [1, 1]} : vector<11x13xf32> to vector<11x11xf32>
      %35 = arith.maximumf %33, %34 : vector<11x11xf32>
      %36 = vector.extract_strided_slice %35 {offsets = [0, 0], sizes = [10, 11], strides = [1, 1]} : vector<11x11xf32> to vector<10x11xf32>
      %37 = vector.extract_strided_slice %35 {offsets = [1, 0], sizes = [10, 11], strides = [1, 1]} : vector<11x11xf32> to vector<10x11xf32>
      %38 = arith.maximumf %36, %37 : vector<10x11xf32>
      %39 = arith.index_cast %arg15 : i32 to index
      %c0_72 = arith.constant 0 : index
      %c0_73 = arith.constant 0 : index
      %40 = vector.load %arg5[%39, %c0_72, %c0_73] : memref<11x10x11xf32, #tpu.memory_space<vmem>>, vector<1x10x11xf32>
      %41 = vector.shape_cast %40 : vector<1x10x11xf32> to vector<10x11xf32>
      %42 = vector.shape_cast %38 : vector<10x11xf32> to vector<1x10x11xf32>
      tpu.vector_store %arg5[%39, %c0_72, %c0_73], %42 {strides = array<i32>} : memref<11x10x11xf32, #tpu.memory_space<vmem>>, vector<1x10x11xf32>,
    }
    %c11_i32_23 = arith.constant 11 : i32
    %cst_24 = arith.constant 0xFF800000 : f32
    %11 = vector.broadcast %cst_24 : f32 to vector<13x14x15xf32>
    %c0_25 = arith.constant 0 : index
    %c0_26 = arith.constant 0 : index
    %c0_27 = arith.constant 0 : index
    %12 = vector.load %arg11[%c0_25, %c0_26, %c0_27] : memref<13x14x15xf32, #tpu.memory_space<vmem>>, vector<13x14x15xf32>
    tpu.vector_store %arg11[%c0_25, %c0_26, %c0_27], %11 {strides = array<i32>} : memref<13x14x15xf32, #tpu.memory_space<vmem>>, vector<13x14x15xf32>,
    %c0_28 = arith.constant 0 : index
    %c0_29 = arith.constant 0 : index
    %c0_30 = arith.constant 0 : index
    %13 = vector.load %arg5[%c0_28, %c0_29, %c0_30] : memref<11x10x11xf32, #tpu.memory_space<vmem>>, vector<11x10x11xf32>
    %c1_31 = arith.constant 1 : index
    %c2_32 = arith.constant 2 : index
    %c2_33 = arith.constant 2 : index
    %14 = vector.load %arg11[%c1_31, %c2_32, %c2_33] : memref<13x14x15xf32, #tpu.memory_space<vmem>>, vector<11x10x11xf32>
    tpu.vector_store %arg11[%c1_31, %c2_32, %c2_33], %13 {strides = array<i32>} : memref<13x14x15xf32, #tpu.memory_space<vmem>>, vector<11x10x11xf32>,
    %c0_i32_34 = arith.constant 0 : i32
    %c11_i32_35 = arith.constant 11 : i32
    %15 = arith.addi %c0_i32_34, %c11_i32_35 : i32
    %c1_i32_36 = arith.constant 1 : i32
    scf.for %arg15 = %c0_i32_34 to %15 step %c1_i32_36  : i32 {
      %c1_i32_69 = arith.constant 1 : i32
      %27 = arith.muli %arg15, %c1_i32_69 : i32
      %28 = arith.index_cast %27 : i32 to index
      %c0_70 = arith.constant 0 : index
      %c0_71 = arith.constant 0 : index
      %29 = vector.load %arg11[%28, %c0_70, %c0_71] : memref<13x14x15xf32, #tpu.memory_space<vmem>>, vector<1x14x15xf32>
      %30 = vector.shape_cast %29 : vector<1x14x15xf32> to vector<14x15xf32>
      %c1_i32_72 = arith.constant 1 : i32
      %31 = arith.addi %27, %c1_i32_72 : i32
      %32 = arith.index_cast %31 : i32 to index
      %c0_73 = arith.constant 0 : index
      %c0_74 = arith.constant 0 : index
      %33 = vector.load %arg11[%32, %c0_73, %c0_74] : memref<13x14x15xf32, #tpu.memory_space<vmem>>, vector<1x14x15xf32>
      %34 = vector.shape_cast %33 : vector<1x14x15xf32> to vector<14x15xf32>
      %35 = arith.maximumf %30, %34 : vector<14x15xf32>
      %c2_i32 = arith.constant 2 : i32
      %36 = arith.addi %27, %c2_i32 : i32
      %37 = arith.index_cast %36 : i32 to index
      %c0_75 = arith.constant 0 : index
      %c0_76 = arith.constant 0 : index
      %38 = vector.load %arg11[%37, %c0_75, %c0_76] : memref<13x14x15xf32, #tpu.memory_space<vmem>>, vector<1x14x15xf32>
      %39 = vector.shape_cast %38 : vector<1x14x15xf32> to vector<14x15xf32>
      %40 = arith.maximumf %35, %39 : vector<14x15xf32>
      %41 = vector.extract_strided_slice %40 {offsets = [0, 0], sizes = [14, 11], strides = [1, 1]} : vector<14x15xf32> to vector<14x11xf32>
      %42 = vector.extract_strided_slice %40 {offsets = [0, 1], sizes = [14, 11], strides = [1, 1]} : vector<14x15xf32> to vector<14x11xf32>
      %43 = arith.maximumf %41, %42 : vector<14x11xf32>
      %44 = vector.extract_strided_slice %40 {offsets = [0, 2], sizes = [14, 11], strides = [1, 1]} : vector<14x15xf32> to vector<14x11xf32>
      %45 = arith.maximumf %43, %44 : vector<14x11xf32>
      %46 = vector.extract_strided_slice %40 {offsets = [0, 3], sizes = [14, 11], strides = [1, 1]} : vector<14x15xf32> to vector<14x11xf32>
      %47 = arith.maximumf %45, %46 : vector<14x11xf32>
      %48 = vector.extract_strided_slice %40 {offsets = [0, 4], sizes = [14, 11], strides = [1, 1]} : vector<14x15xf32> to vector<14x11xf32>
      %49 = arith.maximumf %47, %48 : vector<14x11xf32>
      %50 = vector.extract_strided_slice %49 {offsets = [0, 0], sizes = [14, 1], strides = [1, 1]} : vector<14x11xf32> to vector<14x1xf32>
      %c0_77 = arith.constant 0 : index
      %c0_78 = arith.constant 0 : index
      %51 = vector.load %arg14[%c0_77, %c0_78] : memref<64x21xf32, #tpu.memory_space<vmem>>, vector<14x1xf32>
      tpu.vector_store %arg14[%c0_77, %c0_78], %50 {strides = array<i32>} : memref<64x21xf32, #tpu.memory_space<vmem>>, vector<14x1xf32>,
      %52 = vector.extract_strided_slice %49 {offsets = [0, 2], sizes = [14, 1], strides = [1, 1]} : vector<14x11xf32> to vector<14x1xf32>
      %c0_79 = arith.constant 0 : index
      %c1_80 = arith.constant 1 : index
      %53 = vector.load %arg14[%c0_79, %c1_80] : memref<64x21xf32, #tpu.memory_space<vmem>>, vector<14x1xf32>
      tpu.vector_store %arg14[%c0_79, %c1_80], %52 {strides = array<i32>} : memref<64x21xf32, #tpu.memory_space<vmem>>, vector<14x1xf32>,
      %54 = vector.extract_strided_slice %49 {offsets = [0, 4], sizes = [14, 1], strides = [1, 1]} : vector<14x11xf32> to vector<14x1xf32>
      %c0_81 = arith.constant 0 : index
      %c2_82 = arith.constant 2 : index
      %55 = vector.load %arg14[%c0_81, %c2_82] : memref<64x21xf32, #tpu.memory_space<vmem>>, vector<14x1xf32>
      tpu.vector_store %arg14[%c0_81, %c2_82], %54 {strides = array<i32>} : memref<64x21xf32, #tpu.memory_space<vmem>>, vector<14x1xf32>,
      %56 = vector.extract_strided_slice %49 {offsets = [0, 6], sizes = [14, 1], strides = [1, 1]} : vector<14x11xf32> to vector<14x1xf32>
      %c0_83 = arith.constant 0 : index
      %c3 = arith.constant 3 : index
      %57 = vector.load %arg14[%c0_83, %c3] : memref<64x21xf32, #tpu.memory_space<vmem>>, vector<14x1xf32>
      tpu.vector_store %arg14[%c0_83, %c3], %56 {strides = array<i32>} : memref<64x21xf32, #tpu.memory_space<vmem>>, vector<14x1xf32>,
      %58 = vector.extract_strided_slice %49 {offsets = [0, 8], sizes = [14, 1], strides = [1, 1]} : vector<14x11xf32> to vector<14x1xf32>
      %c0_84 = arith.constant 0 : index
      %c4 = arith.constant 4 : index
      %59 = vector.load %arg14[%c0_84, %c4] : memref<64x21xf32, #tpu.memory_space<vmem>>, vector<14x1xf32>
      tpu.vector_store %arg14[%c0_84, %c4], %58 {strides = array<i32>} : memref<64x21xf32, #tpu.memory_space<vmem>>, vector<14x1xf32>,
      %60 = vector.extract_strided_slice %49 {offsets = [0, 10], sizes = [14, 1], strides = [1, 1]} : vector<14x11xf32> to vector<14x1xf32>
      %c0_85 = arith.constant 0 : index
      %c5 = arith.constant 5 : index
      %61 = vector.load %arg14[%c0_85, %c5] : memref<64x21xf32, #tpu.memory_space<vmem>>, vector<14x1xf32>
      tpu.vector_store %arg14[%c0_85, %c5], %60 {strides = array<i32>} : memref<64x21xf32, #tpu.memory_space<vmem>>, vector<14x1xf32>,
      %c0_86 = arith.constant 0 : index
      %c0_87 = arith.constant 0 : index
      %62 = vector.load %arg14[%c0_86, %c0_87] : memref<64x21xf32, #tpu.memory_space<vmem>>, vector<14x6xf32>
      %63 = vector.extract_strided_slice %62 {offsets = [0, 0], sizes = [11, 6], strides = [1, 1]} : vector<14x6xf32> to vector<11x6xf32>
      %64 = vector.extract_strided_slice %62 {offsets = [1, 0], sizes = [11, 6], strides = [1, 1]} : vector<14x6xf32> to vector<11x6xf32>
      %65 = arith.maximumf %63, %64 : vector<11x6xf32>
      %66 = vector.extract_strided_slice %62 {offsets = [2, 0], sizes = [11, 6], strides = [1, 1]} : vector<14x6xf32> to vector<11x6xf32>
      %67 = arith.maximumf %65, %66 : vector<11x6xf32>
      %68 = vector.extract_strided_slice %62 {offsets = [3, 0], sizes = [11, 6], strides = [1, 1]} : vector<14x6xf32> to vector<11x6xf32>
      %69 = arith.maximumf %67, %68 : vector<11x6xf32>
      %70 = vector.extract_strided_slice %69 {offsets = [0, 0], sizes = [1, 6], strides = [1, 1]} : vector<11x6xf32> to vector<1x6xf32>
      %c0_88 = arith.constant 0 : index
      %c0_89 = arith.constant 0 : index
      %71 = vector.load %arg14[%c0_88, %c0_89] : memref<64x21xf32, #tpu.memory_space<vmem>>, vector<1x6xf32>
      tpu.vector_store %arg14[%c0_88, %c0_89], %70 {strides = array<i32>} : memref<64x21xf32, #tpu.memory_space<vmem>>, vector<1x6xf32>,
      %72 = vector.extract_strided_slice %69 {offsets = [2, 0], sizes = [1, 6], strides = [1, 1]} : vector<11x6xf32> to vector<1x6xf32>
      %c1_90 = arith.constant 1 : index
      %c0_91 = arith.constant 0 : index
      %73 = vector.load %arg14[%c1_90, %c0_91] : memref<64x21xf32, #tpu.memory_space<vmem>>, vector<1x6xf32>
      tpu.vector_store %arg14[%c1_90, %c0_91], %72 {strides = array<i32>} : memref<64x21xf32, #tpu.memory_space<vmem>>, vector<1x6xf32>,
      %74 = vector.extract_strided_slice %69 {offsets = [4, 0], sizes = [1, 6], strides = [1, 1]} : vector<11x6xf32> to vector<1x6xf32>
      %c2_92 = arith.constant 2 : index
      %c0_93 = arith.constant 0 : index
      %75 = vector.load %arg14[%c2_92, %c0_93] : memref<64x21xf32, #tpu.memory_space<vmem>>, vector<1x6xf32>
      tpu.vector_store %arg14[%c2_92, %c0_93], %74 {strides = array<i32>} : memref<64x21xf32, #tpu.memory_space<vmem>>, vector<1x6xf32>,
      %76 = vector.extract_strided_slice %69 {offsets = [6, 0], sizes = [1, 6], strides = [1, 1]} : vector<11x6xf32> to vector<1x6xf32>
      %c3_94 = arith.constant 3 : index
      %c0_95 = arith.constant 0 : index
      %77 = vector.load %arg14[%c3_94, %c0_95] : memref<64x21xf32, #tpu.memory_space<vmem>>, vector<1x6xf32>
      tpu.vector_store %arg14[%c3_94, %c0_95], %76 {strides = array<i32>} : memref<64x21xf32, #tpu.memory_space<vmem>>, vector<1x6xf32>,
      %78 = vector.extract_strided_slice %69 {offsets = [8, 0], sizes = [1, 6], strides = [1, 1]} : vector<11x6xf32> to vector<1x6xf32>
      %c4_96 = arith.constant 4 : index
      %c0_97 = arith.constant 0 : index
      %79 = vector.load %arg14[%c4_96, %c0_97] : memref<64x21xf32, #tpu.memory_space<vmem>>, vector<1x6xf32>
      tpu.vector_store %arg14[%c4_96, %c0_97], %78 {strides = array<i32>} : memref<64x21xf32, #tpu.memory_space<vmem>>, vector<1x6xf32>,
      %80 = vector.extract_strided_slice %69 {offsets = [10, 0], sizes = [1, 6], strides = [1, 1]} : vector<11x6xf32> to vector<1x6xf32>
      %c5_98 = arith.constant 5 : index
      %c0_99 = arith.constant 0 : index
      %81 = vector.load %arg14[%c5_98, %c0_99] : memref<64x21xf32, #tpu.memory_space<vmem>>, vector<1x6xf32>
      tpu.vector_store %arg14[%c5_98, %c0_99], %80 {strides = array<i32>} : memref<64x21xf32, #tpu.memory_space<vmem>>, vector<1x6xf32>,
      %c0_100 = arith.constant 0 : index
      %c0_101 = arith.constant 0 : index
      %82 = vector.load %arg14[%c0_100, %c0_101] : memref<64x21xf32, #tpu.memory_space<vmem>>, vector<6x6xf32>
      %83 = arith.index_cast %arg15 : i32 to index
      %c0_102 = arith.constant 0 : index
      %c0_103 = arith.constant 0 : index
      %84 = vector.load %arg6[%83, %c0_102, %c0_103] : memref<11x6x6xf32, #tpu.memory_space<vmem>>, vector<1x6x6xf32>
      %85 = vector.shape_cast %84 : vector<1x6x6xf32> to vector<6x6xf32>
      %86 = vector.shape_cast %82 : vector<6x6xf32> to vector<1x6x6xf32>
      tpu.vector_store %arg6[%83, %c0_102, %c0_103], %86 {strides = array<i32>} : memref<11x6x6xf32, #tpu.memory_space<vmem>>, vector<1x6x6xf32>,
    }
    %c11_i32_37 = arith.constant 11 : i32
    %cst_38 = arith.constant 0xFF800000 : f32
    %16 = vector.broadcast %cst_38 : f32 to vector<13x8x8xf32>
    %c0_39 = arith.constant 0 : index
    %c0_40 = arith.constant 0 : index
    %c0_41 = arith.constant 0 : index
    %17 = vector.load %arg12[%c0_39, %c0_40, %c0_41] : memref<13x8x8xf32, #tpu.memory_space<vmem>>, vector<13x8x8xf32>
    tpu.vector_store %arg12[%c0_39, %c0_40, %c0_41], %16 {strides = array<i32>} : memref<13x8x8xf32, #tpu.memory_space<vmem>>, vector<13x8x8xf32>,
    %c0_42 = arith.constant 0 : index
    %c0_43 = arith.constant 0 : index
    %c0_44 = arith.constant 0 : index
    %18 = vector.load %arg6[%c0_42, %c0_43, %c0_44] : memref<11x6x6xf32, #tpu.memory_space<vmem>>, vector<11x6x6xf32>
    %c1_45 = arith.constant 1 : index
    %c1_46 = arith.constant 1 : index
    %c1_47 = arith.constant 1 : index
    %19 = vector.load %arg12[%c1_45, %c1_46, %c1_47] : memref<13x8x8xf32, #tpu.memory_space<vmem>>, vector<11x6x6xf32>
    tpu.vector_store %arg12[%c1_45, %c1_46, %c1_47], %18 {strides = array<i32>} : memref<13x8x8xf32, #tpu.memory_space<vmem>>, vector<11x6x6xf32>,
    %c0_i32_48 = arith.constant 0 : i32
    %c12_i32 = arith.constant 12 : i32
    %20 = arith.addi %c0_i32_48, %c12_i32 : i32
    %c1_i32_49 = arith.constant 1 : i32
    scf.for %arg15 = %c0_i32_48 to %20 step %c1_i32_49  : i32 {
      %c1_i32_69 = arith.constant 1 : i32
      %27 = arith.muli %arg15, %c1_i32_69 : i32
      %28 = arith.index_cast %27 : i32 to index
      %c0_70 = arith.constant 0 : index
      %c0_71 = arith.constant 0 : index
      %29 = vector.load %arg12[%28, %c0_70, %c0_71] : memref<13x8x8xf32, #tpu.memory_space<vmem>>, vector<1x8x8xf32>
      %30 = vector.shape_cast %29 : vector<1x8x8xf32> to vector<8x8xf32>
      %c1_i32_72 = arith.constant 1 : i32
      %31 = arith.addi %27, %c1_i32_72 : i32
      %32 = arith.index_cast %31 : i32 to index
      %c0_73 = arith.constant 0 : index
      %c0_74 = arith.constant 0 : index
      %33 = vector.load %arg12[%32, %c0_73, %c0_74] : memref<13x8x8xf32, #tpu.memory_space<vmem>>, vector<1x8x8xf32>
      %34 = vector.shape_cast %33 : vector<1x8x8xf32> to vector<8x8xf32>
      %35 = arith.maximumf %30, %34 : vector<8x8xf32>
      %36 = vector.extract_strided_slice %35 {offsets = [0, 0], sizes = [8, 6], strides = [1, 1]} : vector<8x8xf32> to vector<8x6xf32>
      %37 = vector.extract_strided_slice %35 {offsets = [0, 1], sizes = [8, 6], strides = [1, 1]} : vector<8x8xf32> to vector<8x6xf32>
      %38 = arith.maximumf %36, %37 : vector<8x6xf32>
      %39 = vector.extract_strided_slice %35 {offsets = [0, 2], sizes = [8, 6], strides = [1, 1]} : vector<8x8xf32> to vector<8x6xf32>
      %40 = arith.maximumf %38, %39 : vector<8x6xf32>
      %41 = vector.extract_strided_slice %40 {offsets = [0, 0], sizes = [6, 6], strides = [1, 1]} : vector<8x6xf32> to vector<6x6xf32>
      %42 = vector.extract_strided_slice %40 {offsets = [1, 0], sizes = [6, 6], strides = [1, 1]} : vector<8x6xf32> to vector<6x6xf32>
      %43 = arith.maximumf %41, %42 : vector<6x6xf32>
      %44 = vector.extract_strided_slice %40 {offsets = [2, 0], sizes = [6, 6], strides = [1, 1]} : vector<8x6xf32> to vector<6x6xf32>
      %45 = arith.maximumf %43, %44 : vector<6x6xf32>
      %46 = arith.index_cast %arg15 : i32 to index
      %c0_75 = arith.constant 0 : index
      %c0_76 = arith.constant 0 : index
      %47 = vector.load %arg7[%46, %c0_75, %c0_76] : memref<12x6x6xf32, #tpu.memory_space<vmem>>, vector<1x6x6xf32>
      %48 = vector.shape_cast %47 : vector<1x6x6xf32> to vector<6x6xf32>
      %49 = vector.shape_cast %45 : vector<6x6xf32> to vector<1x6x6xf32>
      tpu.vector_store %arg7[%46, %c0_75, %c0_76], %49 {strides = array<i32>} : memref<12x6x6xf32, #tpu.memory_space<vmem>>, vector<1x6x6xf32>,
    }
    %c12_i32_50 = arith.constant 12 : i32
    %c0_i32_51 = arith.constant 0 : i32
    %c11_i32_52 = arith.constant 11 : i32
    %21 = arith.addi %c0_i32_51, %c11_i32_52 : i32
    %c1_i32_53 = arith.constant 1 : i32
    scf.for %arg15 = %c0_i32_51 to %21 step %c1_i32_53  : i32 {
      %c1_i32_69 = arith.constant 1 : i32
      %27 = arith.muli %arg15, %c1_i32_69 : i32
      %28 = arith.index_cast %27 : i32 to index
      %c0_70 = arith.constant 0 : index
      %c0_71 = arith.constant 0 : index
      %29 = vector.load %arg7[%28, %c0_70, %c0_71] : memref<12x6x6xf32, #tpu.memory_space<vmem>>, vector<1x6x6xf32>
      %30 = vector.shape_cast %29 : vector<1x6x6xf32> to vector<6x6xf32>
      %c1_i32_72 = arith.constant 1 : i32
      %31 = arith.addi %27, %c1_i32_72 : i32
      %32 = arith.index_cast %31 : i32 to index
      %c0_73 = arith.constant 0 : index
      %c0_74 = arith.constant 0 : index
      %33 = vector.load %arg7[%32, %c0_73, %c0_74] : memref<12x6x6xf32, #tpu.memory_space<vmem>>, vector<1x6x6xf32>
      %34 = vector.shape_cast %33 : vector<1x6x6xf32> to vector<6x6xf32>
      %35 = arith.maximumf %30, %34 : vector<6x6xf32>
      %36 = vector.extract_strided_slice %35 {offsets = [0, 0], sizes = [6, 5], strides = [1, 1]} : vector<6x6xf32> to vector<6x5xf32>
      %37 = vector.extract_strided_slice %35 {offsets = [0, 1], sizes = [6, 5], strides = [1, 1]} : vector<6x6xf32> to vector<6x5xf32>
      %38 = arith.maximumf %36, %37 : vector<6x5xf32>
      %39 = vector.extract_strided_slice %38 {offsets = [0, 0], sizes = [5, 5], strides = [1, 1]} : vector<6x5xf32> to vector<5x5xf32>
      %40 = vector.extract_strided_slice %38 {offsets = [1, 0], sizes = [5, 5], strides = [1, 1]} : vector<6x5xf32> to vector<5x5xf32>
      %41 = arith.maximumf %39, %40 : vector<5x5xf32>
      %42 = arith.index_cast %arg15 : i32 to index
      %c0_75 = arith.constant 0 : index
      %c0_76 = arith.constant 0 : index
      %43 = vector.load %arg8[%42, %c0_75, %c0_76] : memref<11x5x5xf32, #tpu.memory_space<vmem>>, vector<1x5x5xf32>
      %44 = vector.shape_cast %43 : vector<1x5x5xf32> to vector<5x5xf32>
      %45 = vector.shape_cast %41 : vector<5x5xf32> to vector<1x5x5xf32>
      tpu.vector_store %arg8[%42, %c0_75, %c0_76], %45 {strides = array<i32>} : memref<11x5x5xf32, #tpu.memory_space<vmem>>, vector<1x5x5xf32>,
    }
    %c11_i32_54 = arith.constant 11 : i32
    %cst_55 = arith.constant 0xFF800000 : f32
    %22 = vector.broadcast %cst_55 : f32 to vector<15x9x9xf32>
    %c0_56 = arith.constant 0 : index
    %c0_57 = arith.constant 0 : index
    %c0_58 = arith.constant 0 : index
    %23 = vector.load %arg13[%c0_56, %c0_57, %c0_58] : memref<15x9x9xf32, #tpu.memory_space<vmem>>, vector<15x9x9xf32>
    tpu.vector_store %arg13[%c0_56, %c0_57, %c0_58], %22 {strides = array<i32>} : memref<15x9x9xf32, #tpu.memory_space<vmem>>, vector<15x9x9xf32>,
    %c0_59 = arith.constant 0 : index
    %c0_60 = arith.constant 0 : index
    %c0_61 = arith.constant 0 : index
    %24 = vector.load %arg8[%c0_59, %c0_60, %c0_61] : memref<11x5x5xf32, #tpu.memory_space<vmem>>, vector<11x5x5xf32>
    %c2_62 = arith.constant 2 : index
    %c2_63 = arith.constant 2 : index
    %c2_64 = arith.constant 2 : index
    %25 = vector.load %arg13[%c2_62, %c2_63, %c2_64] : memref<15x9x9xf32, #tpu.memory_space<vmem>>, vector<11x5x5xf32>
    tpu.vector_store %arg13[%c2_62, %c2_63, %c2_64], %24 {strides = array<i32>} : memref<15x9x9xf32, #tpu.memory_space<vmem>>, vector<11x5x5xf32>,
    %c0_i32_65 = arith.constant 0 : i32
    %c11_i32_66 = arith.constant 11 : i32
    %26 = arith.addi %c0_i32_65, %c11_i32_66 : i32
    %c1_i32_67 = arith.constant 1 : i32
    scf.for %arg15 = %c0_i32_65 to %26 step %c1_i32_67  : i32 {
      %c1_i32_69 = arith.constant 1 : i32
      %27 = arith.muli %arg15, %c1_i32_69 : i32
      %28 = arith.index_cast %27 : i32 to index
      %c0_70 = arith.constant 0 : index
      %c0_71 = arith.constant 0 : index
      %29 = vector.load %arg13[%28, %c0_70, %c0_71] : memref<15x9x9xf32, #tpu.memory_space<vmem>>, vector<1x9x9xf32>
      %30 = vector.shape_cast %29 : vector<1x9x9xf32> to vector<9x9xf32>
      %c1_i32_72 = arith.constant 1 : i32
      %31 = arith.addi %27, %c1_i32_72 : i32
      %32 = arith.index_cast %31 : i32 to index
      %c0_73 = arith.constant 0 : index
      %c0_74 = arith.constant 0 : index
      %33 = vector.load %arg13[%32, %c0_73, %c0_74] : memref<15x9x9xf32, #tpu.memory_space<vmem>>, vector<1x9x9xf32>
      %34 = vector.shape_cast %33 : vector<1x9x9xf32> to vector<9x9xf32>
      %35 = arith.maximumf %30, %34 : vector<9x9xf32>
      %c2_i32 = arith.constant 2 : i32
      %36 = arith.addi %27, %c2_i32 : i32
      %37 = arith.index_cast %36 : i32 to index
      %c0_75 = arith.constant 0 : index
      %c0_76 = arith.constant 0 : index
      %38 = vector.load %arg13[%37, %c0_75, %c0_76] : memref<15x9x9xf32, #tpu.memory_space<vmem>>, vector<1x9x9xf32>
      %39 = vector.shape_cast %38 : vector<1x9x9xf32> to vector<9x9xf32>
      %40 = arith.maximumf %35, %39 : vector<9x9xf32>
      %c3_i32 = arith.constant 3 : i32
      %41 = arith.addi %27, %c3_i32 : i32
      %42 = arith.index_cast %41 : i32 to index
      %c0_77 = arith.constant 0 : index
      %c0_78 = arith.constant 0 : index
      %43 = vector.load %arg13[%42, %c0_77, %c0_78] : memref<15x9x9xf32, #tpu.memory_space<vmem>>, vector<1x9x9xf32>
      %44 = vector.shape_cast %43 : vector<1x9x9xf32> to vector<9x9xf32>
      %45 = arith.maximumf %40, %44 : vector<9x9xf32>
      %c4_i32 = arith.constant 4 : i32
      %46 = arith.addi %27, %c4_i32 : i32
      %47 = arith.index_cast %46 : i32 to index
      %c0_79 = arith.constant 0 : index
      %c0_80 = arith.constant 0 : index
      %48 = vector.load %arg13[%47, %c0_79, %c0_80] : memref<15x9x9xf32, #tpu.memory_space<vmem>>, vector<1x9x9xf32>
      %49 = vector.shape_cast %48 : vector<1x9x9xf32> to vector<9x9xf32>
      %50 = arith.maximumf %45, %49 : vector<9x9xf32>
      %51 = vector.extract_strided_slice %50 {offsets = [0, 0], sizes = [9, 6], strides = [1, 1]} : vector<9x9xf32> to vector<9x6xf32>
      %52 = vector.extract_strided_slice %50 {offsets = [0, 1], sizes = [9, 6], strides = [1, 1]} : vector<9x9xf32> to vector<9x6xf32>
      %53 = arith.maximumf %51, %52 : vector<9x6xf32>
      %54 = vector.extract_strided_slice %50 {offsets = [0, 2], sizes = [9, 6], strides = [1, 1]} : vector<9x9xf32> to vector<9x6xf32>
      %55 = arith.maximumf %53, %54 : vector<9x6xf32>
      %56 = vector.extract_strided_slice %50 {offsets = [0, 3], sizes = [9, 6], strides = [1, 1]} : vector<9x9xf32> to vector<9x6xf32>
      %57 = arith.maximumf %55, %56 : vector<9x6xf32>
      %58 = vector.extract_strided_slice %57 {offsets = [0, 0], sizes = [6, 6], strides = [1, 1]} : vector<9x6xf32> to vector<6x6xf32>
      %59 = vector.extract_strided_slice %57 {offsets = [1, 0], sizes = [6, 6], strides = [1, 1]} : vector<9x6xf32> to vector<6x6xf32>
      %60 = arith.maximumf %58, %59 : vector<6x6xf32>
      %61 = vector.extract_strided_slice %57 {offsets = [2, 0], sizes = [6, 6], strides = [1, 1]} : vector<9x6xf32> to vector<6x6xf32>
      %62 = arith.maximumf %60, %61 : vector<6x6xf32>
      %63 = vector.extract_strided_slice %57 {offsets = [3, 0], sizes = [6, 6], strides = [1, 1]} : vector<9x6xf32> to vector<6x6xf32>
      %64 = arith.maximumf %62, %63 : vector<6x6xf32>
      %c0_81 = arith.constant 0 : index
      %65 = arith.index_cast %arg15 : i32 to index
      %c0_82 = arith.constant 0 : index
      %c0_83 = arith.constant 0 : index
      %66 = vector.load %arg2[%c0_81, %65, %c0_82, %c0_83] : memref<1x11x6x6xf32, #tpu.memory_space<vmem>>, vector<1x1x6x6xf32>
      %67 = vector.shape_cast %66 : vector<1x1x6x6xf32> to vector<6x6xf32>
      %68 = vector.shape_cast %64 : vector<6x6xf32> to vector<1x1x6x6xf32>
      tpu.vector_store %arg2[%c0_81, %65, %c0_82, %c0_83], %68 {strides = array<i32>} : memref<1x11x6x6xf32, #tpu.memory_space<vmem>>, vector<1x1x6x6xf32>,
    }
    %c11_i32_68 = arith.constant 11 : i32
    return
  }
  func.func @transform_0(%arg0: i32) -> (i32, i32, i32, i32) {
    %c0_i32 = arith.constant 0 : i32
    %c0_i32_0 = arith.constant 0 : i32
    %c0_i32_1 = arith.constant 0 : i32
    %c0_i32_2 = arith.constant 0 : i32
    return %arg0, %c0_i32, %c0_i32_0, %c0_i32_1 : i32, i32, i32, i32
  }
  func.func @transform_1(%arg0: i32) -> (i32, i32, i32, i32) {
    %c0_i32 = arith.constant 0 : i32
    %c0_i32_0 = arith.constant 0 : i32
    %c0_i32_1 = arith.constant 0 : i32
    %c0_i32_2 = arith.constant 0 : i32
    return %arg0, %c0_i32, %c0_i32_0, %c0_i32_1 : i32, i32, i32, i32
  }
}

</mosaic_0001>

<llo_original>
// kernel: model_forward.1
$region0: #{model_forward.1}
  #allocation0 [shape = 'u32[]', space=smem, size = 0x4, offset = 0x4, fixed_abs, tag = 'smem constant byte address 0x4 - core index']
  #allocation1 [shape = 'u32[144,128]{1,0:T(1,128)}', space=vmem, size = 0x12000, scoped, tag = 'internal scratch']
  #allocation2 [shape = 'f32[21,21,21]{2,1,0:T(8,128)}', space=vmem, size = 0x3f000, scoped, tag = 'scratch operand']
  #allocation3 [shape = 'f32[11,11,11]{2,1,0:T(8,128)}', space=vmem, size = 0x16000, scoped, tag = 'scratch operand']
  #allocation4 [shape = 'f32[11,10,11]{2,1,0:T(8,128)}', space=vmem, size = 0x16000, scoped, tag = 'scratch operand']
  #allocation5 [shape = 'f32[11,6,6]{2,1,0:T(8,128)}', space=vmem, size = 0xb000, scoped, tag = 'scratch operand']
  #allocation6 [shape = 'f32[12,6,6]{2,1,0:T(8,128)}', space=vmem, size = 0xc000, scoped, tag = 'scratch operand']
  #allocation7 [shape = 'f32[11,5,5]{2,1,0:T(8,128)}', space=vmem, size = 0xb000, scoped, tag = 'scratch operand']
  #allocation8 [shape = 'f32[25,25,25]{2,1,0:T(8,128)}', space=vmem, size = 0x64000, scoped, tag = 'scratch operand']
  #allocation9 [shape = 'f32[11,11,13]{2,1,0:T(8,128)}', space=vmem, size = 0x16000, scoped, tag = 'scratch operand']
  #allocation10 [shape = 'f32[13,14,15]{2,1,0:T(8,128)}', space=vmem, size = 0x1a000, scoped, tag = 'scratch operand']
  #allocation11 [shape = 'f32[13,8,8]{2,1,0:T(8,128)}', space=vmem, size = 0xd000, scoped, tag = 'scratch operand']
  #allocation12 [shape = 'f32[15,9,9]{2,1,0:T(8,128)}', space=vmem, size = 0x1e000, scoped, tag = 'scratch operand']
  #allocation13 [shape = 'f32[64,21]{1,0:T(8,128)}', space=vmem, size = 0x8000, scoped, tag = 'scratch operand']
  %s0 = inlined_call_operand.hbm [shape: f32[12,64,64,64], index: 0, kind: input, shape index: {}]
  %s1 = inlined_call_operand.vmem [shape: f32[12,11,6,6], index: 1, kind: output, shape index: {}]
  %s2 = sld [smem:[#allocation0]]
  $region90: #{model_forward.1} parent=0
    _
  %s4 = ssub.s32 1, %s2
  %s5 = scalar_select 0, %s4, %s2
  $region1: #{model_forward.1} parent=0
    #allocation14 [shape = 'u8[4194304]{0}', space=vmem, size = 0x400000, scoped, tag = 'input window, operand 0']
    #allocation15 [shape = 's32[2]{0}', space=sflag, size = 0x8, scoped, tag = 'scoped memory for model_forward.1']
    %6 = vsyncpa [#allocation15], 0
    %s7 = scalar_lea.sflag [#allocation15], 1
    %8 = vsyncpa %s7, 0
    loop: start=0, step=1, limit=14
    $region2: #{model_forward.1} parent=1 // loop_pre_header
      _
    $region3: #{model_forward.1} parent=1 // loop_header
      %s10 = sphi 0, %s14
      %p11 = scmp.ge.s32.totalorder %s10, 14
      %s20 = sphi 0, %s22
      %s23 = sphi 0, %s20
      %s24 = sphi 0, %s23
      %s40 = sphi 0, %s24
      %s46 = sphi 0, %s48
      %s49 = sphi 0, %s46
      %s50 = sphi 0, %s49
      %s66 = sphi 0, %s50
    $region4: #{model_forward.1} parent=1 // loop_header_branch
      %13 = sbr.rel (%p11) target = $region8
    $region5: #{model_forward.1} parent=1 // loop_body
      %s15 = ssub.s32 %s10, 1
      %s16 = ssub.s32 %s10, 2
      %s17 = sadd.s32 %s10, 1
      %s18 = ssub.s32 %s10, %s17
      %p19 = scmp.eq.s32.totalorder %s18, 0
      %s21 = sadd.s32 %s20, 1
      %s22 = scalar_select %p19, %s20, %s21
      %p25 = pneg %p19
      %p26 = scmp.eq.s32.totalorder %s10, 11
      %p27 = por %p25, %p26
      %p28 = scmp.ne.s32.totalorder %s20, %s23
      %p29 = scmp.eq.s32.totalorder %s10, 0
      %p30 = por %p28, %p29
      %p31 = scmp.ne.s32.totalorder %s20, %s23
      %p32 = scmp.eq.s32.totalorder %s15, 11
      %p33 = por %p31, %p32
      %p34 = scmp.ne.s32.totalorder %s23, %s24
      %p35 = scmp.eq.s32.totalorder %s15, 0
      %p36 = por %p34, %p35
      %p37 = scmp.ne.s32.totalorder %s23, %s24
      %p38 = scmp.eq.s32.totalorder %s16, 11
      %p39 = por %p37, %p38
      %p41 = scmp.ne.s32.totalorder %s24, %s40
      %p42 = scmp.eq.s32.totalorder %s16, 0
      %p43 = por %p41, %p42
      %s44 = ssub.s32 %s10, %s17
      %p45 = scmp.eq.s32.totalorder %s44, 0
      %s47 = sadd.s32 %s46, 1
      %s48 = scalar_select %p45, %s46, %s47
      %p51 = pneg %p45
      %p52 = scmp.eq.s32.totalorder %s10, 11
      %p53 = por %p51, %p52
      %p54 = scmp.ne.s32.totalorder %s46, %s49
      %p55 = scmp.eq.s32.totalorder %s10, 0
      %p56 = por %p54, %p55
      %p57 = scmp.ne.s32.totalorder %s46, %s49
      %p58 = scmp.eq.s32.totalorder %s15, 11
      %p59 = por %p57, %p58
      %p60 = scmp.ne.s32.totalorder %s49, %s50
      %p61 = scmp.eq.s32.totalorder %s15, 0
      %p62 = por %p60, %p61
      %p63 = scmp.ne.s32.totalorder %s49, %s50
      %p64 = scmp.eq.s32.totalorder %s16, 11
      %p65 = por %p63, %p64
      %p67 = scmp.ne.s32.totalorder %s50, %s66
      %p68 = scmp.eq.s32.totalorder %s16, 0
      %p69 = por %p67, %p68
      %p70 = scmp.le.s32.totalorder 1, %s10
      %p71 = scmp.lt.s32.totalorder %s10, 13
      %p72 = pnand %p70, %p71
      %p73 = pneg %p72
      // Predicated region
      $region9: #{model_forward.1} parent=5 // pred_check
        _
      $region10: #{model_forward.1} parent=5 // pred_check_branch
        %75 = sbr.rel (%p72) target = $region12
      $region11: #{model_forward.1} parent=5 // pred_region
        %s76 = ssub.s32 %s10, 1
      $region12: #{model_forward.1} parent=5 // pred_fallthru
        _
      %p77 = scmp.lt.s32.totalorder %s10, 12
      // Predicated region
      $region13: #{model_forward.1} parent=5 // pred_check
        %p78 = pneg %p77
      $region14: #{model_forward.1} parent=5 // pred_check_branch
        %80 = sbr.rel (%p78) target = $region16
      $region15: #{model_forward.1} parent=5 // pred_region
        // Predicated region
        $region17: #{model_forward.1} parent=15 // pred_check
          %p81 = pneg %p30
        $region18: #{model_forward.1} parent=15 // pred_check_branch
          %83 = sbr.rel (%p81) target = $region20
        $region19: #{model_forward.1} parent=15 // pred_region
          %s84 = sand.u32 %s20, 1
          %s85 = scalar_lea.sflag [#allocation15], %s84
          %s86 = sand.u32 %s20, 1
          %s87 = smul.addr %s86, 4096
          %s88 = scalar_lea.vmem [#allocation14], %s87
          %s90 = ssub.s32 65536, 65536
          %91 = vsyncadd %s85, %s90
          %s92 = smul.addr %s10, 512
          %s93 = smul.addr %s92, 128
          %s94 = scalar_lea.hbm %s0, %s93
          %s95 = sshll.u32 %s88, 4
          %s96 = int_to_ptr.vmem [resolvable:$true] %s95
          %101 = dma.hbm_to_vmem [thread:$0]  %s94, 65536, %s96, %s85, 128, 128, 8
        $region20: #{model_forward.1} parent=15 // pred_fallthru
          _
      $region16: #{model_forward.1} parent=5 // pred_fallthru
        _
      %p102 = scmp.le.s32.totalorder 1, %s10
      %p103 = scmp.lt.s32.totalorder %s10, 13
      %p104 = pnand %p102, %p103
      %p105 = pneg %p104
      // Predicated region
      $region21: #{model_forward.1} parent=5 // pred_check
        _
      $region22: #{model_forward.1} parent=5 // pred_check_branch
        %107 = sbr.rel (%p104) target = $region24
      $region23: #{model_forward.1} parent=5 // pred_region
        %s108 = ssub.s32 %s10, 1
        %s109 = sand.u32 %s23, 1
        %s110 = scalar_lea.sflag [#allocation15], %s109
        %s111 = sand.u32 %s23, 1
        %s112 = smul.addr %s111, 4096
        %s113 = scalar_lea.vmem [#allocation14], %s112
        // Predicated region
        $region25: #{model_forward.1} parent=23 // pred_check
          %p114 = pneg %p36
        $region26: #{model_forward.1} parent=23 // pred_check_branch
          %116 = sbr.rel (%p114) target = $region28
        $region27: #{model_forward.1} parent=23 // pred_region
          %117 = dma.done %s110, 65536
        $region28: #{model_forward.1} parent=23 // pred_fallthru
          _
        %s118 = sand.u32 %s23, 1
        %s119 = scalar_lea.sflag [#allocation15], %s118
        %s120 = sand.u32 %s23, 1
        %s121 = smul.addr %s120, 4096
        %s122 = scalar_lea.vmem [#allocation14], %s121
        %p123 = pneg %p36
        %p124 = pneg %p33
        %p125 = pneg %p62
        %p126 = pneg %p59
        %p127 = scmp.lt.s32.totalorder %s15, 11
        %s128 = scalar_select %p127, %s15, 11
        %s129 = smul.addr %s128, 11
        %s130 = smul.addr %s129, 8
        %s131 = scalar_lea.vmem %s1, %s130
        %p132 = scmp.lt.s32.totalorder %s15, 11
        %s133 = scalar_select %p132, %s15, 11
        %s134 = smul.addr %s133, 11
        %s135 = smul.addr %s134, 8
        %s136 = scalar_lea.vmem %s1, %s135
        loop: start=0, step=1, limit=21
        $region29: #{model_forward.1} parent=23 // loop_pre_header
          _
        $region30: #{model_forward.1} parent=23 // loop_header
          %s138 = sphi 0, %s142
          %p139 = scmp.ge.s32.totalorder %s138, 21
        $region31: #{model_forward.1} parent=23 // loop_header_branch
          %141 = sbr.rel (%p139) target = $region35
        $region32: #{model_forward.1} parent=23 // loop_body
          %s143 = smul.u32 %s138, 3
          %s144 = smul.u32 %s143, 64
          %s145 = scalar_lea.vmem %s113, %s144 [#allocation14]
          %v146 = vld [vmem:[%s145] sm:$0xff]
          %v147 = vld [vmem:[%s145 + $0x8] sm:$0xff]
          %v148 = vld [vmem:[%s145 + $0x10] sm:$0xff]
          %v149 = vld [vmem:[%s145 + $0x18] sm:$0xff]
          %v150 = vld [vmem:[%s145 + $0x20] sm:$0xff]
          %v151 = vld [vmem:[%s145 + $0x28] sm:$0xff]
          %v152 = vld [vmem:[%s145 + $0x30] sm:$0xff]
          %v153 = vld [vmem:[%s145 + $0x38] sm:$0xff]
          %s154 = sadd.s32 %s143, 1
          %s155 = smul.u32 %s154, 64
          %s156 = scalar_lea.vmem %s113, %s155 [#allocation14]
          %v157 = vld [vmem:[%s156] sm:$0xff]
          %v158 = vld [vmem:[%s156 + $0x8] sm:$0xff]
          %v159 = vld [vmem:[%s156 + $0x10] sm:$0xff]
          %v160 = vld [vmem:[%s156 + $0x18] sm:$0xff]
          %v161 = vld [vmem:[%s156 + $0x20] sm:$0xff]
          %v162 = vld [vmem:[%s156 + $0x28] sm:$0xff]
          %v163 = vld [vmem:[%s156 + $0x30] sm:$0xff]
          %v164 = vld [vmem:[%s156 + $0x38] sm:$0xff]
          %v165 = vmax.f32 %v146, %v157
          %v166 = vmax.f32 %v147, %v158
          %v167 = vmax.f32 %v148, %v159
          %v168 = vmax.f32 %v149, %v160
          %v169 = vmax.f32 %v150, %v161
          %v170 = vmax.f32 %v151, %v162
          %v171 = vmax.f32 %v152, %v163
          %v172 = vmax.f32 %v153, %v164
          %s173 = sadd.s32 %s143, 2
          %s174 = smul.u32 %s173, 64
          %s175 = scalar_lea.vmem %s113, %s174 [#allocation14]
          %v176 = vld [vmem:[%s175] sm:$0xff]
          %v177 = vld [vmem:[%s175 + $0x8] sm:$0xff]
          %v178 = vld [vmem:[%s175 + $0x10] sm:$0xff]
          %v179 = vld [vmem:[%s175 + $0x18] sm:$0xff]
          %v180 = vld [vmem:[%s175 + $0x20] sm:$0xff]
          %v181 = vld [vmem:[%s175 + $0x28] sm:$0xff]
          %v182 = vld [vmem:[%s175 + $0x30] sm:$0xff]
          %v183 = vld [vmem:[%s175 + $0x38] sm:$0xff]
          %v184 = vmax.f32 %v165, %v176
          %v185 = vmax.f32 %v166, %v177
          %v186 = vmax.f32 %v167, %v178
          %v187 = vmax.f32 %v168, %v179
          %v188 = vmax.f32 %v169, %v180
          %v189 = vmax.f32 %v170, %v181
          %v190 = vmax.f32 %v171, %v182
          %v191 = vmax.f32 %v172, %v183
          %200 = vrot.lane.b32.xlu0 %v184, 127
          %v201 = vpop.permute.xlu0 %200
          %202 = vrot.lane.b32.xlu0 %v185, 127
          %v203 = vpop.permute.xlu0 %202
          %204 = vrot.lane.b32.xlu0 %v186, 127
          %v205 = vpop.permute.xlu0 %204
          %206 = vrot.lane.b32.xlu0 %v187, 127
          %v207 = vpop.permute.xlu0 %206
          %208 = vrot.lane.b32.xlu0 %v188, 127
          %v209 = vpop.permute.xlu0 %208
          %210 = vrot.lane.b32.xlu0 %v189, 127
          %v211 = vpop.permute.xlu0 %210
          %212 = vrot.lane.b32.xlu0 %v190, 127
          %v213 = vpop.permute.xlu0 %212
          %214 = vrot.lane.b32.xlu0 %v191, 127
          %v215 = vpop.permute.xlu0 %214
          %v224 = vmax.f32 %v184, %v201
          %v225 = vmax.f32 %v185, %v203
          %v226 = vmax.f32 %v186, %v205
          %v227 = vmax.f32 %v187, %v207
          %v228 = vmax.f32 %v188, %v209
          %v229 = vmax.f32 %v189, %v211
          %v230 = vmax.f32 %v190, %v213
          %v231 = vmax.f32 %v191, %v215
          %232 = vrot.lane.b32.xlu0 %v184, 126
          %v233 = vpop.permute.xlu0 %232
          %234 = vrot.lane.b32.xlu0 %v185, 126
          %v235 = vpop.permute.xlu0 %234
          %236 = vrot.lane.b32.xlu0 %v186, 126
          %v237 = vpop.permute.xlu0 %236
          %238 = vrot.lane.b32.xlu0 %v187, 126
          %v239 = vpop.permute.xlu0 %238
          %240 = vrot.lane.b32.xlu0 %v188, 126
          %v241 = vpop.permute.xlu0 %240
          %242 = vrot.lane.b32.xlu0 %v189, 126
          %v243 = vpop.permute.xlu0 %242
          %244 = vrot.lane.b32.xlu0 %v190, 126
          %v245 = vpop.permute.xlu0 %244
          %246 = vrot.lane.b32.xlu0 %v191, 126
          %v247 = vpop.permute.xlu0 %246
          %v256 = vmax.f32 %v224, %v233
          %v257 = vmax.f32 %v225, %v235
          %v258 = vmax.f32 %v226, %v237
          %v259 = vmax.f32 %v227, %v239
          %v260 = vmax.f32 %v228, %v241
          %v261 = vmax.f32 %v229, %v243
          %v262 = vmax.f32 %v230, %v245
          %v263 = vmax.f32 %v231, %v247
          %vm264 = vcmask 7168
          %265 = vst.msk [vmem:[#allocation13] sm:$0xff] %vm264, %v256
          %266 = vst.msk [vmem:[#allocation13 + $0x8] sm:$0xff] %vm264, %v257
          %267 = vst.msk [vmem:[#allocation13 + $0x10] sm:$0xff] %vm264, %v258
          %268 = vst.msk [vmem:[#allocation13 + $0x18] sm:$0xff] %vm264, %v259
          %269 = vst.msk [vmem:[#allocation13 + $0x20] sm:$0xff] %vm264, %v260
          %270 = vst.msk [vmem:[#allocation13 + $0x28] sm:$0xff] %vm264, %v261
          %271 = vst.msk [vmem:[#allocation13 + $0x30] sm:$0xff] %vm264, %v262
          %272 = vst.msk [vmem:[#allocation13 + $0x38] sm:$0xff] %vm264, %v263
          %281 = vrot.lane.b32.xlu0 %v256, 126
          %v282 = vpop.permute.xlu0 %281
          %283 = vrot.lane.b32.xlu0 %v257, 126
          %v284 = vpop.permute.xlu0 %283
          %285 = vrot.lane.b32.xlu0 %v258, 126
          %v286 = vpop.permute.xlu0 %285
          %287 = vrot.lane.b32.xlu0 %v259, 126
          %v288 = vpop.permute.xlu0 %287
          %289 = vrot.lane.b32.xlu0 %v260, 126
          %v290 = vpop.permute.xlu0 %289
          %291 = vrot.lane.b32.xlu0 %v261, 126
          %v292 = vpop.permute.xlu0 %291
          %293 = vrot.lane.b32.xlu0 %v262, 126
          %v294 = vpop.permute.xlu0 %293
          %295 = vrot.lane.b32.xlu0 %v263, 126
          %v296 = vpop.permute.xlu0 %295
          %vm305 = vcmask 15368
          %306 = vst.msk [vmem:[#allocation13] sm:$0xff] %vm305, %v282
          %307 = vst.msk [vmem:[#allocation13 + $0x8] sm:$0xff] %vm305, %v284
          %308 = vst.msk [vmem:[#allocation13 + $0x10] sm:$0xff] %vm305, %v286
          %309 = vst.msk [vmem:[#allocation13 + $0x18] sm:$0xff] %vm305, %v288
          %310 = vst.msk [vmem:[#allocation13 + $0x20] sm:$0xff] %vm305, %v290
          %311 = vst.msk [vmem:[#allocation13 + $0x28] sm:$0xff] %vm305, %v292
          %312 = vst.msk [vmem:[#allocation13 + $0x30] sm:$0xff] %vm305, %v294
          %313 = vst.msk [vmem:[#allocation13 + $0x38] sm:$0xff] %vm305, %v296
          %314 = vrot.lane.b32.xlu0 %v256, 124
          %v315 = vpop.permute.xlu0 %314
          %316 = vrot.lane.b32.xlu0 %v257, 124
          %v317 = vpop.permute.xlu0 %316
          %318 = vrot.lane.b32.xlu0 %v258, 124
          %v319 = vpop.permute.xlu0 %318
          %320 = vrot.lane.b32.xlu0 %v259, 124
          %v321 = vpop.permute.xlu0 %320
          %322 = vrot.lane.b32.xlu0 %v260, 124
          %v323 = vpop.permute.xlu0 %322
          %324 = vrot.lane.b32.xlu0 %v261, 124
          %v325 = vpop.permute.xlu0 %324
          %326 = vrot.lane.b32.xlu0 %v262, 124
          %v327 = vpop.permute.xlu0 %326
          %328 = vrot.lane.b32.xlu0 %v263, 124
          %v329 = vpop.permute.xlu0 %328
          %vm338 = vcmask 23568
          %339 = vst.msk [vmem:[#allocation13] sm:$0xff] %vm338, %v315
          %340 = vst.msk [vmem:[#allocation13 + $0x8] sm:$0xff] %vm338, %v317
          %341 = vst.msk [vmem:[#allocation13 + $0x10] sm:$0xff] %vm338, %v319
          %342 = vst.msk [vmem:[#allocation13 + $0x18] sm:$0xff] %vm338, %v321
          %343 = vst.msk [vmem:[#allocation13 + $0x20] sm:$0xff] %vm338, %v323
          %344 = vst.msk [vmem:[#allocation13 + $0x28] sm:$0xff] %vm338, %v325
          %345 = vst.msk [vmem:[#allocation13 + $0x30] sm:$0xff] %vm338, %v327
          %346 = vst.msk [vmem:[#allocation13 + $0x38] sm:$0xff] %vm338, %v329
          %347 = vrot.lane.b32.xlu0 %v256, 122
          %v348 = vpop.permute.xlu0 %347
          %349 = vrot.lane.b32.xlu0 %v257, 122
          %v350 = vpop.permute.xlu0 %349
          %351 = vrot.lane.b32.xlu0 %v258, 122
          %v352 = vpop.permute.xlu0 %351
          %353 = vrot.lane.b32.xlu0 %v259, 122
          %v354 = vpop.permute.xlu0 %353
          %355 = vrot.lane.b32.xlu0 %v260, 122
          %v356 = vpop.permute.xlu0 %355
          %357 = vrot.lane.b32.xlu0 %v261, 122
          %v358 = vpop.permute.xlu0 %357
          %359 = vrot.lane.b32.xlu0 %v262, 122
          %v360 = vpop.permute.xlu0 %359
          %361 = vrot.lane.b32.xlu0 %v263, 122
          %v362 = vpop.permute.xlu0 %361
          %vm371 = vcmask 31768
          %372 = vst.msk [vmem:[#allocation13] sm:$0xff] %vm371, %v348
          %373 = vst.msk [vmem:[#allocation13 + $0x8] sm:$0xff] %vm371, %v350
          %374 = vst.msk [vmem:[#allocation13 + $0x10] sm:$0xff] %vm371, %v352
          %375 = vst.msk [vmem:[#allocation13 + $0x18] sm:$0xff] %vm371, %v354
          %376 = vst.msk [vmem:[#allocation13 + $0x20] sm:$0xff] %vm371, %v356
          %377 = vst.msk [vmem:[#allocation13 + $0x28] sm:$0xff] %vm371, %v358
          %378 = vst.msk [vmem:[#allocation13 + $0x30] sm:$0xff] %vm371, %v360
          %379 = vst.msk [vmem:[#allocation13 + $0x38] sm:$0xff] %vm371, %v362
          %380 = vrot.lane.b32.xlu0 %v256, 120
          %v381 = vpop.permute.xlu0 %380
          %382 = vrot.lane.b32.xlu0 %v257, 120
          %v383 = vpop.permute.xlu0 %382
          %384 = vrot.lane.b32.xlu0 %v258, 120
          %v385 = vpop.permute.xlu0 %384
          %386 = vrot.lane.b32.xlu0 %v259, 120
          %v387 = vpop.permute.xlu0 %386
          %388 = vrot.lane.b32.xlu0 %v260, 120
          %v389 = vpop.permute.xlu0 %388
          %390 = vrot.lane.b32.xlu0 %v261, 120
          %v391 = vpop.permute.xlu0 %390
          %392 = vrot.lane.b32.xlu0 %v262, 120
          %v393 = vpop.permute.xlu0 %392
          %394 = vrot.lane.b32.xlu0 %v263, 120
          %v395 = vpop.permute.xlu0 %394
          %vm404 = vcmask 39968
          %405 = vst.msk [vmem:[#allocation13] sm:$0xff] %vm404, %v381
          %406 = vst.msk [vmem:[#allocation13 + $0x8] sm:$0xff] %vm404, %v383
          %407 = vst.msk [vmem:[#allocation13 + $0x10] sm:$0xff] %vm404, %v385
          %408 = vst.msk [vmem:[#allocation13 + $0x18] sm:$0xff] %vm404, %v387
          %409 = vst.msk [vmem:[#allocation13 + $0x20] sm:$0xff] %vm404, %v389
          %410 = vst.msk [vmem:[#allocation13 + $0x28] sm:$0xff] %vm404, %v391
          %411 = vst.msk [vmem:[#allocation13 + $0x30] sm:$0xff] %vm404, %v393
          %412 = vst.msk [vmem:[#allocation13 + $0x38] sm:$0xff] %vm404, %v395
          %413 = vrot.lane.b32.xlu0 %v256, 118
          %v414 = vpop.permute.xlu0 %413
          %415 = vrot.lane.b32.xlu0 %v257, 118
          %v416 = vpop.permute.xlu0 %415
          %417 = vrot.lane.b32.xlu0 %v258, 118
          %v418 = vpop.permute.xlu0 %417
          %419 = vrot.lane.b32.xlu0 %v259, 118
          %v420 = vpop.permute.xlu0 %419
          %421 = vrot.lane.b32.xlu0 %v260, 118
          %v422 = vpop.permute.xlu0 %421
          %423 = vrot.lane.b32.xlu0 %v261, 118
          %v424 = vpop.permute.xlu0 %423
          %425 = vrot.lane.b32.xlu0 %v262, 118
          %v426 = vpop.permute.xlu0 %425
          %427 = vrot.lane.b32.xlu0 %v263, 118
          %v428 = vpop.permute.xlu0 %427
          %vm437 = vcmask 48168
          %438 = vst.msk [vmem:[#allocation13] sm:$0xff] %vm437, %v414
          %439 = vst.msk [vmem:[#allocation13 + $0x8] sm:$0xff] %vm437, %v416
          %440 = vst.msk [vmem:[#allocation13 + $0x10] sm:$0xff] %vm437, %v418
          %441 = vst.msk [vmem:[#allocation13 + $0x18] sm:$0xff] %vm437, %v420
          %442 = vst.msk [vmem:[#allocation13 + $0x20] sm:$0xff] %vm437, %v422
          %443 = vst.msk [vmem:[#allocation13 + $0x28] sm:$0xff] %vm437, %v424
          %444 = vst.msk [vmem:[#allocation13 + $0x30] sm:$0xff] %vm437, %v426
          %445 = vst.msk [vmem:[#allocation13 + $0x38] sm:$0xff] %vm437, %v428
          %446 = vrot.lane.b32.xlu0 %v256, 116
          %v447 = vpop.permute.xlu0 %446
          %448 = vrot.lane.b32.xlu0 %v257, 116
          %v449 = vpop.permute.xlu0 %448
          %450 = vrot.lane.b32.xlu0 %v258, 116
          %v451 = vpop.permute.xlu0 %450
          %452 = vrot.lane.b32.xlu0 %v259, 116
          %v453 = vpop.permute.xlu0 %452
          %454 = vrot.lane.b32.xlu0 %v260, 116
          %v455 = vpop.permute.xlu0 %454
          %456 = vrot.lane.b32.xlu0 %v261, 116
          %v457 = vpop.permute.xlu0 %456
          %458 = vrot.lane.b32.xlu0 %v262, 116
          %v459 = vpop.permute.xlu0 %458
          %460 = vrot.lane.b32.xlu0 %v263, 116
          %v461 = vpop.permute.xlu0 %460
          %vm470 = vcmask 56368
          %471 = vst.msk [vmem:[#allocation13] sm:$0xff] %vm470, %v447
          %472 = vst.msk [vmem:[#allocation13 + $0x8] sm:$0xff] %vm470, %v449
          %473 = vst.msk [vmem:[#allocation13 + $0x10] sm:$0xff] %vm470, %v451
          %474 = vst.msk [vmem:[#allocation13 + $0x18] sm:$0xff] %vm470, %v453
          %475 = vst.msk [vmem:[#allocation13 + $0x20] sm:$0xff] %vm470, %v455
          %476 = vst.msk [vmem:[#allocation13 + $0x28] sm:$0xff] %vm470, %v457
          %477 = vst.msk [vmem:[#allocation13 + $0x30] sm:$0xff] %vm470, %v459
          %478 = vst.msk [vmem:[#allocation13 + $0x38] sm:$0xff] %vm470, %v461
          %479 = vrot.lane.b32.xlu0 %v256, 114
          %v480 = vpop.permute.xlu0 %479
          %481 = vrot.lane.b32.xlu0 %v257, 114
          %v482 = vpop.permute.xlu0 %481
          %483 = vrot.lane.b32.xlu0 %v258, 114
          %v484 = vpop.permute.xlu0 %483
          %485 = vrot.lane.b32.xlu0 %v259, 114
          %v486 = vpop.permute.xlu0 %485
          %487 = vrot.lane.b32.xlu0 %v260, 114
          %v488 = vpop.permute.xlu0 %487
          %489 = vrot.lane.b32.xlu0 %v261, 114
          %v490 = vpop.permute.xlu0 %489
          %491 = vrot.lane.b32.xlu0 %v262, 114
          %v492 = vpop.permute.xlu0 %491
          %493 = vrot.lane.b32.xlu0 %v263, 114
          %v494 = vpop.permute.xlu0 %493
          %vm503 = vcmask 64568
          %504 = vst.msk [vmem:[#allocation13] sm:$0xff] %vm503, %v480
          %505 = vst.msk [vmem:[#allocation13 + $0x8] sm:$0xff] %vm503, %v482
          %506 = vst.msk [vmem:[#allocation13 + $0x10] sm:$0xff] %vm503, %v484
          %507 = vst.msk [vmem:[#allocation13 + $0x18] sm:$0xff] %vm503, %v486
          %508 = vst.msk [vmem:[#allocation13 + $0x20] sm:$0xff] %vm503, %v488
          %509 = vst.msk [vmem:[#allocation13 + $0x28] sm:$0xff] %vm503, %v490
          %510 = vst.msk [vmem:[#allocation13 + $0x30] sm:$0xff] %vm503, %v492
          %511 = vst.msk [vmem:[#allocation13 + $0x38] sm:$0xff] %vm503, %v494
          %512 = vrot.lane.b32.xlu0 %v256, 112
          %v513 = vpop.permute.xlu0 %512
          %514 = vrot.lane.b32.xlu0 %v257, 112
          %v515 = vpop.permute.xlu0 %514
          %516 = vrot.lane.b32.xlu0 %v258, 112
          %v517 = vpop.permute.xlu0 %516
          %518 = vrot.lane.b32.xlu0 %v259, 112
          %v519 = vpop.permute.xlu0 %518
          %520 = vrot.lane.b32.xlu0 %v260, 112
          %v521 = vpop.permute.xlu0 %520
          %522 = vrot.lane.b32.xlu0 %v261, 112
          %v523 = vpop.permute.xlu0 %522
          %524 = vrot.lane.b32.xlu0 %v262, 112
          %v525 = vpop.permute.xlu0 %524
          %526 = vrot.lane.b32.xlu0 %v263, 112
          %v527 = vpop.permute.xlu0 %526
          %vm536 = vcmask 72768
          %537 = vst.msk [vmem:[#allocation13] sm:$0xff] %vm536, %v513
          %538 = vst.msk [vmem:[#allocation13 + $0x8] sm:$0xff] %vm536, %v515
          %539 = vst.msk [vmem:[#allocation13 + $0x10] sm:$0xff] %vm536, %v517
          %540 = vst.msk [vmem:[#allocation13 + $0x18] sm:$0xff] %vm536, %v519
          %541 = vst.msk [vmem:[#allocation13 + $0x20] sm:$0xff] %vm536, %v521
          %542 = vst.msk [vmem:[#allocation13 + $0x28] sm:$0xff] %vm536, %v523
          %543 = vst.msk [vmem:[#allocation13 + $0x30] sm:$0xff] %vm536, %v525
          %544 = vst.msk [vmem:[#allocation13 + $0x38] sm:$0xff] %vm536, %v527
          %545 = vrot.lane.b32.xlu0 %v256, 110
          %v546 = vpop.permute.xlu0 %545
          %547 = vrot.lane.b32.xlu0 %v257, 110
          %v548 = vpop.permute.xlu0 %547
          %549 = vrot.lane.b32.xlu0 %v258, 110
          %v550 = vpop.permute.xlu0 %549
          %551 = vrot.lane.b32.xlu0 %v259, 110
          %v552 = vpop.permute.xlu0 %551
          %553 = vrot.lane.b32.xlu0 %v260, 110
          %v554 = vpop.permute.xlu0 %553
          %555 = vrot.lane.b32.xlu0 %v261, 110
          %v556 = vpop.permute.xlu0 %555
          %557 = vrot.lane.b32.xlu0 %v262, 110
          %v558 = vpop.permute.xlu0 %557
          %559 = vrot.lane.b32.xlu0 %v263, 110
          %v560 = vpop.permute.xlu0 %559
          %vm569 = vcmask 80968
          %570 = vst.msk [vmem:[#allocation13] sm:$0xff] %vm569, %v546
          %571 = vst.msk [vmem:[#allocation13 + $0x8] sm:$0xff] %vm569, %v548
          %572 = vst.msk [vmem:[#allocation13 + $0x10] sm:$0xff] %vm569, %v550
          %573 = vst.msk [vmem:[#allocation13 + $0x18] sm:$0xff] %vm569, %v552
          %574 = vst.msk [vmem:[#allocation13 + $0x20] sm:$0xff] %vm569, %v554
          %575 = vst.msk [vmem:[#allocation13 + $0x28] sm:$0xff] %vm569, %v556
          %576 = vst.msk [vmem:[#allocation13 + $0x30] sm:$0xff] %vm569, %v558
          %577 = vst.msk [vmem:[#allocation13 + $0x38] sm:$0xff] %vm569, %v560
          %578 = vrot.lane.b32.xlu0 %v256, 108
          %v579 = vpop.permute.xlu0 %578
          %580 = vrot.lane.b32.xlu0 %v257, 108
          %v581 = vpop.permute.xlu0 %580
          %582 = vrot.lane.b32.xlu0 %v258, 108
          %v583 = vpop.permute.xlu0 %582
          %584 = vrot.lane.b32.xlu0 %v259, 108
          %v585 = vpop.permute.xlu0 %584
          %586 = vrot.lane.b32.xlu0 %v260, 108
          %v587 = vpop.permute.xlu0 %586
          %588 = vrot.lane.b32.xlu0 %v261, 108
          %v589 = vpop.permute.xlu0 %588
          %590 = vrot.lane.b32.xlu0 %v262, 108
          %v591 = vpop.permute.xlu0 %590
          %592 = vrot.lane.b32.xlu0 %v263, 108
          %v593 = vpop.permute.xlu0 %592
          %vm602 = vcmask 89168
          %603 = vst.msk [vmem:[#allocation13] sm:$0xff] %vm602, %v579
          %604 = vst.msk [vmem:[#allocation13 + $0x8] sm:$0xff] %vm602, %v581
          %605 = vst.msk [vmem:[#allocation13 + $0x10] sm:$0xff] %vm602, %v583
          %606 = vst.msk [vmem:[#allocation13 + $0x18] sm:$0xff] %vm602, %v585
          %607 = vst.msk [vmem:[#allocation13 + $0x20] sm:$0xff] %vm602, %v587
          %608 = vst.msk [vmem:[#allocation13 + $0x28] sm:$0xff] %vm602, %v589
          %609 = vst.msk [vmem:[#allocation13 + $0x30] sm:$0xff] %vm602, %v591
          %610 = vst.msk [vmem:[#allocation13 + $0x38] sm:$0xff] %vm602, %v593
          %611 = vrot.lane.b32.xlu0 %v256, 106
          %v612 = vpop.permute.xlu0 %611
          %613 = vrot.lane.b32.xlu0 %v257, 106
          %v614 = vpop.permute.xlu0 %613
          %615 = vrot.lane.b32.xlu0 %v258, 106
          %v616 = vpop.permute.xlu0 %615
          %617 = vrot.lane.b32.xlu0 %v259, 106
          %v618 = vpop.permute.xlu0 %617
          %619 = vrot.lane.b32.xlu0 %v260, 106
          %v620 = vpop.permute.xlu0 %619
          %621 = vrot.lane.b32.xlu0 %v261, 106
          %v622 = vpop.permute.xlu0 %621
          %623 = vrot.lane.b32.xlu0 %v262, 106
          %v624 = vpop.permute.xlu0 %623
          %625 = vrot.lane.b32.xlu0 %v263, 106
          %v626 = vpop.permute.xlu0 %625
          %vm635 = vcmask 97368
          %636 = vst.msk [vmem:[#allocation13] sm:$0xff] %vm635, %v612
          %637 = vst.msk [vmem:[#allocation13 + $0x8] sm:$0xff] %vm635, %v614
          %638 = vst.msk [vmem:[#allocation13 + $0x10] sm:$0xff] %vm635, %v616
          %639 = vst.msk [vmem:[#allocation13 + $0x18] sm:$0xff] %vm635, %v618
          %640 = vst.msk [vmem:[#allocation13 + $0x20] sm:$0xff] %vm635, %v620
          %641 = vst.msk [vmem:[#allocation13 + $0x28] sm:$0xff] %vm635, %v622
          %642 = vst.msk [vmem:[#allocation13 + $0x30] sm:$0xff] %vm635, %v624
          %643 = vst.msk [vmem:[#allocation13 + $0x38] sm:$0xff] %vm635, %v626
          %644 = vrot.lane.b32.xlu0 %v256, 104
          %v645 = vpop.permute.xlu0 %644
          %646 = vrot.lane.b32.xlu0 %v257, 104
          %v647 = vpop.permute.xlu0 %646
          %648 = vrot.lane.b32.xlu0 %v258, 104
          %v649 = vpop.permute.xlu0 %648
          %650 = vrot.lane.b32.xlu0 %v259, 104
          %v651 = vpop.permute.xlu0 %650
          %652 = vrot.lane.b32.xlu0 %v260, 104
          %v653 = vpop.permute.xlu0 %652
          %654 = vrot.lane.b32.xlu0 %v261, 104
          %v655 = vpop.permute.xlu0 %654
          %656 = vrot.lane.b32.xlu0 %v262, 104
          %v657 = vpop.permute.xlu0 %656
          %658 = vrot.lane.b32.xlu0 %v263, 104
          %v659 = vpop.permute.xlu0 %658
          %vm668 = vcmask 105568
          %669 = vst.msk [vmem:[#allocation13] sm:$0xff] %vm668, %v645
          %670 = vst.msk [vmem:[#allocation13 + $0x8] sm:$0xff] %vm668, %v647
          %671 = vst.msk [vmem:[#allocation13 + $0x10] sm:$0xff] %vm668, %v649
          %672 = vst.msk [vmem:[#allocation13 + $0x18] sm:$0xff] %vm668, %v651
          %673 = vst.msk [vmem:[#allocation13 + $0x20] sm:$0xff] %vm668, %v653
          %674 = vst.msk [vmem:[#allocation13 + $0x28] sm:$0xff] %vm668, %v655
          %675 = vst.msk [vmem:[#allocation13 + $0x30] sm:$0xff] %vm668, %v657
          %676 = vst.msk [vmem:[#allocation13 + $0x38] sm:$0xff] %vm668, %v659
          %677 = vrot.lane.b32.xlu0 %v256, 102
          %v678 = vpop.permute.xlu0 %677
          %679 = vrot.lane.b32.xlu0 %v257, 102
          %v680 = vpop.permute.xlu0 %679
          %681 = vrot.lane.b32.xlu0 %v258, 102
          %v682 = vpop.permute.xlu0 %681
          %683 = vrot.lane.b32.xlu0 %v259, 102
          %v684 = vpop.permute.xlu0 %683
          %685 = vrot.lane.b32.xlu0 %v260, 102
          %v686 = vpop.permute.xlu0 %685
          %687 = vrot.lane.b32.xlu0 %v261, 102
          %v688 = vpop.permute.xlu0 %687
          %689 = vrot.lane.b32.xlu0 %v262, 102
          %v690 = vpop.permute.xlu0 %689
          %691 = vrot.lane.b32.xlu0 %v263, 102
          %v692 = vpop.permute.xlu0 %691
          %vm701 = vcmask 113768
          %702 = vst.msk [vmem:[#allocation13] sm:$0xff] %vm701, %v678
          %703 = vst.msk [vmem:[#allocation13 + $0x8] sm:$0xff] %vm701, %v680
          %704 = vst.msk [vmem:[#allocation13 + $0x10] sm:$0xff] %vm701, %v682
          %705 = vst.msk [vmem:[#allocation13 + $0x18] sm:$0xff] %vm701, %v684
          %706 = vst.msk [vmem:[#allocation13 + $0x20] sm:$0xff] %vm701, %v686
          %707 = vst.msk [vmem:[#allocation13 + $0x28] sm:$0xff] %vm701, %v688
          %708 = vst.msk [vmem:[#allocation13 + $0x30] sm:$0xff] %vm701, %v690
          %709 = vst.msk [vmem:[#allocation13 + $0x38] sm:$0xff] %vm701, %v692
          %710 = vrot.lane.b32.xlu0 %v256, 100
          %v711 = vpop.permute.xlu0 %710
          %712 = vrot.lane.b32.xlu0 %v257, 100
          %v713 = vpop.permute.xlu0 %712
          %714 = vrot.lane.b32.xlu0 %v258, 100
          %v715 = vpop.permute.xlu0 %714
          %716 = vrot.lane.b32.xlu0 %v259, 100
          %v717 = vpop.permute.xlu0 %716
          %718 = vrot.lane.b32.xlu0 %v260, 100
          %v719 = vpop.permute.xlu0 %718
          %720 = vrot.lane.b32.xlu0 %v261, 100
          %v721 = vpop.permute.xlu0 %720
          %722 = vrot.lane.b32.xlu0 %v262, 100
          %v723 = vpop.permute.xlu0 %722
          %724 = vrot.lane.b32.xlu0 %v263, 100
          %v725 = vpop.permute.xlu0 %724
          %vm734 = vcmask 121968
          %735 = vst.msk [vmem:[#allocation13] sm:$0xff] %vm734, %v711
          %736 = vst.msk [vmem:[#allocation13 + $0x8] sm:$0xff] %vm734, %v713
          %737 = vst.msk [vmem:[#allocation13 + $0x10] sm:$0xff] %vm734, %v715
          %738 = vst.msk [vmem:[#allocation13 + $0x18] sm:$0xff] %vm734, %v717
          %739 = vst.msk [vmem:[#allocation13 + $0x20] sm:$0xff] %vm734, %v719
          %740 = vst.msk [vmem:[#allocation13 + $0x28] sm:$0xff] %vm734, %v721
          %741 = vst.msk [vmem:[#allocation13 + $0x30] sm:$0xff] %vm734, %v723
          %742 = vst.msk [vmem:[#allocation13 + $0x38] sm:$0xff] %vm734, %v725
          %743 = vrot.lane.b32.xlu0 %v256, 98
          %v744 = vpop.permute.xlu0 %743
          %745 = vrot.lane.b32.xlu0 %v257, 98
          %v746 = vpop.permute.xlu0 %745
          %747 = vrot.lane.b32.xlu0 %v258, 98
          %v748 = vpop.permute.xlu0 %747
          %749 = vrot.lane.b32.xlu0 %v259, 98
          %v750 = vpop.permute.xlu0 %749
          %751 = vrot.lane.b32.xlu0 %v260, 98
          %v752 = vpop.permute.xlu0 %751
          %753 = vrot.lane.b32.xlu0 %v261, 98
          %v754 = vpop.permute.xlu0 %753
          %755 = vrot.lane.b32.xlu0 %v262, 98
          %v756 = vpop.permute.xlu0 %755
          %757 = vrot.lane.b32.xlu0 %v263, 98
          %v758 = vpop.permute.xlu0 %757
          %vm767 = vcmask 130168
          %768 = vst.msk [vmem:[#allocation13] sm:$0xff] %vm767, %v744
          %769 = vst.msk [vmem:[#allocation13 + $0x8] sm:$0xff] %vm767, %v746
          %770 = vst.msk [vmem:[#allocation13 + $0x10] sm:$0xff] %vm767, %v748
          %771 = vst.msk [vmem:[#allocation13 + $0x18] sm:$0xff] %vm767, %v750
          %772 = vst.msk [vmem:[#allocation13 + $0x20] sm:$0xff] %vm767, %v752
          %773 = vst.msk [vmem:[#allocation13 + $0x28] sm:$0xff] %vm767, %v754
          %774 = vst.msk [vmem:[#allocation13 + $0x30] sm:$0xff] %vm767, %v756
          %775 = vst.msk [vmem:[#allocation13 + $0x38] sm:$0xff] %vm767, %v758
          %776 = vrot.lane.b32.xlu0 %v256, 96
          %v777 = vpop.permute.xlu0 %776
          %778 = vrot.lane.b32.xlu0 %v257, 96
          %v779 = vpop.permute.xlu0 %778
          %780 = vrot.lane.b32.xlu0 %v258, 96
          %v781 = vpop.permute.xlu0 %780
          %782 = vrot.lane.b32.xlu0 %v259, 96
          %v783 = vpop.permute.xlu0 %782
          %784 = vrot.lane.b32.xlu0 %v260, 96
          %v785 = vpop.permute.xlu0 %784
          %786 = vrot.lane.b32.xlu0 %v261, 96
          %v787 = vpop.permute.xlu0 %786
          %788 = vrot.lane.b32.xlu0 %v262, 96
          %v789 = vpop.permute.xlu0 %788
          %790 = vrot.lane.b32.xlu0 %v263, 96
          %v791 = vpop.permute.xlu0 %790
          %vm800 = vcmask 138368
          %801 = vst.msk [vmem:[#allocation13] sm:$0xff] %vm800, %v777
          %802 = vst.msk [vmem:[#allocation13 + $0x8] sm:$0xff] %vm800, %v779
          %803 = vst.msk [vmem:[#allocation13 + $0x10] sm:$0xff] %vm800, %v781
          %804 = vst.msk [vmem:[#allocation13 + $0x18] sm:$0xff] %vm800, %v783
          %805 = vst.msk [vmem:[#allocation13 + $0x20] sm:$0xff] %vm800, %v785
          %806 = vst.msk [vmem:[#allocation13 + $0x28] sm:$0xff] %vm800, %v787
          %807 = vst.msk [vmem:[#allocation13 + $0x30] sm:$0xff] %vm800, %v789
          %808 = vst.msk [vmem:[#allocation13 + $0x38] sm:$0xff] %vm800, %v791
          %809 = vrot.lane.b32.xlu0 %v256, 94
          %v810 = vpop.permute.xlu0 %809
          %811 = vrot.lane.b32.xlu0 %v257, 94
          %v812 = vpop.permute.xlu0 %811
          %813 = vrot.lane.b32.xlu0 %v258, 94
          %v814 = vpop.permute.xlu0 %813
          %815 = vrot.lane.b32.xlu0 %v259, 94
          %v816 = vpop.permute.xlu0 %815
          %817 = vrot.lane.b32.xlu0 %v260, 94
          %v818 = vpop.permute.xlu0 %817
          %819 = vrot.lane.b32.xlu0 %v261, 94
          %v820 = vpop.permute.xlu0 %819
          %821 = vrot.lane.b32.xlu0 %v262, 94
          %v822 = vpop.permute.xlu0 %821
          %823 = vrot.lane.b32.xlu0 %v263, 94
          %v824 = vpop.permute.xlu0 %823
          %vm833 = vcmask 146568
          %834 = vst.msk [vmem:[#allocation13] sm:$0xff] %vm833, %v810
          %835 = vst.msk [vmem:[#allocation13 + $0x8] sm:$0xff] %vm833, %v812
          %836 = vst.msk [vmem:[#allocation13 + $0x10] sm:$0xff] %vm833, %v814
          %837 = vst.msk [vmem:[#allocation13 + $0x18] sm:$0xff] %vm833, %v816
          %838 = vst.msk [vmem:[#allocation13 + $0x20] sm:$0xff] %vm833, %v818
          %839 = vst.msk [vmem:[#allocation13 + $0x28] sm:$0xff] %vm833, %v820
          %840 = vst.msk [vmem:[#allocation13 + $0x30] sm:$0xff] %vm833, %v822
          %841 = vst.msk [vmem:[#allocation13 + $0x38] sm:$0xff] %vm833, %v824
          %842 = vrot.lane.b32.xlu0 %v256, 92
          %v843 = vpop.permute.xlu0 %842
          %844 = vrot.lane.b32.xlu0 %v257, 92
          %v845 = vpop.permute.xlu0 %844
          %846 = vrot.lane.b32.xlu0 %v258, 92
          %v847 = vpop.permute.xlu0 %846
          %848 = vrot.lane.b32.xlu0 %v259, 92
          %v849 = vpop.permute.xlu0 %848
          %850 = vrot.lane.b32.xlu0 %v260, 92
          %v851 = vpop.permute.xlu0 %850
          %852 = vrot.lane.b32.xlu0 %v261, 92
          %v853 = vpop.permute.xlu0 %852
          %854 = vrot.lane.b32.xlu0 %v262, 92
          %v855 = vpop.permute.xlu0 %854
          %856 = vrot.lane.b32.xlu0 %v263, 92
          %v857 = vpop.permute.xlu0 %856
          %vm866 = vcmask 154768
          %867 = vst.msk [vmem:[#allocation13] sm:$0xff] %vm866, %v843
          %868 = vst.msk [vmem:[#allocation13 + $0x8] sm:$0xff] %vm866, %v845
          %869 = vst.msk [vmem:[#allocation13 + $0x10] sm:$0xff] %vm866, %v847
          %870 = vst.msk [vmem:[#allocation13 + $0x18] sm:$0xff] %vm866, %v849
          %871 = vst.msk [vmem:[#allocation13 + $0x20] sm:$0xff] %vm866, %v851
          %872 = vst.msk [vmem:[#allocation13 + $0x28] sm:$0xff] %vm866, %v853
          %873 = vst.msk [vmem:[#allocation13 + $0x30] sm:$0xff] %vm866, %v855
          %874 = vst.msk [vmem:[#allocation13 + $0x38] sm:$0xff] %vm866, %v857
          %875 = vrot.lane.b32.xlu0 %v256, 90
          %v876 = vpop.permute.xlu0 %875
          %877 = vrot.lane.b32.xlu0 %v257, 90
          %v878 = vpop.permute.xlu0 %877
          %879 = vrot.lane.b32.xlu0 %v258, 90
          %v880 = vpop.permute.xlu0 %879
          %881 = vrot.lane.b32.xlu0 %v259, 90
          %v882 = vpop.permute.xlu0 %881
          %883 = vrot.lane.b32.xlu0 %v260, 90
          %v884 = vpop.permute.xlu0 %883
          %885 = vrot.lane.b32.xlu0 %v261, 90
          %v886 = vpop.permute.xlu0 %885
          %887 = vrot.lane.b32.xlu0 %v262, 90
          %v888 = vpop.permute.xlu0 %887
          %889 = vrot.lane.b32.xlu0 %v263, 90
          %v890 = vpop.permute.xlu0 %889
          %vm899 = vcmask 162968
          %900 = vst.msk [vmem:[#allocation13] sm:$0xff] %vm899, %v876
          %901 = vst.msk [vmem:[#allocation13 + $0x8] sm:$0xff] %vm899, %v878
          %902 = vst.msk [vmem:[#allocation13 + $0x10] sm:$0xff] %vm899, %v880
          %903 = vst.msk [vmem:[#allocation13 + $0x18] sm:$0xff] %vm899, %v882
          %904 = vst.msk [vmem:[#allocation13 + $0x20] sm:$0xff] %vm899, %v884
          %905 = vst.msk [vmem:[#allocation13 + $0x28] sm:$0xff] %vm899, %v886
          %906 = vst.msk [vmem:[#allocation13 + $0x30] sm:$0xff] %vm899, %v888
          %907 = vst.msk [vmem:[#allocation13 + $0x38] sm:$0xff] %vm899, %v890
          %908 = vrot.lane.b32.xlu0 %v256, 88
          %v909 = vpop.permute.xlu0 %908
          %910 = vrot.lane.b32.xlu0 %v257, 88
          %v911 = vpop.permute.xlu0 %910
          %912 = vrot.lane.b32.xlu0 %v258, 88
          %v913 = vpop.permute.xlu0 %912
          %914 = vrot.lane.b32.xlu0 %v259, 88
          %v915 = vpop.permute.xlu0 %914
          %916 = vrot.lane.b32.xlu0 %v260, 88
          %v917 = vpop.permute.xlu0 %916
          %918 = vrot.lane.b32.xlu0 %v261, 88
          %v919 = vpop.permute.xlu0 %918
          %920 = vrot.lane.b32.xlu0 %v262, 88
          %v921 = vpop.permute.xlu0 %920
          %922 = vrot.lane.b32.xlu0 %v263, 88
          %v923 = vpop.permute.xlu0 %922
          %vm932 = vcmask 171168
          %933 = vst.msk [vmem:[#allocation13] sm:$0xff] %vm932, %v909
          %934 = vst.msk [vmem:[#allocation13 + $0x8] sm:$0xff] %vm932, %v911
          %935 = vst.msk [vmem:[#allocation13 + $0x10] sm:$0xff] %vm932, %v913
          %936 = vst.msk [vmem:[#allocation13 + $0x18] sm:$0xff] %vm932, %v915
          %937 = vst.msk [vmem:[#allocation13 + $0x20] sm:$0xff] %vm932, %v917
          %938 = vst.msk [vmem:[#allocation13 + $0x28] sm:$0xff] %vm932, %v919
          %939 = vst.msk [vmem:[#allocation13 + $0x30] sm:$0xff] %vm932, %v921
          %940 = vst.msk [vmem:[#allocation13 + $0x38] sm:$0xff] %vm932, %v923
          %v941 = vld [vmem:[#allocation13] sm:$0xff]
          %v942 = vld [vmem:[#allocation13 + $0x8] sm:$0xff]
          %v943 = vld [vmem:[#allocation13 + $0x10] sm:$0xff]
          %v944 = vld [vmem:[#allocation13 + $0x18] sm:$0xff]
          %v945 = vld [vmem:[#allocation13 + $0x20] sm:$0xff]
          %v946 = vld [vmem:[#allocation13 + $0x28] sm:$0xff]
          %v947 = vld [vmem:[#allocation13 + $0x30] sm:$0xff]
          %v948 = vld [vmem:[#allocation13 + $0x38] sm:$0xff]
          %vm957 = vcmask 1046528
          %v958 = vrot.slane %v941, 1
          %v959 = vrot.slane %v942, 1
          %v960 = vsel %vm957, %v958, %v959
          %v961 = vrot.slane %v943, 1
          %v962 = vsel %vm957, %v959, %v961
          %v963 = vrot.slane %v944, 1
          %v964 = vsel %vm957, %v961, %v963
          %v965 = vrot.slane %v945, 1
          %v966 = vsel %vm957, %v963, %v965
          %v967 = vrot.slane %v946, 1
          %v968 = vsel %vm957, %v965, %v967
          %v969 = vrot.slane %v947, 1
          %v970 = vsel %vm957, %v967, %v969
          %v971 = vrot.slane %v948, 1
          %v972 = vsel %vm957, %v969, %v971
          %v981 = vmax.f32 %v941, %v960
          %v982 = vmax.f32 %v942, %v962
          %v983 = vmax.f32 %v943, %v964
          %v984 = vmax.f32 %v944, %v966
          %v985 = vmax.f32 %v945, %v968
          %v986 = vmax.f32 %v946, %v970
          %v987 = vmax.f32 %v947, %v972
          %v988 = vmax.f32 %v948, %v971
          %vm989 = vcmask 1045504
          %v990 = vrot.slane %v941, 2
          %v991 = vrot.slane %v942, 2
          %v992 = vsel %vm989, %v990, %v991
          %v993 = vrot.slane %v943, 2
          %v994 = vsel %vm989, %v991, %v993
          %v995 = vrot.slane %v944, 2
          %v996 = vsel %vm989, %v993, %v995
          %v997 = vrot.slane %v945, 2
          %v998 = vsel %vm989, %v995, %v997
          %v999 = vrot.slane %v946, 2
          %v1000 = vsel %vm989, %v997, %v999
          %v1001 = vrot.slane %v947, 2
          %v1002 = vsel %vm989, %v999, %v1001
          %v1003 = vrot.slane %v948, 2
          %v1004 = vsel %vm989, %v1001, %v1003
          %v1013 = vmax.f32 %v981, %v992
          %v1014 = vmax.f32 %v982, %v994
          %v1015 = vmax.f32 %v983, %v996
          %v1016 = vmax.f32 %v984, %v998
          %v1017 = vmax.f32 %v985, %v1000
          %v1018 = vmax.f32 %v986, %v1002
          %v1019 = vmax.f32 %v987, %v1004
          %v1020 = vmax.f32 %v988, %v1003
          %vm1021 = vcmask 163840
          %1022 = vst.msk [vmem:[#allocation13] sm:$0x1] %vm1021, %v1013
          %vm1023 = vcmask 166915
          %1024 = vst.msk [vmem:[#allocation13 - $0x2] sm:$0x8] %vm1023, %v1013
          %vm1025 = vcmask 169990
          %1026 = vst.msk [vmem:[#allocation13 - $0x4] sm:$0x40] %vm1025, %v1013
          %vm1027 = vcmask 164865
          %1028 = vst.msk [vmem:[#allocation13 + $0x2] sm:$0x2] %vm1027, %v1014
          %vm1029 = vcmask 167940
          %1030 = vst.msk [vmem:[#allocation13] sm:$0x10] %vm1029, %v1014
          %vm1031 = vcmask 171015
          %1032 = vst.msk [vmem:[#allocation13 - $0x2] sm:$0x80] %vm1031, %v1014
          %vm1033 = vcmask 165890
          %1034 = vst.msk [vmem:[#allocation13 + $0x4] sm:$0x4] %vm1033, %v1015
          %vm1035 = vcmask 168965
          %1036 = vst.msk [vmem:[#allocation13 + $0x2] sm:$0x20] %vm1035, %v1015
          %1037 = vst.msk [vmem:[#allocation13 + $0x8] sm:$0x1] %vm1021, %v1016
          %1038 = vst.msk [vmem:[#allocation13 + $0x6] sm:$0x8] %vm1023, %v1016
          %1039 = vst.msk [vmem:[#allocation13 + $0x4] sm:$0x40] %vm1025, %v1016
          %1040 = vst.msk [vmem:[#allocation13 + $0xa] sm:$0x2] %vm1027, %v1017
          %1041 = vst.msk [vmem:[#allocation13 + $0x8] sm:$0x10] %vm1029, %v1017
          %1042 = vst.msk [vmem:[#allocation13 + $0x6] sm:$0x80] %vm1031, %v1017
          %1043 = vst.msk [vmem:[#allocation13 + $0xc] sm:$0x4] %vm1033, %v1018
          %1044 = vst.msk [vmem:[#allocation13 + $0xa] sm:$0x20] %vm1035, %v1018
          %1045 = vst.msk [vmem:[#allocation13 + $0x10] sm:$0x1] %vm1021, %v1019
          %1046 = vst.msk [vmem:[#allocation13 + $0xe] sm:$0x8] %vm1023, %v1019
          %1047 = vst.msk [vmem:[#allocation13 + $0xc] sm:$0x40] %vm1025, %v1019
          %1048 = vst.msk [vmem:[#allocation13 + $0x12] sm:$0x2] %vm1027, %v1020
          %1049 = vst.msk [vmem:[#allocation13 + $0x10] sm:$0x10] %vm1029, %v1020
          %v1050 = vld [vmem:[#allocation13] sm:$0xff]
          %v1051 = vld [vmem:[#allocation13 + $0x8] sm:$0xff]
          %v1052 = vld [vmem:[#allocation13 + $0x10] sm:$0x1f]
          %s1053 = smul.u32 %s138, 24
          %s1054 = scalar_lea.vmem [#allocation2], %s1053
          %vm1055 = vcmask 171008
          %1056 = vst.msk [vmem:[%s1054] sm:$0xff] %vm1055, %v1050
          %1057 = vst.msk [vmem:[%s1054 + $0x8] sm:$0xff] %vm1055, %v1051
          %vm1058 = vcmask 167936
          %1059 = vst.msk [vmem:[%s1054 + $0x10] sm:$0x1f] %vm1058, %v1052
        $region33: #{model_forward.1} parent=23 // loop_footer
          %s142 = sadd.s32 1, %s138
        $region34: #{model_forward.1} parent=23 // loop_footer_branch
          %137 = sbr.rel target = $region30
        $region35: #{model_forward.1} parent=23 // loop_exit
          _
        %vm1060 = vcmask 203776
        %1061 = vst.msk [vmem:[#allocation8] sm:$0xff] %vm1060, -inf
        %1062 = vst.msk [vmem:[#allocation8 + $0x8] sm:$0xff] %vm1060, -inf
        %1063 = vst.msk [vmem:[#allocation8 + $0x10] sm:$0xff] %vm1060, -inf
        %vm1064 = vcmask 196608
        %1065 = vst.msk [vmem:[#allocation8 + $0x18] sm:$0x1] %vm1064, -inf
        %1066 = vst.msk [vmem:[#allocation8 + $0x20] sm:$0xff] %vm1060, -inf
        %1067 = vst.msk [vmem:[#allocation8 + $0x28] sm:$0xff] %vm1060, -inf
        %1068 = vst.msk [vmem:[#allocation8 + $0x30] sm:$0xff] %vm1060, -inf
        %1069 = vst.msk [vmem:[#allocation8 + $0x38] sm:$0x1] %vm1064, -inf
        %1070 = vst.msk [vmem:[#allocation8 + $0x40] sm:$0xff] %vm1060, -inf
        %1071 = vst.msk [vmem:[#allocation8 + $0x48] sm:$0xff] %vm1060, -inf
        %1072 = vst.msk [vmem:[#allocation8 + $0x50] sm:$0xff] %vm1060, -inf
        %1073 = vst.msk [vmem:[#allocation8 + $0x58] sm:$0x1] %vm1064, -inf
        %1074 = vst.msk [vmem:[#allocation8 + $0x60] sm:$0xff] %vm1060, -inf
        %1075 = vst.msk [vmem:[#allocation8 + $0x68] sm:$0xff] %vm1060, -inf
        %1076 = vst.msk [vmem:[#allocation8 + $0x70] sm:$0xff] %vm1060, -inf
        %1077 = vst.msk [vmem:[#allocation8 + $0x78] sm:$0x1] %vm1064, -inf
        %1078 = vst.msk [vmem:[#allocation8 + $0x80] sm:$0xff] %vm1060, -inf
        %1079 = vst.msk [vmem:[#allocation8 + $0x88] sm:$0xff] %vm1060, -inf
        %1080 = vst.msk [vmem:[#allocation8 + $0x90] sm:$0xff] %vm1060, -inf
        %1081 = vst.msk [vmem:[#allocation8 + $0x98] sm:$0x1] %vm1064, -inf
        %1082 = vst.msk [vmem:[#allocation8 + $0xa0] sm:$0xff] %vm1060, -inf
        %1083 = vst.msk [vmem:[#allocation8 + $0xa8] sm:$0xff] %vm1060, -inf
        %1084 = vst.msk [vmem:[#allocation8 + $0xb0] sm:$0xff] %vm1060, -inf
        %1085 = vst.msk [vmem:[#allocation8 + $0xb8] sm:$0x1] %vm1064, -inf
        %1086 = vst.msk [vmem:[#allocation8 + $0xc0] sm:$0xff] %vm1060, -inf
        %1087 = vst.msk [vmem:[#allocation8 + $0xc8] sm:$0xff] %vm1060, -inf
        %1088 = vst.msk [vmem:[#allocation8 + $0xd0] sm:$0xff] %vm1060, -inf
        %1089 = vst.msk [vmem:[#allocation8 + $0xd8] sm:$0x1] %vm1064, -inf
        %1090 = vst.msk [vmem:[#allocation8 + $0xe0] sm:$0xff] %vm1060, -inf
        %1091 = vst.msk [vmem:[#allocation8 + $0xe8] sm:$0xff] %vm1060, -inf
        %1092 = vst.msk [vmem:[#allocation8 + $0xf0] sm:$0xff] %vm1060, -inf
        %1093 = vst.msk [vmem:[#allocation8 + $0xf8] sm:$0x1] %vm1064, -inf
        %1094 = vst.msk [vmem:[#allocation8 + $0x100] sm:$0xff] %vm1060, -inf
        %1095 = vst.msk [vmem:[#allocation8 + $0x108] sm:$0xff] %vm1060, -inf
        %1096 = vst.msk [vmem:[#allocation8 + $0x110] sm:$0xff] %vm1060, -inf
        %1097 = vst.msk [vmem:[#allocation8 + $0x118] sm:$0x1] %vm1064, -inf
        %1098 = vst.msk [vmem:[#allocation8 + $0x120] sm:$0xff] %vm1060, -inf
        %1099 = vst.msk [vmem:[#allocation8 + $0x128] sm:$0xff] %vm1060, -inf
        %1100 = vst.msk [vmem:[#allocation8 + $0x130] sm:$0xff] %vm1060, -inf
        %1101 = vst.msk [vmem:[#allocation8 + $0x138] sm:$0x1] %vm1064, -inf
        %1102 = vst.msk [vmem:[#allocation8 + $0x140] sm:$0xff] %vm1060, -inf
        %1103 = vst.msk [vmem:[#allocation8 + $0x148] sm:$0xff] %vm1060, -inf
        %1104 = vst.msk [vmem:[#allocation8 + $0x150] sm:$0xff] %vm1060, -inf
        %1105 = vst.msk [vmem:[#allocation8 + $0x158] sm:$0x1] %vm1064, -inf
        %1106 = vst.msk [vmem:[#allocation8 + $0x160] sm:$0xff] %vm1060, -inf
        %1107 = vst.msk [vmem:[#allocation8 + $0x168] sm:$0xff] %vm1060, -inf
        %1108 = vst.msk [vmem:[#allocation8 + $0x170] sm:$0xff] %vm1060, -inf
        %1109 = vst.msk [vmem:[#allocation8 + $0x178] sm:$0x1] %vm1064, -inf
        %1110 = vst.msk [vmem:[#allocation8 + $0x180] sm:$0xff] %vm1060, -inf
        %1111 = vst.msk [vmem:[#allocation8 + $0x188] sm:$0xff] %vm1060, -inf
        %1112 = vst.msk [vmem:[#allocation8 + $0x190] sm:$0xff] %vm1060, -inf
        %1113 = vst.msk [vmem:[#allocation8 + $0x198] sm:$0x1] %vm1064, -inf
        %1114 = vst.msk [vmem:[#allocation8 + $0x1a0] sm:$0xff] %vm1060, -inf
        %1115 = vst.msk [vmem:[#allocation8 + $0x1a8] sm:$0xff] %vm1060, -inf
        %1116 = vst.msk [vmem:[#allocation8 + $0x1b0] sm:$0xff] %vm1060, -inf
        %1117 = vst.msk [vmem:[#allocation8 + $0x1b8] sm:$0x1] %vm1064, -inf
        %1118 = vst.msk [vmem:[#allocation8 + $0x1c0] sm:$0xff] %vm1060, -inf
        %1119 = vst.msk [vmem:[#allocation8 + $0x1c8] sm:$0xff] %vm1060, -inf
        %1120 = vst.msk [vmem:[#allocation8 + $0x1d0] sm:$0xff] %vm1060, -inf
        %1121 = vst.msk [vmem:[#allocation8 + $0x1d8] sm:$0x1] %vm1064, -inf
        %1122 = vst.msk [vmem:[#allocation8 + $0x1e0] sm:$0xff] %vm1060, -inf
        %1123 = vst.msk [vmem:[#allocation8 + $0x1e8] sm:$0xff] %vm1060, -inf
        %1124 = vst.msk [vmem:[#allocation8 + $0x1f0] sm:$0xff] %vm1060, -inf
        %1125 = vst.msk [vmem:[#allocation8 + $0x1f8] sm:$0x1] %vm1064, -inf
        %1126 = vst.msk [vmem:[#allocation8 + $0x200] sm:$0xff] %vm1060, -inf
        %1127 = vst.msk [vmem:[#allocation8 + $0x208] sm:$0xff] %vm1060, -inf
        %1128 = vst.msk [vmem:[#allocation8 + $0x210] sm:$0xff] %vm1060, -inf
        %1129 = vst.msk [vmem:[#allocation8 + $0x218] sm:$0x1] %vm1064, -inf
        %1130 = vst.msk [vmem:[#allocation8 + $0x220] sm:$0xff] %vm1060, -inf
        %1131 = vst.msk [vmem:[#allocation8 + $0x228] sm:$0xff] %vm1060, -inf
        %1132 = vst.msk [vmem:[#allocation8 + $0x230] sm:$0xff] %vm1060, -inf
        %1133 = vst.msk [vmem:[#allocation8 + $0x238] sm:$0x1] %vm1064, -inf
        %1134 = vst.msk [vmem:[#allocation8 + $0x240] sm:$0xff] %vm1060, -inf
        %1135 = vst.msk [vmem:[#allocation8 + $0x248] sm:$0xff] %vm1060, -inf
        %1136 = vst.msk [vmem:[#allocation8 + $0x250] sm:$0xff] %vm1060, -inf
        %1137 = vst.msk [vmem:[#allocation8 + $0x258] sm:$0x1] %vm1064, -inf
        %1138 = vst.msk [vmem:[#allocation8 + $0x260] sm:$0xff] %vm1060, -inf
        %1139 = vst.msk [vmem:[#allocation8 + $0x268] sm:$0xff] %vm1060, -inf
        %1140 = vst.msk [vmem:[#allocation8 + $0x270] sm:$0xff] %vm1060, -inf
        %1141 = vst.msk [vmem:[#allocation8 + $0x278] sm:$0x1] %vm1064, -inf
        %1142 = vst.msk [vmem:[#allocation8 + $0x280] sm:$0xff] %vm1060, -inf
        %1143 = vst.msk [vmem:[#allocation8 + $0x288] sm:$0xff] %vm1060, -inf
        %1144 = vst.msk [vmem:[#allocation8 + $0x290] sm:$0xff] %vm1060, -inf
        %1145 = vst.msk [vmem:[#allocation8 + $0x298] sm:$0x1] %vm1064, -inf
        %1146 = vst.msk [vmem:[#allocation8 + $0x2a0] sm:$0xff] %vm1060, -inf
        %1147 = vst.msk [vmem:[#allocation8 + $0x2a8] sm:$0xff] %vm1060, -inf
        %1148 = vst.msk [vmem:[#allocation8 + $0x2b0] sm:$0xff] %vm1060, -inf
        %1149 = vst.msk [vmem:[#allocation8 + $0x2b8] sm:$0x1] %vm1064, -inf
        %1150 = vst.msk [vmem:[#allocation8 + $0x2c0] sm:$0xff] %vm1060, -inf
        %1151 = vst.msk [vmem:[#allocation8 + $0x2c8] sm:$0xff] %vm1060, -inf
        %1152 = vst.msk [vmem:[#allocation8 + $0x2d0] sm:$0xff] %vm1060, -inf
        %1153 = vst.msk [vmem:[#allocation8 + $0x2d8] sm:$0x1] %vm1064, -inf
        %1154 = vst.msk [vmem:[#allocation8 + $0x2e0] sm:$0xff] %vm1060, -inf
        %1155 = vst.msk [vmem:[#allocation8 + $0x2e8] sm:$0xff] %vm1060, -inf
        %1156 = vst.msk [vmem:[#allocation8 + $0x2f0] sm:$0xff] %vm1060, -inf
        %1157 = vst.msk [vmem:[#allocation8 + $0x2f8] sm:$0x1] %vm1064, -inf
        %1158 = vst.msk [vmem:[#allocation8 + $0x300] sm:$0xff] %vm1060, -inf
        %1159 = vst.msk [vmem:[#allocation8 + $0x308] sm:$0xff] %vm1060, -inf
        %1160 = vst.msk [vmem:[#allocation8 + $0x310] sm:$0xff] %vm1060, -inf
        %1161 = vst.msk [vmem:[#allocation8 + $0x318] sm:$0x1] %vm1064, -inf
        %v1162 = vld [vmem:[#allocation2] sm:$0xff]
        %v1163 = vld [vmem:[#allocation2 + $0x8] sm:$0xff]
        %v1164 = vld [vmem:[#allocation2 + $0x10] sm:$0x1f]
        %v1165 = vld [vmem:[#allocation2 + $0x18] sm:$0xff]
        %v1166 = vld [vmem:[#allocation2 + $0x20] sm:$0xff]
        %v1167 = vld [vmem:[#allocation2 + $0x28] sm:$0x1f]
        %v1168 = vld [vmem:[#allocation2 + $0x30] sm:$0xff]
        %v1169 = vld [vmem:[#allocation2 + $0x38] sm:$0xff]
        %v1170 = vld [vmem:[#allocation2 + $0x40] sm:$0x1f]
        %v1171 = vld [vmem:[#allocation2 + $0x48] sm:$0xff]
        %v1172 = vld [vmem:[#allocation2 + $0x50] sm:$0xff]
        %v1173 = vld [vmem:[#allocation2 + $0x58] sm:$0x1f]
        %v1174 = vld [vmem:[#allocation2 + $0x60] sm:$0xff]
        %v1175 = vld [vmem:[#allocation2 + $0x68] sm:$0xff]
        %v1176 = vld [vmem:[#allocation2 + $0x70] sm:$0x1f]
        %v1177 = vld [vmem:[#allocation2 + $0x78] sm:$0xff]
        %v1178 = vld [vmem:[#allocation2 + $0x80] sm:$0xff]
        %v1179 = vld [vmem:[#allocation2 + $0x88] sm:$0x1f]
        %v1180 = vld [vmem:[#allocation2 + $0x90] sm:$0xff]
        %v1181 = vld [vmem:[#allocation2 + $0x98] sm:$0xff]
        %v1182 = vld [vmem:[#allocation2 + $0xa0] sm:$0x1f]
        %v1183 = vld [vmem:[#allocation2 + $0xa8] sm:$0xff]
        %v1184 = vld [vmem:[#allocation2 + $0xb0] sm:$0xff]
        %v1185 = vld [vmem:[#allocation2 + $0xb8] sm:$0x1f]
        %v1186 = vld [vmem:[#allocation2 + $0xc0] sm:$0xff]
        %v1187 = vld [vmem:[#allocation2 + $0xc8] sm:$0xff]
        %v1188 = vld [vmem:[#allocation2 + $0xd0] sm:$0x1f]
        %v1189 = vld [vmem:[#allocation2 + $0xd8] sm:$0xff]
        %v1190 = vld [vmem:[#allocation2 + $0xe0] sm:$0xff]
        %v1191 = vld [vmem:[#allocation2 + $0xe8] sm:$0x1f]
        %v1192 = vld [vmem:[#allocation2 + $0xf0] sm:$0xff]
        %v1193 = vld [vmem:[#allocation2 + $0xf8] sm:$0xff]
        %v1194 = vld [vmem:[#allocation2 + $0x100] sm:$0x1f]
        %v1195 = vld [vmem:[#allocation2 + $0x108] sm:$0xff]
        %v1196 = vld [vmem:[#allocation2 + $0x110] sm:$0xff]
        %v1197 = vld [vmem:[#allocation2 + $0x118] sm:$0x1f]
        %v1198 = vld [vmem:[#allocation2 + $0x120] sm:$0xff]
        %v1199 = vld [vmem:[#allocation2 + $0x128] sm:$0xff]
        %v1200 = vld [vmem:[#allocation2 + $0x130] sm:$0x1f]
        %v1201 = vld [vmem:[#allocation2 + $0x138] sm:$0xff]
        %v1202 = vld [vmem:[#allocation2 + $0x140] sm:$0xff]
        %v1203 = vld [vmem:[#allocation2 + $0x148] sm:$0x1f]
        %v1204 = vld [vmem:[#allocation2 + $0x150] sm:$0xff]
        %v1205 = vld [vmem:[#allocation2 + $0x158] sm:$0xff]
        %v1206 = vld [vmem:[#allocation2 + $0x160] sm:$0x1f]
        %v1207 = vld [vmem:[#allocation2 + $0x168] sm:$0xff]
        %v1208 = vld [vmem:[#allocation2 + $0x170] sm:$0xff]
        %v1209 = vld [vmem:[#allocation2 + $0x178] sm:$0x1f]
        %v1210 = vld [vmem:[#allocation2 + $0x180] sm:$0xff]
        %v1211 = vld [vmem:[#allocation2 + $0x188] sm:$0xff]
        %v1212 = vld [vmem:[#allocation2 + $0x190] sm:$0x1f]
        %v1213 = vld [vmem:[#allocation2 + $0x198] sm:$0xff]
        %v1214 = vld [vmem:[#allocation2 + $0x1a0] sm:$0xff]
        %v1215 = vld [vmem:[#allocation2 + $0x1a8] sm:$0x1f]
        %v1216 = vld [vmem:[#allocation2 + $0x1b0] sm:$0xff]
        %v1217 = vld [vmem:[#allocation2 + $0x1b8] sm:$0xff]
        %v1218 = vld [vmem:[#allocation2 + $0x1c0] sm:$0x1f]
        %v1219 = vld [vmem:[#allocation2 + $0x1c8] sm:$0xff]
        %v1220 = vld [vmem:[#allocation2 + $0x1d0] sm:$0xff]
        %v1221 = vld [vmem:[#allocation2 + $0x1d8] sm:$0x1f]
        %v1222 = vld [vmem:[#allocation2 + $0x1e0] sm:$0xff]
        %v1223 = vld [vmem:[#allocation2 + $0x1e8] sm:$0xff]
        %v1224 = vld [vmem:[#allocation2 + $0x1f0] sm:$0x1f]
        %1288 = vrot.lane.b32.xlu0 %v1162, 2
        %v1289 = vpop.permute.xlu0 %1288
        %1290 = vrot.lane.b32.xlu0 %v1163, 2
        %v1291 = vpop.permute.xlu0 %1290
        %1292 = vrot.lane.b32.xlu0 %v1164, 2
        %v1293 = vpop.permute.xlu0 %1292
        %1294 = vrot.lane.b32.xlu0 %v1165, 2
        %v1295 = vpop.permute.xlu0 %1294
        %1296 = vrot.lane.b32.xlu0 %v1166, 2
        %v1297 = vpop.permute.xlu0 %1296
        %1298 = vrot.lane.b32.xlu0 %v1167, 2
        %v1299 = vpop.permute.xlu0 %1298
        %1300 = vrot.lane.b32.xlu0 %v1168, 2
        %v1301 = vpop.permute.xlu0 %1300
        %1302 = vrot.lane.b32.xlu0 %v1169, 2
        %v1303 = vpop.permute.xlu0 %1302
        %1304 = vrot.lane.b32.xlu0 %v1170, 2
        %v1305 = vpop.permute.xlu0 %1304
        %1306 = vrot.lane.b32.xlu0 %v1171, 2
        %v1307 = vpop.permute.xlu0 %1306
        %1308 = vrot.lane.b32.xlu0 %v1172, 2
        %v1309 = vpop.permute.xlu0 %1308
        %1310 = vrot.lane.b32.xlu0 %v1173, 2
        %v1311 = vpop.permute.xlu0 %1310
        %1312 = vrot.lane.b32.xlu0 %v1174, 2
        %v1313 = vpop.permute.xlu0 %1312
        %1314 = vrot.lane.b32.xlu0 %v1175, 2
        %v1315 = vpop.permute.xlu0 %1314
        %1316 = vrot.lane.b32.xlu0 %v1176, 2
        %v1317 = vpop.permute.xlu0 %1316
        %1318 = vrot.lane.b32.xlu0 %v1177, 2
        %v1319 = vpop.permute.xlu0 %1318
        %1320 = vrot.lane.b32.xlu0 %v1178, 2
        %v1321 = vpop.permute.xlu0 %1320
        %1322 = vrot.lane.b32.xlu0 %v1179, 2
        %v1323 = vpop.permute.xlu0 %1322
        %1324 = vrot.lane.b32.xlu0 %v1180, 2
        %v1325 = vpop.permute.xlu0 %1324
        %1326 = vrot.lane.b32.xlu0 %v1181, 2
        %v1327 = vpop.permute.xlu0 %1326
        %1328 = vrot.lane.b32.xlu0 %v1182, 2
        %v1329 = vpop.permute.xlu0 %1328
        %1330 = vrot.lane.b32.xlu0 %v1183, 2
        %v1331 = vpop.permute.xlu0 %1330
        %1332 = vrot.lane.b32.xlu0 %v1184, 2
        %v1333 = vpop.permute.xlu0 %1332
        %1334 = vrot.lane.b32.xlu0 %v1185, 2
        %v1335 = vpop.permute.xlu0 %1334
        %1336 = vrot.lane.b32.xlu0 %v1186, 2
        %v1337 = vpop.permute.xlu0 %1336
        %1338 = vrot.lane.b32.xlu0 %v1187, 2
        %v1339 = vpop.permute.xlu0 %1338
        %1340 = vrot.lane.b32.xlu0 %v1188, 2
        %v1341 = vpop.permute.xlu0 %1340
        %1342 = vrot.lane.b32.xlu0 %v1189, 2
        %v1343 = vpop.permute.xlu0 %1342
        %1344 = vrot.lane.b32.xlu0 %v1190, 2
        %v1345 = vpop.permute.xlu0 %1344
        %1346 = vrot.lane.b32.xlu0 %v1191, 2
        %v1347 = vpop.permute.xlu0 %1346
        %1348 = vrot.lane.b32.xlu0 %v1192, 2
        %v1349 = vpop.permute.xlu0 %1348
        %1350 = vrot.lane.b32.xlu0 %v1193, 2
        %v1351 = vpop.permute.xlu0 %1350
        %1352 = vrot.lane.b32.xlu0 %v1194, 2
        %v1353 = vpop.permute.xlu0 %1352
        %1354 = vrot.lane.b32.xlu0 %v1195, 2
        %v1355 = vpop.permute.xlu0 %1354
        %1356 = vrot.lane.b32.xlu0 %v1196, 2
        %v1357 = vpop.permute.xlu0 %1356
        %1358 = vrot.lane.b32.xlu0 %v1197, 2
        %v1359 = vpop.permute.xlu0 %1358
        %1360 = vrot.lane.b32.xlu0 %v1198, 2
        %v1361 = vpop.permute.xlu0 %1360
        %1362 = vrot.lane.b32.xlu0 %v1199, 2
        %v1363 = vpop.permute.xlu0 %1362
        %1364 = vrot.lane.b32.xlu0 %v1200, 2
        %v1365 = vpop.permute.xlu0 %1364
        %1366 = vrot.lane.b32.xlu0 %v1201, 2
        %v1367 = vpop.permute.xlu0 %1366
        %1368 = vrot.lane.b32.xlu0 %v1202, 2
        %v1369 = vpop.permute.xlu0 %1368
        %1370 = vrot.lane.b32.xlu0 %v1203, 2
        %v1371 = vpop.permute.xlu0 %1370
        %1372 = vrot.lane.b32.xlu0 %v1204, 2
        %v1373 = vpop.permute.xlu0 %1372
        %1374 = vrot.lane.b32.xlu0 %v1205, 2
        %v1375 = vpop.permute.xlu0 %1374
        %1376 = vrot.lane.b32.xlu0 %v1206, 2
        %v1377 = vpop.permute.xlu0 %1376
        %1378 = vrot.lane.b32.xlu0 %v1207, 2
        %v1379 = vpop.permute.xlu0 %1378
        %1380 = vrot.lane.b32.xlu0 %v1208, 2
        %v1381 = vpop.permute.xlu0 %1380
        %1382 = vrot.lane.b32.xlu0 %v1209, 2
        %v1383 = vpop.permute.xlu0 %1382
        %1384 = vrot.lane.b32.xlu0 %v1210, 2
        %v1385 = vpop.permute.xlu0 %1384
        %1386 = vrot.lane.b32.xlu0 %v1211, 2
        %v1387 = vpop.permute.xlu0 %1386
        %1388 = vrot.lane.b32.xlu0 %v1212, 2
        %v1389 = vpop.permute.xlu0 %1388
        %1390 = vrot.lane.b32.xlu0 %v1213, 2
        %v1391 = vpop.permute.xlu0 %1390
        %1392 = vrot.lane.b32.xlu0 %v1214, 2
        %v1393 = vpop.permute.xlu0 %1392
        %1394 = vrot.lane.b32.xlu0 %v1215, 2
        %v1395 = vpop.permute.xlu0 %1394
        %1396 = vrot.lane.b32.xlu0 %v1216, 2
        %v1397 = vpop.permute.xlu0 %1396
        %1398 = vrot.lane.b32.xlu0 %v1217, 2
        %v1399 = vpop.permute.xlu0 %1398
        %1400 = vrot.lane.b32.xlu0 %v1218, 2
        %v1401 = vpop.permute.xlu0 %1400
        %1402 = vrot.lane.b32.xlu0 %v1219, 2
        %v1403 = vpop.permute.xlu0 %1402
        %1404 = vrot.lane.b32.xlu0 %v1220, 2
        %v1405 = vpop.permute.xlu0 %1404
        %1406 = vrot.lane.b32.xlu0 %v1221, 2
        %v1407 = vpop.permute.xlu0 %1406
        %1408 = vrot.lane.b32.xlu0 %v1222, 2
        %v1409 = vpop.permute.xlu0 %1408
        %1410 = vrot.lane.b32.xlu0 %v1223, 2
        %v1411 = vpop.permute.xlu0 %1410
        %1412 = vrot.lane.b32.xlu0 %v1224, 2
        %v1413 = vpop.permute.xlu0 %1412
        %s1477 = scalar_lea.vmem [#allocation8], 64
        %vm1478 = vcmask 187408
        %1479 = vst.msk [vmem:[%s1477 + $0x2] sm:$0xff] %vm1478, %v1289
        %1480 = vst.msk [vmem:[%s1477 + $0xa] sm:$0xff] %vm1478, %v1291
        %vm1481 = vcmask 184336
        %1482 = vst.msk [vmem:[%s1477 + $0x12] sm:$0x1f] %vm1481, %v1293
        %1483 = vst.msk [vmem:[%s1477 + $0x22] sm:$0xff] %vm1478, %v1295
        %1484 = vst.msk [vmem:[%s1477 + $0x2a] sm:$0xff] %vm1478, %v1297
        %1485 = vst.msk [vmem:[%s1477 + $0x32] sm:$0x1f] %vm1481, %v1299
        %1486 = vst.msk [vmem:[%s1477 + $0x42] sm:$0xff] %vm1478, %v1301
        %1487 = vst.msk [vmem:[%s1477 + $0x4a] sm:$0xff] %vm1478, %v1303
        %1488 = vst.msk [vmem:[%s1477 + $0x52] sm:$0x1f] %vm1481, %v1305
        %1489 = vst.msk [vmem:[%s1477 + $0x62] sm:$0xff] %vm1478, %v1307
        %1490 = vst.msk [vmem:[%s1477 + $0x6a] sm:$0xff] %vm1478, %v1309
        %1491 = vst.msk [vmem:[%s1477 + $0x72] sm:$0x1f] %vm1481, %v1311
        %1492 = vst.msk [vmem:[%s1477 + $0x82] sm:$0xff] %vm1478, %v1313
        %1493 = vst.msk [vmem:[%s1477 + $0x8a] sm:$0xff] %vm1478, %v1315
        %1494 = vst.msk [vmem:[%s1477 + $0x92] sm:$0x1f] %vm1481, %v1317
        %1495 = vst.msk [vmem:[%s1477 + $0xa2] sm:$0xff] %vm1478, %v1319
        %1496 = vst.msk [vmem:[%s1477 + $0xaa] sm:$0xff] %vm1478, %v1321
        %1497 = vst.msk [vmem:[%s1477 + $0xb2] sm:$0x1f] %vm1481, %v1323
        %1498 = vst.msk [vmem:[%s1477 + $0xc2] sm:$0xff] %vm1478, %v1325
        %1499 = vst.msk [vmem:[%s1477 + $0xca] sm:$0xff] %vm1478, %v1327
        %1500 = vst.msk [vmem:[%s1477 + $0xd2] sm:$0x1f] %vm1481, %v1329
        %1501 = vst.msk [vmem:[%s1477 + $0xe2] sm:$0xff] %vm1478, %v1331
        %1502 = vst.msk [vmem:[%s1477 + $0xea] sm:$0xff] %vm1478, %v1333
        %1503 = vst.msk [vmem:[%s1477 + $0xf2] sm:$0x1f] %vm1481, %v1335
        %1504 = vst.msk [vmem:[%s1477 + $0x102] sm:$0xff] %vm1478, %v1337
        %1505 = vst.msk [vmem:[%s1477 + $0x10a] sm:$0xff] %vm1478, %v1339
        %1506 = vst.msk [vmem:[%s1477 + $0x112] sm:$0x1f] %vm1481, %v1341
        %1507 = vst.msk [vmem:[%s1477 + $0x122] sm:$0xff] %vm1478, %v1343
        %1508 = vst.msk [vmem:[%s1477 + $0x12a] sm:$0xff] %vm1478, %v1345
        %1509 = vst.msk [vmem:[%s1477 + $0x132] sm:$0x1f] %vm1481, %v1347
        %1510 = vst.msk [vmem:[%s1477 + $0x142] sm:$0xff] %vm1478, %v1349
        %1511 = vst.msk [vmem:[%s1477 + $0x14a] sm:$0xff] %vm1478, %v1351
        %1512 = vst.msk [vmem:[%s1477 + $0x152] sm:$0x1f] %vm1481, %v1353
        %1513 = vst.msk [vmem:[%s1477 + $0x162] sm:$0xff] %vm1478, %v1355
        %1514 = vst.msk [vmem:[%s1477 + $0x16a] sm:$0xff] %vm1478, %v1357
        %1515 = vst.msk [vmem:[%s1477 + $0x172] sm:$0x1f] %vm1481, %v1359
        %1516 = vst.msk [vmem:[%s1477 + $0x182] sm:$0xff] %vm1478, %v1361
        %1517 = vst.msk [vmem:[%s1477 + $0x18a] sm:$0xff] %vm1478, %v1363
        %1518 = vst.msk [vmem:[%s1477 + $0x192] sm:$0x1f] %vm1481, %v1365
        %1519 = vst.msk [vmem:[%s1477 + $0x1a2] sm:$0xff] %vm1478, %v1367
        %1520 = vst.msk [vmem:[%s1477 + $0x1aa] sm:$0xff] %vm1478, %v1369
        %1521 = vst.msk [vmem:[%s1477 + $0x1b2] sm:$0x1f] %vm1481, %v1371
        %1522 = vst.msk [vmem:[%s1477 + $0x1c2] sm:$0xff] %vm1478, %v1373
        %1523 = vst.msk [vmem:[%s1477 + $0x1ca] sm:$0xff] %vm1478, %v1375
        %1524 = vst.msk [vmem:[%s1477 + $0x1d2] sm:$0x1f] %vm1481, %v1377
        %1525 = vst.msk [vmem:[%s1477 + $0x1e2] sm:$0xff] %vm1478, %v1379
        %1526 = vst.msk [vmem:[%s1477 + $0x1ea] sm:$0xff] %vm1478, %v1381
        %1527 = vst.msk [vmem:[%s1477 + $0x1f2] sm:$0x1f] %vm1481, %v1383
        %1528 = vst.msk [vmem:[%s1477 + $0x202] sm:$0xff] %vm1478, %v1385
        %1529 = vst.msk [vmem:[%s1477 + $0x20a] sm:$0xff] %vm1478, %v1387
        %1530 = vst.msk [vmem:[%s1477 + $0x212] sm:$0x1f] %vm1481, %v1389
        %1531 = vst.msk [vmem:[%s1477 + $0x222] sm:$0xff] %vm1478, %v1391
        %1532 = vst.msk [vmem:[%s1477 + $0x22a] sm:$0xff] %vm1478, %v1393
        %1533 = vst.msk [vmem:[%s1477 + $0x232] sm:$0x1f] %vm1481, %v1395
        %1534 = vst.msk [vmem:[%s1477 + $0x242] sm:$0xff] %vm1478, %v1397
        %1535 = vst.msk [vmem:[%s1477 + $0x24a] sm:$0xff] %vm1478, %v1399
        %1536 = vst.msk [vmem:[%s1477 + $0x252] sm:$0x1f] %vm1481, %v1401
        %1537 = vst.msk [vmem:[%s1477 + $0x262] sm:$0xff] %vm1478, %v1403
        %1538 = vst.msk [vmem:[%s1477 + $0x26a] sm:$0xff] %vm1478, %v1405
        %1539 = vst.msk [vmem:[%s1477 + $0x272] sm:$0x1f] %vm1481, %v1407
        %1540 = vst.msk [vmem:[%s1477 + $0x282] sm:$0xff] %vm1478, %v1409
        %1541 = vst.msk [vmem:[%s1477 + $0x28a] sm:$0xff] %vm1478, %v1411
        %1542 = vst.msk [vmem:[%s1477 + $0x292] sm:$0x1f] %vm1481, %v1413
        loop: start=0, step=1, limit=11
        $region36: #{model_forward.1} parent=23 // loop_pre_header
          _
        $region37: #{model_forward.1} parent=23 // loop_header
          %s1544 = sphi 0, %s1548
          %p1545 = scmp.ge.s32.totalorder %s1544, 11
        $region38: #{model_forward.1} parent=23 // loop_header_branch
          %1547 = sbr.rel (%p1545) target = $region42
        $region39: #{model_forward.1} parent=23 // loop_body
          %s1549 = smul.u32 %s1544, 2
          %s1550 = smul.u32 %s1549, 32
          %s1551 = scalar_lea.vmem [#allocation8], %s1550
          %v1552 = vld [vmem:[%s1551] sm:$0xff]
          %v1553 = vld [vmem:[%s1551 + $0x8] sm:$0xff]
          %v1554 = vld [vmem:[%s1551 + $0x10] sm:$0xff]
          %v1555 = vld [vmem:[%s1551 + $0x18] sm:$0x1]
          %s1556 = sadd.s32 %s1549, 1
          %s1557 = smul.u32 %s1556, 32
          %s1558 = scalar_lea.vmem [#allocation8], %s1557
          %v1559 = vld [vmem:[%s1558] sm:$0xff]
          %v1560 = vld [vmem:[%s1558 + $0x8] sm:$0xff]
          %v1561 = vld [vmem:[%s1558 + $0x10] sm:$0xff]
          %v1562 = vld [vmem:[%s1558 + $0x18] sm:$0x1]
          %v1563 = vmax.f32 %v1552, %v1559
          %v1564 = vmax.f32 %v1553, %v1560
          %v1565 = vmax.f32 %v1554, %v1561
          %v1566 = vmax.f32 %v1555, %v1562
          %s1567 = sadd.s32 %s1549, 2
          %s1568 = smul.u32 %s1567, 32
          %s1569 = scalar_lea.vmem [#allocation8], %s1568
          %v1570 = vld [vmem:[%s1569] sm:$0xff]
          %v1571 = vld [vmem:[%s1569 + $0x8] sm:$0xff]
          %v1572 = vld [vmem:[%s1569 + $0x10] sm:$0xff]
          %v1573 = vld [vmem:[%s1569 + $0x18] sm:$0x1]
          %v1574 = vmax.f32 %v1563, %v1570
          %v1575 = vmax.f32 %v1564, %v1571
          %v1576 = vmax.f32 %v1565, %v1572
          %v1577 = vmax.f32 %v1566, %v1573
          %s1578 = sadd.s32 %s1549, 3
          %s1579 = smul.u32 %s1578, 32
          %s1580 = scalar_lea.vmem [#allocation8], %s1579
          %v1581 = vld [vmem:[%s1580] sm:$0xff]
          %v1582 = vld [vmem:[%s1580 + $0x8] sm:$0xff]
          %v1583 = vld [vmem:[%s1580 + $0x10] sm:$0xff]
          %v1584 = vld [vmem:[%s1580 + $0x18] sm:$0x1]
          %v1585 = vmax.f32 %v1574, %v1581
          %v1586 = vmax.f32 %v1575, %v1582
          %v1587 = vmax.f32 %v1576, %v1583
          %v1588 = vmax.f32 %v1577, %v1584
          %1593 = vrot.lane.b32.xlu0 %v1585, 127
          %v1594 = vpop.permute.xlu0 %1593
          %1595 = vrot.lane.b32.xlu0 %v1586, 127
          %v1596 = vpop.permute.xlu0 %1595
          %1597 = vrot.lane.b32.xlu0 %v1587, 127
          %v1598 = vpop.permute.xlu0 %1597
          %1599 = vrot.lane.b32.xlu0 %v1588, 127
          %v1600 = vpop.permute.xlu0 %1599
          %v1605 = vmax.f32 %v1585, %v1594
          %v1606 = vmax.f32 %v1586, %v1596
          %v1607 = vmax.f32 %v1587, %v1598
          %v1608 = vmax.f32 %v1588, %v1600
          %1609 = vrot.lane.b32.xlu0 %v1585, 126
          %v1610 = vpop.permute.xlu0 %1609
          %1611 = vrot.lane.b32.xlu0 %v1586, 126
          %v1612 = vpop.permute.xlu0 %1611
          %1613 = vrot.lane.b32.xlu0 %v1587, 126
          %v1614 = vpop.permute.xlu0 %1613
          %1615 = vrot.lane.b32.xlu0 %v1588, 126
          %v1616 = vpop.permute.xlu0 %1615
          %v1621 = vmax.f32 %v1605, %v1610
          %v1622 = vmax.f32 %v1606, %v1612
          %v1623 = vmax.f32 %v1607, %v1614
          %v1624 = vmax.f32 %v1608, %v1616
          %1625 = vrot.lane.b32.xlu0 %v1585, 125
          %v1626 = vpop.permute.xlu0 %1625
          %1627 = vrot.lane.b32.xlu0 %v1586, 125
          %v1628 = vpop.permute.xlu0 %1627
          %1629 = vrot.lane.b32.xlu0 %v1587, 125
          %v1630 = vpop.permute.xlu0 %1629
          %1631 = vrot.lane.b32.xlu0 %v1588, 125
          %v1632 = vpop.permute.xlu0 %1631
          %v1637 = vmax.f32 %v1621, %v1626
          %v1638 = vmax.f32 %v1622, %v1628
          %v1639 = vmax.f32 %v1623, %v1630
          %v1640 = vmax.f32 %v1624, %v1632
          %vm1641 = vcmask 7168
          %1642 = vst.msk [vmem:[#allocation13] sm:$0xff] %vm1641, %v1637
          %1643 = vst.msk [vmem:[#allocation13 + $0x8] sm:$0xff] %vm1641, %v1638
          %1644 = vst.msk [vmem:[#allocation13 + $0x10] sm:$0xff] %vm1641, %v1639
          %vm1645 = vcmask 0
          %1646 = vst.msk [vmem:[#allocation13 + $0x18] sm:$0x1] %vm1645, %v1640
          %1651 = vrot.lane.b32.xlu0 %v1637, 127
          %v1652 = vpop.permute.xlu0 %1651
          %1653 = vrot.lane.b32.xlu0 %v1638, 127
          %v1654 = vpop.permute.xlu0 %1653
          %1655 = vrot.lane.b32.xlu0 %v1639, 127
          %v1656 = vpop.permute.xlu0 %1655
          %1657 = vrot.lane.b32.xlu0 %v1640, 127
          %v1658 = vpop.permute.xlu0 %1657
          %vm1663 = vcmask 15368
          %1664 = vst.msk [vmem:[#allocation13] sm:$0xff] %vm1663, %v1652
          %1665 = vst.msk [vmem:[#allocation13 + $0x8] sm:$0xff] %vm1663, %v1654
          %1666 = vst.msk [vmem:[#allocation13 + $0x10] sm:$0xff] %vm1663, %v1656
          %vm1667 = vcmask 8200
          %1668 = vst.msk [vmem:[#allocation13 + $0x18] sm:$0x1] %vm1667, %v1658
          %1669 = vrot.lane.b32.xlu0 %v1637, 126
          %v1670 = vpop.permute.xlu0 %1669
          %1671 = vrot.lane.b32.xlu0 %v1638, 126
          %v1672 = vpop.permute.xlu0 %1671
          %1673 = vrot.lane.b32.xlu0 %v1639, 126
          %v1674 = vpop.permute.xlu0 %1673
          %1675 = vrot.lane.b32.xlu0 %v1640, 126
          %v1676 = vpop.permute.xlu0 %1675
          %vm1681 = vcmask 23568
          %1682 = vst.msk [vmem:[#allocation13] sm:$0xff] %vm1681, %v1670
          %1683 = vst.msk [vmem:[#allocation13 + $0x8] sm:$0xff] %vm1681, %v1672
          %1684 = vst.msk [vmem:[#allocation13 + $0x10] sm:$0xff] %vm1681, %v1674
          %vm1685 = vcmask 16400
          %1686 = vst.msk [vmem:[#allocation13 + $0x18] sm:$0x1] %vm1685, %v1676
          %1687 = vrot.lane.b32.xlu0 %v1637, 125
          %v1688 = vpop.permute.xlu0 %1687
          %1689 = vrot.lane.b32.xlu0 %v1638, 125
          %v1690 = vpop.permute.xlu0 %1689
          %1691 = vrot.lane.b32.xlu0 %v1639, 125
          %v1692 = vpop.permute.xlu0 %1691
          %1693 = vrot.lane.b32.xlu0 %v1640, 125
          %v1694 = vpop.permute.xlu0 %1693
          %vm1699 = vcmask 31768
          %1700 = vst.msk [vmem:[#allocation13] sm:$0xff] %vm1699, %v1688
          %1701 = vst.msk [vmem:[#allocation13 + $0x8] sm:$0xff] %vm1699, %v1690
          %1702 = vst.msk [vmem:[#allocation13 + $0x10] sm:$0xff] %vm1699, %v1692
          %vm1703 = vcmask 24600
          %1704 = vst.msk [vmem:[#allocation13 + $0x18] sm:$0x1] %vm1703, %v1694
          %1705 = vrot.lane.b32.xlu0 %v1637, 124
          %v1706 = vpop.permute.xlu0 %1705
          %1707 = vrot.lane.b32.xlu0 %v1638, 124
          %v1708 = vpop.permute.xlu0 %1707
          %1709 = vrot.lane.b32.xlu0 %v1639, 124
          %v1710 = vpop.permute.xlu0 %1709
          %1711 = vrot.lane.b32.xlu0 %v1640, 124
          %v1712 = vpop.permute.xlu0 %1711
          %vm1717 = vcmask 39968
          %1718 = vst.msk [vmem:[#allocation13] sm:$0xff] %vm1717, %v1706
          %1719 = vst.msk [vmem:[#allocation13 + $0x8] sm:$0xff] %vm1717, %v1708
          %1720 = vst.msk [vmem:[#allocation13 + $0x10] sm:$0xff] %vm1717, %v1710
          %vm1721 = vcmask 32800
          %1722 = vst.msk [vmem:[#allocation13 + $0x18] sm:$0x1] %vm1721, %v1712
          %1723 = vrot.lane.b32.xlu0 %v1637, 123
          %v1724 = vpop.permute.xlu0 %1723
          %1725 = vrot.lane.b32.xlu0 %v1638, 123
          %v1726 = vpop.permute.xlu0 %1725
          %1727 = vrot.lane.b32.xlu0 %v1639, 123
          %v1728 = vpop.permute.xlu0 %1727
          %1729 = vrot.lane.b32.xlu0 %v1640, 123
          %v1730 = vpop.permute.xlu0 %1729
          %vm1735 = vcmask 48168
          %1736 = vst.msk [vmem:[#allocation13] sm:$0xff] %vm1735, %v1724
          %1737 = vst.msk [vmem:[#allocation13 + $0x8] sm:$0xff] %vm1735, %v1726
          %1738 = vst.msk [vmem:[#allocation13 + $0x10] sm:$0xff] %vm1735, %v1728
          %vm1739 = vcmask 41000
          %1740 = vst.msk [vmem:[#allocation13 + $0x18] sm:$0x1] %vm1739, %v1730
          %1741 = vrot.lane.b32.xlu0 %v1637, 122
          %v1742 = vpop.permute.xlu0 %1741
          %1743 = vrot.lane.b32.xlu0 %v1638, 122
          %v1744 = vpop.permute.xlu0 %1743
          %1745 = vrot.lane.b32.xlu0 %v1639, 122
          %v1746 = vpop.permute.xlu0 %1745
          %1747 = vrot.lane.b32.xlu0 %v1640, 122
          %v1748 = vpop.permute.xlu0 %1747
          %vm1753 = vcmask 56368
          %1754 = vst.msk [vmem:[#allocation13] sm:$0xff] %vm1753, %v1742
          %1755 = vst.msk [vmem:[#allocation13 + $0x8] sm:$0xff] %vm1753, %v1744
          %1756 = vst.msk [vmem:[#allocation13 + $0x10] sm:$0xff] %vm1753, %v1746
          %vm1757 = vcmask 49200
          %1758 = vst.msk [vmem:[#allocation13 + $0x18] sm:$0x1] %vm1757, %v1748
          %1759 = vrot.lane.b32.xlu0 %v1637, 121
          %v1760 = vpop.permute.xlu0 %1759
          %1761 = vrot.lane.b32.xlu0 %v1638, 121
          %v1762 = vpop.permute.xlu0 %1761
          %1763 = vrot.lane.b32.xlu0 %v1639, 121
          %v1764 = vpop.permute.xlu0 %1763
          %1765 = vrot.lane.b32.xlu0 %v1640, 121
          %v1766 = vpop.permute.xlu0 %1765
          %vm1771 = vcmask 64568
          %1772 = vst.msk [vmem:[#allocation13] sm:$0xff] %vm1771, %v1760
          %1773 = vst.msk [vmem:[#allocation13 + $0x8] sm:$0xff] %vm1771, %v1762
          %1774 = vst.msk [vmem:[#allocation13 + $0x10] sm:$0xff] %vm1771, %v1764
          %vm1775 = vcmask 57400
          %1776 = vst.msk [vmem:[#allocation13 + $0x18] sm:$0x1] %vm1775, %v1766
          %1777 = vrot.lane.b32.xlu0 %v1637, 120
          %v1778 = vpop.permute.xlu0 %1777
          %1779 = vrot.lane.b32.xlu0 %v1638, 120
          %v1780 = vpop.permute.xlu0 %1779
          %1781 = vrot.lane.b32.xlu0 %v1639, 120
          %v1782 = vpop.permute.xlu0 %1781
          %1783 = vrot.lane.b32.xlu0 %v1640, 120
          %v1784 = vpop.permute.xlu0 %1783
          %vm1789 = vcmask 72768
          %1790 = vst.msk [vmem:[#allocation13] sm:$0xff] %vm1789, %v1778
          %1791 = vst.msk [vmem:[#allocation13 + $0x8] sm:$0xff] %vm1789, %v1780
          %1792 = vst.msk [vmem:[#allocation13 + $0x10] sm:$0xff] %vm1789, %v1782
          %vm1793 = vcmask 65600
          %1794 = vst.msk [vmem:[#allocation13 + $0x18] sm:$0x1] %vm1793, %v1784
          %1795 = vrot.lane.b32.xlu0 %v1637, 119
          %v1796 = vpop.permute.xlu0 %1795
          %1797 = vrot.lane.b32.xlu0 %v1638, 119
          %v1798 = vpop.permute.xlu0 %1797
          %1799 = vrot.lane.b32.xlu0 %v1639, 119
          %v1800 = vpop.permute.xlu0 %1799
          %1801 = vrot.lane.b32.xlu0 %v1640, 119
          %v1802 = vpop.permute.xlu0 %1801
          %vm1807 = vcmask 80968
          %1808 = vst.msk [vmem:[#allocation13] sm:$0xff] %vm1807, %v1796
          %1809 = vst.msk [vmem:[#allocation13 + $0x8] sm:$0xff] %vm1807, %v1798
          %1810 = vst.msk [vmem:[#allocation13 + $0x10] sm:$0xff] %vm1807, %v1800
          %vm1811 = vcmask 73800
          %1812 = vst.msk [vmem:[#allocation13 + $0x18] sm:$0x1] %vm1811, %v1802
          %1813 = vrot.lane.b32.xlu0 %v1637, 118
          %v1814 = vpop.permute.xlu0 %1813
          %1815 = vrot.lane.b32.xlu0 %v1638, 118
          %v1816 = vpop.permute.xlu0 %1815
          %1817 = vrot.lane.b32.xlu0 %v1639, 118
          %v1818 = vpop.permute.xlu0 %1817
          %1819 = vrot.lane.b32.xlu0 %v1640, 118
          %v1820 = vpop.permute.xlu0 %1819
          %vm1825 = vcmask 89168
          %1826 = vst.msk [vmem:[#allocation13] sm:$0xff] %vm1825, %v1814
          %1827 = vst.msk [vmem:[#allocation13 + $0x8] sm:$0xff] %vm1825, %v1816
          %1828 = vst.msk [vmem:[#allocation13 + $0x10] sm:$0xff] %vm1825, %v1818
          %vm1829 = vcmask 82000
          %1830 = vst.msk [vmem:[#allocation13 + $0x18] sm:$0x1] %vm1829, %v1820
          %v1831 = vld [vmem:[#allocation13] sm:$0xff]
          %v1832 = vld [vmem:[#allocation13 + $0x8] sm:$0xff]
          %v1833 = vld [vmem:[#allocation13 + $0x10] sm:$0xff]
          %vm1837 = vcmask 1046528
          %v1838 = vrot.slane %v1831, 1
          %v1839 = vrot.slane %v1832, 1
          %v1840 = vsel %vm1837, %v1838, %v1839
          %v1841 = vrot.slane %v1833, 1
          %v1842 = vsel %vm1837, %v1839, %v1841
          %v1846 = vmax.f32 %v1831, %v1840
          %v1847 = vmax.f32 %v1832, %v1842
          %v1848 = vmax.f32 %v1833, %v1841
          %vm1849 = vcmask 1045504
          %v1850 = vrot.slane %v1831, 2
          %v1851 = vrot.slane %v1832, 2
          %v1852 = vsel %vm1849, %v1850, %v1851
          %v1853 = vrot.slane %v1833, 2
          %v1854 = vsel %vm1849, %v1851, %v1853
          %v1858 = vmax.f32 %v1846, %v1852
          %v1859 = vmax.f32 %v1847, %v1854
          %v1860 = vmax.f32 %v1848, %v1853
          %vm1861 = vcmask 1044480
          %v1862 = vrot.slane %v1831, 3
          %v1863 = vrot.slane %v1832, 3
          %v1864 = vsel %vm1861, %v1862, %v1863
          %v1865 = vrot.slane %v1833, 3
          %v1866 = vsel %vm1861, %v1863, %v1865
          %v1870 = vmax.f32 %v1858, %v1864
          %v1871 = vmax.f32 %v1859, %v1866
          %v1872 = vmax.f32 %v1860, %v1865
          %vm1873 = vcmask 81920
          %1874 = vst.msk [vmem:[#allocation13] sm:$0x1] %vm1873, %v1870
          %vm1875 = vcmask 83970
          %1876 = vst.msk [vmem:[#allocation13 - $0x1] sm:$0x4] %vm1875, %v1870
          %vm1877 = vcmask 86020
          %1878 = vst.msk [vmem:[#allocation13 - $0x2] sm:$0x10] %vm1877, %v1870
          %vm1879 = vcmask 88070
          %1880 = vst.msk [vmem:[#allocation13 - $0x3] sm:$0x40] %vm1879, %v1870
          %1881 = vst.msk [vmem:[#allocation13 + $0x4] sm:$0x1] %vm1873, %v1871
          %1882 = vst.msk [vmem:[#allocation13 + $0x3] sm:$0x4] %vm1875, %v1871
          %1883 = vst.msk [vmem:[#allocation13 + $0x2] sm:$0x10] %vm1877, %v1871
          %1884 = vst.msk [vmem:[#allocation13 + $0x1] sm:$0x40] %vm1879, %v1871
          %1885 = vst.msk [vmem:[#allocation13 + $0x8] sm:$0x1] %vm1873, %v1872
          %1886 = vst.msk [vmem:[#allocation13 + $0x7] sm:$0x4] %vm1875, %v1872
          %1887 = vst.msk [vmem:[#allocation13 + $0x6] sm:$0x10] %vm1877, %v1872
          %v1888 = vld [vmem:[#allocation13] sm:$0xff]
          %v1889 = vld [vmem:[#allocation13 + $0x8] sm:$0x7]
          %s1890 = smul.u32 %s1544, 16
          %s1891 = scalar_lea.vmem [#allocation3], %s1890
          %vm1892 = vcmask 89088
          %1893 = vst.msk [vmem:[%s1891] sm:$0xff] %vm1892, %v1888
          %vm1894 = vcmask 83968
          %1895 = vst.msk [vmem:[%s1891 + $0x8] sm:$0x7] %vm1894, %v1889
        $region40: #{model_forward.1} parent=23 // loop_footer
          %s1548 = sadd.s32 1, %s1544
        $region41: #{model_forward.1} parent=23 // loop_footer_branch
          %1543 = sbr.rel target = $region37
        $region42: #{model_forward.1} parent=23 // loop_exit
          _
        %vm1896 = vcmask 105472
        %1897 = vst.msk [vmem:[#allocation9] sm:$0xff] %vm1896, -inf
        %vm1898 = vcmask 100352
        %1899 = vst.msk [vmem:[#allocation9 + $0x8] sm:$0x7] %vm1898, -inf
        %1900 = vst.msk [vmem:[#allocation9 + $0x10] sm:$0xff] %vm1896, -inf
        %1901 = vst.msk [vmem:[#allocation9 + $0x18] sm:$0x7] %vm1898, -inf
        %1902 = vst.msk [vmem:[#allocation9 + $0x20] sm:$0xff] %vm1896, -inf
        %1903 = vst.msk [vmem:[#allocation9 + $0x28] sm:$0x7] %vm1898, -inf
        %1904 = vst.msk [vmem:[#allocation9 + $0x30] sm:$0xff] %vm1896, -inf
        %1905 = vst.msk [vmem:[#allocation9 + $0x38] sm:$0x7] %vm1898, -inf
        %1906 = vst.msk [vmem:[#allocation9 + $0x40] sm:$0xff] %vm1896, -inf
        %1907 = vst.msk [vmem:[#allocation9 + $0x48] sm:$0x7] %vm1898, -inf
        %1908 = vst.msk [vmem:[#allocation9 + $0x50] sm:$0xff] %vm1896, -inf
        %1909 = vst.msk [vmem:[#allocation9 + $0x58] sm:$0x7] %vm1898, -inf
        %1910 = vst.msk [vmem:[#allocation9 + $0x60] sm:$0xff] %vm1896, -inf
        %1911 = vst.msk [vmem:[#allocation9 + $0x68] sm:$0x7] %vm1898, -inf
        %1912 = vst.msk [vmem:[#allocation9 + $0x70] sm:$0xff] %vm1896, -inf
        %1913 = vst.msk [vmem:[#allocation9 + $0x78] sm:$0x7] %vm1898, -inf
        %1914 = vst.msk [vmem:[#allocation9 + $0x80] sm:$0xff] %vm1896, -inf
        %1915 = vst.msk [vmem:[#allocation9 + $0x88] sm:$0x7] %vm1898, -inf
        %1916 = vst.msk [vmem:[#allocation9 + $0x90] sm:$0xff] %vm1896, -inf
        %1917 = vst.msk [vmem:[#allocation9 + $0x98] sm:$0x7] %vm1898, -inf
        %1918 = vst.msk [vmem:[#allocation9 + $0xa0] sm:$0xff] %vm1896, -inf
        %1919 = vst.msk [vmem:[#allocation9 + $0xa8] sm:$0x7] %vm1898, -inf
        %v1920 = vld [vmem:[#allocation3] sm:$0xff]
        %v1921 = vld [vmem:[#allocation3 + $0x8] sm:$0x7]
        %v1922 = vld [vmem:[#allocation3 + $0x10] sm:$0xff]
        %v1923 = vld [vmem:[#allocation3 + $0x18] sm:$0x7]
        %v1924 = vld [vmem:[#allocation3 + $0x20] sm:$0xff]
        %v1925 = vld [vmem:[#allocation3 + $0x28] sm:$0x7]
        %v1926 = vld [vmem:[#allocation3 + $0x30] sm:$0xff]
        %v1927 = vld [vmem:[#allocation3 + $0x38] sm:$0x7]
        %v1928 = vld [vmem:[#allocation3 + $0x40] sm:$0xff]
        %v1929 = vld [vmem:[#allocation3 + $0x48] sm:$0x7]
        %v1930 = vld [vmem:[#allocation3 + $0x50] sm:$0xff]
        %v1931 = vld [vmem:[#allocation3 + $0x58] sm:$0x7]
        %v1932 = vld [vmem:[#allocation3 + $0x60] sm:$0xff]
        %v1933 = vld [vmem:[#allocation3 + $0x68] sm:$0x7]
        %v1934 = vld [vmem:[#allocation3 + $0x70] sm:$0xff]
        %v1935 = vld [vmem:[#allocation3 + $0x78] sm:$0x7]
        %v1936 = vld [vmem:[#allocation3 + $0x80] sm:$0xff]
        %v1937 = vld [vmem:[#allocation3 + $0x88] sm:$0x7]
        %v1938 = vld [vmem:[#allocation3 + $0x90] sm:$0xff]
        %v1939 = vld [vmem:[#allocation3 + $0x98] sm:$0x7]
        %v1940 = vld [vmem:[#allocation3 + $0xa0] sm:$0xff]
        %v1941 = vld [vmem:[#allocation3 + $0xa8] sm:$0x7]
        %1964 = vrot.lane.b32.xlu0 %v1920, 1
        %v1965 = vpop.permute.xlu0 %1964
        %1966 = vrot.lane.b32.xlu0 %v1921, 1
        %v1967 = vpop.permute.xlu0 %1966
        %1968 = vrot.lane.b32.xlu0 %v1922, 1
        %v1969 = vpop.permute.xlu0 %1968
        %1970 = vrot.lane.b32.xlu0 %v1923, 1
        %v1971 = vpop.permute.xlu0 %1970
        %1972 = vrot.lane.b32.xlu0 %v1924, 1
        %v1973 = vpop.permute.xlu0 %1972
        %1974 = vrot.lane.b32.xlu0 %v1925, 1
        %v1975 = vpop.permute.xlu0 %1974
        %1976 = vrot.lane.b32.xlu0 %v1926, 1
        %v1977 = vpop.permute.xlu0 %1976
        %1978 = vrot.lane.b32.xlu0 %v1927, 1
        %v1979 = vpop.permute.xlu0 %1978
        %1980 = vrot.lane.b32.xlu0 %v1928, 1
        %v1981 = vpop.permute.xlu0 %1980
        %1982 = vrot.lane.b32.xlu0 %v1929, 1
        %v1983 = vpop.permute.xlu0 %1982
        %1984 = vrot.lane.b32.xlu0 %v1930, 1
        %v1985 = vpop.permute.xlu0 %1984
        %1986 = vrot.lane.b32.xlu0 %v1931, 1
        %v1987 = vpop.permute.xlu0 %1986
        %1988 = vrot.lane.b32.xlu0 %v1932, 1
        %v1989 = vpop.permute.xlu0 %1988
        %1990 = vrot.lane.b32.xlu0 %v1933, 1
        %v1991 = vpop.permute.xlu0 %1990
        %1992 = vrot.lane.b32.xlu0 %v1934, 1
        %v1993 = vpop.permute.xlu0 %1992
        %1994 = vrot.lane.b32.xlu0 %v1935, 1
        %v1995 = vpop.permute.xlu0 %1994
        %1996 = vrot.lane.b32.xlu0 %v1936, 1
        %v1997 = vpop.permute.xlu0 %1996
        %1998 = vrot.lane.b32.xlu0 %v1937, 1
        %v1999 = vpop.permute.xlu0 %1998
        %2000 = vrot.lane.b32.xlu0 %v1938, 1
        %v2001 = vpop.permute.xlu0 %2000
        %2002 = vrot.lane.b32.xlu0 %v1939, 1
        %v2003 = vpop.permute.xlu0 %2002
        %2004 = vrot.lane.b32.xlu0 %v1940, 1
        %v2005 = vpop.permute.xlu0 %2004
        %2006 = vrot.lane.b32.xlu0 %v1941, 1
        %v2007 = vpop.permute.xlu0 %2006
        %vm2030 = vcmask 97288
        %2031 = vst.msk [vmem:[#allocation9] sm:$0xff] %vm2030, %v1965
        %vm2032 = vcmask 92168
        %2033 = vst.msk [vmem:[#allocation9 + $0x8] sm:$0x7] %vm2032, %v1967
        %2034 = vst.msk [vmem:[#allocation9 + $0x10] sm:$0xff] %vm2030, %v1969
        %2035 = vst.msk [vmem:[#allocation9 + $0x18] sm:$0x7] %vm2032, %v1971
        %2036 = vst.msk [vmem:[#allocation9 + $0x20] sm:$0xff] %vm2030, %v1973
        %2037 = vst.msk [vmem:[#allocation9 + $0x28] sm:$0x7] %vm2032, %v1975
        %2038 = vst.msk [vmem:[#allocation9 + $0x30] sm:$0xff] %vm2030, %v1977
        %2039 = vst.msk [vmem:[#allocation9 + $0x38] sm:$0x7] %vm2032, %v1979
        %2040 = vst.msk [vmem:[#allocation9 + $0x40] sm:$0xff] %vm2030, %v1981
        %2041 = vst.msk [vmem:[#allocation9 + $0x48] sm:$0x7] %vm2032, %v1983
        %2042 = vst.msk [vmem:[#allocation9 + $0x50] sm:$0xff] %vm2030, %v1985
        %2043 = vst.msk [vmem:[#allocation9 + $0x58] sm:$0x7] %vm2032, %v1987
        %2044 = vst.msk [vmem:[#allocation9 + $0x60] sm:$0xff] %vm2030, %v1989
        %2045 = vst.msk [vmem:[#allocation9 + $0x68] sm:$0x7] %vm2032, %v1991
        %2046 = vst.msk [vmem:[#allocation9 + $0x70] sm:$0xff] %vm2030, %v1993
        %2047 = vst.msk [vmem:[#allocation9 + $0x78] sm:$0x7] %vm2032, %v1995
        %2048 = vst.msk [vmem:[#allocation9 + $0x80] sm:$0xff] %vm2030, %v1997
        %2049 = vst.msk [vmem:[#allocation9 + $0x88] sm:$0x7] %vm2032, %v1999
        %2050 = vst.msk [vmem:[#allocation9 + $0x90] sm:$0xff] %vm2030, %v2001
        %2051 = vst.msk [vmem:[#allocation9 + $0x98] sm:$0x7] %vm2032, %v2003
        %2052 = vst.msk [vmem:[#allocation9 + $0xa0] sm:$0xff] %vm2030, %v2005
        %2053 = vst.msk [vmem:[#allocation9 + $0xa8] sm:$0x7] %vm2032, %v2007
        loop: start=0, step=1, limit=11
        $region43: #{model_forward.1} parent=23 // loop_pre_header
          _
        $region44: #{model_forward.1} parent=23 // loop_header
          %s2055 = sphi 0, %s2059
          %p2056 = scmp.ge.s32.totalorder %s2055, 11
        $region45: #{model_forward.1} parent=23 // loop_header_branch
          %2058 = sbr.rel (%p2056) target = $region49
        $region46: #{model_forward.1} parent=23 // loop_body
          %s2060 = smul.u32 %s2055, 16
          %s2061 = scalar_lea.vmem [#allocation9], %s2060
          %v2062 = vld [vmem:[%s2061] sm:$0xff]
          %v2063 = vld [vmem:[%s2061 + $0x8] sm:$0x7]
          %2066 = vrot.lane.b32.xlu0 %v2062, 127
          %v2067 = vpop.permute.xlu0 %2066
          %2068 = vrot.lane.b32.xlu0 %v2063, 127
          %v2069 = vpop.permute.xlu0 %2068
          %v2072 = vmax.f32 %v2062, %v2067
          %v2073 = vmax.f32 %v2063, %v2069
          %2074 = vrot.lane.b32.xlu0 %v2062, 126
          %v2075 = vpop.permute.xlu0 %2074
          %2076 = vrot.lane.b32.xlu0 %v2063, 126
          %v2077 = vpop.permute.xlu0 %2076
          %v2080 = vmax.f32 %v2072, %v2075
          %v2081 = vmax.f32 %v2073, %v2077
          %vm2084 = vcmask 1046528
          %v2085 = vrot.slane %v2080, 1
          %v2086 = vrot.slane %v2081, 1
          %v2087 = vsel %vm2084, %v2085, %v2086
          %v2090 = vmax.f32 %v2080, %v2087
          %v2091 = vmax.f32 %v2081, %v2086
          %s2092 = scalar_lea.vmem [#allocation4], %s2060
          %vm2093 = vcmask 89088
          %2094 = vst.msk [vmem:[%s2092] sm:$0xff] %vm2093, %v2090
          %vm2095 = vcmask 82944
          %2096 = vst.msk [vmem:[%s2092 + $0x8] sm:$0x3] %vm2095, %v2091
        $region47: #{model_forward.1} parent=23 // loop_footer
          %s2059 = sadd.s32 1, %s2055
        $region48: #{model_forward.1} parent=23 // loop_footer_branch
          %2054 = sbr.rel target = $region44
        $region49: #{model_forward.1} parent=23 // loop_exit
          _
        %vm2097 = vcmask 121856
        %2098 = vst.msk [vmem:[#allocation10] sm:$0xff] %vm2097, -inf
        %vm2099 = vcmask 119808
        %2100 = vst.msk [vmem:[#allocation10 + $0x8] sm:$0x3f] %vm2099, -inf
        %2101 = vst.msk [vmem:[#allocation10 + $0x10] sm:$0xff] %vm2097, -inf
        %2102 = vst.msk [vmem:[#allocation10 + $0x18] sm:$0x3f] %vm2099, -inf
        %2103 = vst.msk [vmem:[#allocation10 + $0x20] sm:$0xff] %vm2097, -inf
        %2104 = vst.msk [vmem:[#allocation10 + $0x28] sm:$0x3f] %vm2099, -inf
        %2105 = vst.msk [vmem:[#allocation10 + $0x30] sm:$0xff] %vm2097, -inf
        %2106 = vst.msk [vmem:[#allocation10 + $0x38] sm:$0x3f] %vm2099, -inf
        %2107 = vst.msk [vmem:[#allocation10 + $0x40] sm:$0xff] %vm2097, -inf
        %2108 = vst.msk [vmem:[#allocation10 + $0x48] sm:$0x3f] %vm2099, -inf
        %2109 = vst.msk [vmem:[#allocation10 + $0x50] sm:$0xff] %vm2097, -inf
        %2110 = vst.msk [vmem:[#allocation10 + $0x58] sm:$0x3f] %vm2099, -inf
        %2111 = vst.msk [vmem:[#allocation10 + $0x60] sm:$0xff] %vm2097, -inf
        %2112 = vst.msk [vmem:[#allocation10 + $0x68] sm:$0x3f] %vm2099, -inf
        %2113 = vst.msk [vmem:[#allocation10 + $0x70] sm:$0xff] %vm2097, -inf
        %2114 = vst.msk [vmem:[#allocation10 + $0x78] sm:$0x3f] %vm2099, -inf
        %2115 = vst.msk [vmem:[#allocation10 + $0x80] sm:$0xff] %vm2097, -inf
        %2116 = vst.msk [vmem:[#allocation10 + $0x88] sm:$0x3f] %vm2099, -inf
        %2117 = vst.msk [vmem:[#allocation10 + $0x90] sm:$0xff] %vm2097, -inf
        %2118 = vst.msk [vmem:[#allocation10 + $0x98] sm:$0x3f] %vm2099, -inf
        %2119 = vst.msk [vmem:[#allocation10 + $0xa0] sm:$0xff] %vm2097, -inf
        %2120 = vst.msk [vmem:[#allocation10 + $0xa8] sm:$0x3f] %vm2099, -inf
        %2121 = vst.msk [vmem:[#allocation10 + $0xb0] sm:$0xff] %vm2097, -inf
        %2122 = vst.msk [vmem:[#allocation10 + $0xb8] sm:$0x3f] %vm2099, -inf
        %2123 = vst.msk [vmem:[#allocation10 + $0xc0] sm:$0xff] %vm2097, -inf
        %2124 = vst.msk [vmem:[#allocation10 + $0xc8] sm:$0x3f] %vm2099, -inf
        %v2125 = vld [vmem:[#allocation4] sm:$0xff]
        %v2126 = vld [vmem:[#allocation4 + $0x8] sm:$0x3]
        %v2127 = vld [vmem:[#allocation4 + $0x10] sm:$0xff]
        %v2128 = vld [vmem:[#allocation4 + $0x18] sm:$0x3]
        %v2129 = vld [vmem:[#allocation4 + $0x20] sm:$0xff]
        %v2130 = vld [vmem:[#allocation4 + $0x28] sm:$0x3]
        %v2131 = vld [vmem:[#allocation4 + $0x30] sm:$0xff]
        %v2132 = vld [vmem:[#allocation4 + $0x38] sm:$0x3]
        %v2133 = vld [vmem:[#allocation4 + $0x40] sm:$0xff]
        %v2134 = vld [vmem:[#allocation4 + $0x48] sm:$0x3]
        %v2135 = vld [vmem:[#allocation4 + $0x50] sm:$0xff]
        %v2136 = vld [vmem:[#allocation4 + $0x58] sm:$0x3]
        %v2137 = vld [vmem:[#allocation4 + $0x60] sm:$0xff]
        %v2138 = vld [vmem:[#allocation4 + $0x68] sm:$0x3]
        %v2139 = vld [vmem:[#allocation4 + $0x70] sm:$0xff]
        %v2140 = vld [vmem:[#allocation4 + $0x78] sm:$0x3]
        %v2141 = vld [vmem:[#allocation4 + $0x80] sm:$0xff]
        %v2142 = vld [vmem:[#allocation4 + $0x88] sm:$0x3]
        %v2143 = vld [vmem:[#allocation4 + $0x90] sm:$0xff]
        %v2144 = vld [vmem:[#allocation4 + $0x98] sm:$0x3]
        %v2145 = vld [vmem:[#allocation4 + $0xa0] sm:$0xff]
        %v2146 = vld [vmem:[#allocation4 + $0xa8] sm:$0x3]
        %2169 = vrot.lane.b32.xlu0 %v2125, 2
        %v2170 = vpop.permute.xlu0 %2169
        %2171 = vrot.lane.b32.xlu0 %v2126, 2
        %v2172 = vpop.permute.xlu0 %2171
        %2173 = vrot.lane.b32.xlu0 %v2127, 2
        %v2174 = vpop.permute.xlu0 %2173
        %2175 = vrot.lane.b32.xlu0 %v2128, 2
        %v2176 = vpop.permute.xlu0 %2175
        %2177 = vrot.lane.b32.xlu0 %v2129, 2
        %v2178 = vpop.permute.xlu0 %2177
        %2179 = vrot.lane.b32.xlu0 %v2130, 2
        %v2180 = vpop.permute.xlu0 %2179
        %2181 = vrot.lane.b32.xlu0 %v2131, 2
        %v2182 = vpop.permute.xlu0 %2181
        %2183 = vrot.lane.b32.xlu0 %v2132, 2
        %v2184 = vpop.permute.xlu0 %2183
        %2185 = vrot.lane.b32.xlu0 %v2133, 2
        %v2186 = vpop.permute.xlu0 %2185
        %2187 = vrot.lane.b32.xlu0 %v2134, 2
        %v2188 = vpop.permute.xlu0 %2187
        %2189 = vrot.lane.b32.xlu0 %v2135, 2
        %v2190 = vpop.permute.xlu0 %2189
        %2191 = vrot.lane.b32.xlu0 %v2136, 2
        %v2192 = vpop.permute.xlu0 %2191
        %2193 = vrot.lane.b32.xlu0 %v2137, 2
        %v2194 = vpop.permute.xlu0 %2193
        %2195 = vrot.lane.b32.xlu0 %v2138, 2
        %v2196 = vpop.permute.xlu0 %2195
        %2197 = vrot.lane.b32.xlu0 %v2139, 2
        %v2198 = vpop.permute.xlu0 %2197
        %2199 = vrot.lane.b32.xlu0 %v2140, 2
        %v2200 = vpop.permute.xlu0 %2199
        %2201 = vrot.lane.b32.xlu0 %v2141, 2
        %v2202 = vpop.permute.xlu0 %2201
        %2203 = vrot.lane.b32.xlu0 %v2142, 2
        %v2204 = vpop.permute.xlu0 %2203
        %2205 = vrot.lane.b32.xlu0 %v2143, 2
        %v2206 = vpop.permute.xlu0 %2205
        %2207 = vrot.lane.b32.xlu0 %v2144, 2
        %v2208 = vpop.permute.xlu0 %2207
        %2209 = vrot.lane.b32.xlu0 %v2145, 2
        %v2210 = vpop.permute.xlu0 %2209
        %2211 = vrot.lane.b32.xlu0 %v2146, 2
        %v2212 = vpop.permute.xlu0 %2211
        %s2235 = scalar_lea.vmem [#allocation10], 16
        %vm2236 = vcmask 105488
        %2237 = vst.msk [vmem:[%s2235 + $0x2] sm:$0xff] %vm2236, %v2170
        %vm2238 = vcmask 99344
        %2239 = vst.msk [vmem:[%s2235 + $0xa] sm:$0x3] %vm2238, %v2172
        %2240 = vst.msk [vmem:[%s2235 + $0x12] sm:$0xff] %vm2236, %v2174
        %2241 = vst.msk [vmem:[%s2235 + $0x1a] sm:$0x3] %vm2238, %v2176
        %2242 = vst.msk [vmem:[%s2235 + $0x22] sm:$0xff] %vm2236, %v2178
        %2243 = vst.msk [vmem:[%s2235 + $0x2a] sm:$0x3] %vm2238, %v2180
        %2244 = vst.msk [vmem:[%s2235 + $0x32] sm:$0xff] %vm2236, %v2182
        %2245 = vst.msk [vmem:[%s2235 + $0x3a] sm:$0x3] %vm2238, %v2184
        %2246 = vst.msk [vmem:[%s2235 + $0x42] sm:$0xff] %vm2236, %v2186
        %2247 = vst.msk [vmem:[%s2235 + $0x4a] sm:$0x3] %vm2238, %v2188
        %2248 = vst.msk [vmem:[%s2235 + $0x52] sm:$0xff] %vm2236, %v2190
        %2249 = vst.msk [vmem:[%s2235 + $0x5a] sm:$0x3] %vm2238, %v2192
        %2250 = vst.msk [vmem:[%s2235 + $0x62] sm:$0xff] %vm2236, %v2194
        %2251 = vst.msk [vmem:[%s2235 + $0x6a] sm:$0x3] %vm2238, %v2196
        %2252 = vst.msk [vmem:[%s2235 + $0x72] sm:$0xff] %vm2236, %v2198
        %2253 = vst.msk [vmem:[%s2235 + $0x7a] sm:$0x3] %vm2238, %v2200
        %2254 = vst.msk [vmem:[%s2235 + $0x82] sm:$0xff] %vm2236, %v2202
        %2255 = vst.msk [vmem:[%s2235 + $0x8a] sm:$0x3] %vm2238, %v2204
        %2256 = vst.msk [vmem:[%s2235 + $0x92] sm:$0xff] %vm2236, %v2206
        %2257 = vst.msk [vmem:[%s2235 + $0x9a] sm:$0x3] %vm2238, %v2208
        %2258 = vst.msk [vmem:[%s2235 + $0xa2] sm:$0xff] %vm2236, %v2210
        %2259 = vst.msk [vmem:[%s2235 + $0xaa] sm:$0x3] %vm2238, %v2212
        loop: start=0, step=1, limit=11
        $region50: #{model_forward.1} parent=23 // loop_pre_header
          _
        $region51: #{model_forward.1} parent=23 // loop_header
          %s2261 = sphi 0, %s2265
          %p2262 = scmp.ge.s32.totalorder %s2261, 11
        $region52: #{model_forward.1} parent=23 // loop_header_branch
          %2264 = sbr.rel (%p2262) target = $region56
        $region53: #{model_forward.1} parent=23 // loop_body
          %s2266 = smul.u32 %s2261, 16
          %s2267 = scalar_lea.vmem [#allocation10], %s2266
          %v2268 = vld [vmem:[%s2267] sm:$0xff]
          %v2269 = vld [vmem:[%s2267 + $0x8] sm:$0x3f]
          %s2270 = sadd.s32 %s2261, 1
          %s2271 = smul.u32 %s2270, 16
          %s2272 = scalar_lea.vmem [#allocation10], %s2271
          %v2273 = vld [vmem:[%s2272] sm:$0xff]
          %v2274 = vld [vmem:[%s2272 + $0x8] sm:$0x3f]
          %v2275 = vmax.f32 %v2268, %v2273
          %v2276 = vmax.f32 %v2269, %v2274
          %s2277 = sadd.s32 %s2261, 2
          %s2278 = smul.u32 %s2277, 16
          %s2279 = scalar_lea.vmem [#allocation10], %s2278
          %v2280 = vld [vmem:[%s2279] sm:$0xff]
          %v2281 = vld [vmem:[%s2279 + $0x8] sm:$0x3f]
          %v2282 = vmax.f32 %v2275, %v2280
          %v2283 = vmax.f32 %v2276, %v2281
          %2286 = vrot.lane.b32.xlu0 %v2282, 127
          %v2287 = vpop.permute.xlu0 %2286
          %2288 = vrot.lane.b32.xlu0 %v2283, 127
          %v2289 = vpop.permute.xlu0 %2288
          %v2292 = vmax.f32 %v2282, %v2287
          %v2293 = vmax.f32 %v2283, %v2289
          %2294 = vrot.lane.b32.xlu0 %v2282, 126
          %v2295 = vpop.permute.xlu0 %2294
          %2296 = vrot.lane.b32.xlu0 %v2283, 126
          %v2297 = vpop.permute.xlu0 %2296
          %v2300 = vmax.f32 %v2292, %v2295
          %v2301 = vmax.f32 %v2293, %v2297
          %2302 = vrot.lane.b32.xlu0 %v2282, 125
          %v2303 = vpop.permute.xlu0 %2302
          %2304 = vrot.lane.b32.xlu0 %v2283, 125
          %v2305 = vpop.permute.xlu0 %2304
          %v2308 = vmax.f32 %v2300, %v2303
          %v2309 = vmax.f32 %v2301, %v2305
          %2310 = vrot.lane.b32.xlu0 %v2282, 124
          %v2311 = vpop.permute.xlu0 %2310
          %2312 = vrot.lane.b32.xlu0 %v2283, 124
          %v2313 = vpop.permute.xlu0 %2312
          %v2316 = vmax.f32 %v2308, %v2311
          %v2317 = vmax.f32 %v2309, %v2313
          %vm2318 = vcmask 7168
          %2319 = vst.msk [vmem:[#allocation13] sm:$0xff] %vm2318, %v2316
          %vm2320 = vcmask 5120
          %2321 = vst.msk [vmem:[#allocation13 + $0x8] sm:$0x3f] %vm2320, %v2317
          %2324 = vrot.lane.b32.xlu0 %v2316, 127
          %v2325 = vpop.permute.xlu0 %2324
          %2326 = vrot.lane.b32.xlu0 %v2317, 127
          %v2327 = vpop.permute.xlu0 %2326
          %vm2330 = vcmask 15368
          %2331 = vst.msk [vmem:[#allocation13] sm:$0xff] %vm2330, %v2325
          %vm2332 = vcmask 13320
          %2333 = vst.msk [vmem:[#allocation13 + $0x8] sm:$0x3f] %vm2332, %v2327
          %2334 = vrot.lane.b32.xlu0 %v2316, 126
          %v2335 = vpop.permute.xlu0 %2334
          %2336 = vrot.lane.b32.xlu0 %v2317, 126
          %v2337 = vpop.permute.xlu0 %2336
          %vm2340 = vcmask 23568
          %2341 = vst.msk [vmem:[#allocation13] sm:$0xff] %vm2340, %v2335
          %vm2342 = vcmask 21520
          %2343 = vst.msk [vmem:[#allocation13 + $0x8] sm:$0x3f] %vm2342, %v2337
          %2344 = vrot.lane.b32.xlu0 %v2316, 125
          %v2345 = vpop.permute.xlu0 %2344
          %2346 = vrot.lane.b32.xlu0 %v2317, 125
          %v2347 = vpop.permute.xlu0 %2346
          %vm2350 = vcmask 31768
          %2351 = vst.msk [vmem:[#allocation13] sm:$0xff] %vm2350, %v2345
          %vm2352 = vcmask 29720
          %2353 = vst.msk [vmem:[#allocation13 + $0x8] sm:$0x3f] %vm2352, %v2347
          %2354 = vrot.lane.b32.xlu0 %v2316, 124
          %v2355 = vpop.permute.xlu0 %2354
          %2356 = vrot.lane.b32.xlu0 %v2317, 124
          %v2357 = vpop.permute.xlu0 %2356
          %vm2360 = vcmask 39968
          %2361 = vst.msk [vmem:[#allocation13] sm:$0xff] %vm2360, %v2355
          %vm2362 = vcmask 37920
          %2363 = vst.msk [vmem:[#allocation13 + $0x8] sm:$0x3f] %vm2362, %v2357
          %2364 = vrot.lane.b32.xlu0 %v2316, 123
          %v2365 = vpop.permute.xlu0 %2364
          %2366 = vrot.lane.b32.xlu0 %v2317, 123
          %v2367 = vpop.permute.xlu0 %2366
          %vm2370 = vcmask 48168
          %2371 = vst.msk [vmem:[#allocation13] sm:$0xff] %vm2370, %v2365
          %vm2372 = vcmask 46120
          %2373 = vst.msk [vmem:[#allocation13 + $0x8] sm:$0x3f] %vm2372, %v2367
          %v2374 = vld [vmem:[#allocation13] sm:$0xff]
          %v2375 = vld [vmem:[#allocation13 + $0x8] sm:$0x3f]
          %vm2378 = vcmask 1046528
          %v2379 = vrot.slane %v2374, 1
          %v2380 = vrot.slane %v2375, 1
          %v2381 = vsel %vm2378, %v2379, %v2380
          %v2384 = vmax.f32 %v2374, %v2381
          %v2385 = vmax.f32 %v2375, %v2380
          %vm2386 = vcmask 1045504
          %v2387 = vrot.slane %v2374, 2
          %v2388 = vrot.slane %v2375, 2
          %v2389 = vsel %vm2386, %v2387, %v2388
          %v2392 = vmax.f32 %v2384, %v2389
          %v2393 = vmax.f32 %v2385, %v2388
          %vm2394 = vcmask 1044480
          %v2395 = vrot.slane %v2374, 3
          %v2396 = vrot.slane %v2375, 3
          %v2397 = vsel %vm2394, %v2395, %v2396
          %v2400 = vmax.f32 %v2392, %v2397
          %v2401 = vmax.f32 %v2393, %v2396
          %vm2402 = vcmask 40960
          %2403 = vst.msk [vmem:[#allocation13] sm:$0x1] %vm2402, %v2400
          %vm2404 = vcmask 43010
          %2405 = vst.msk [vmem:[#allocation13 - $0x1] sm:$0x4] %vm2404, %v2400
          %vm2406 = vcmask 45060
          %2407 = vst.msk [vmem:[#allocation13 - $0x2] sm:$0x10] %vm2406, %v2400
          %vm2408 = vcmask 47110
          %2409 = vst.msk [vmem:[#allocation13 - $0x3] sm:$0x40] %vm2408, %v2400
          %2410 = vst.msk [vmem:[#allocation13 + $0x4] sm:$0x1] %vm2402, %v2401
          %2411 = vst.msk [vmem:[#allocation13 + $0x3] sm:$0x4] %vm2404, %v2401
          %v2412 = vld [vmem:[#allocation13] sm:$0x3f]
          %s2413 = smul.u32 %s2261, 8
          %s2414 = scalar_lea.vmem [#allocation5], %s2413
          %vm2415 = vcmask 46080
          %2416 = vst.msk [vmem:[%s2414] sm:$0x3f] %vm2415, %v2412
        $region54: #{model_forward.1} parent=23 // loop_footer
          %s2265 = sadd.s32 1, %s2261
        $region55: #{model_forward.1} parent=23 // loop_footer_branch
          %2260 = sbr.rel target = $region51
        $region56: #{model_forward.1} parent=23 // loop_exit
          _
        %vm2417 = vcmask 64512
        %2418 = vst.msk [vmem:[#allocation11] sm:$0xff] %vm2417, -inf
        %2419 = vst.msk [vmem:[#allocation11 + $0x8] sm:$0xff] %vm2417, -inf
        %2420 = vst.msk [vmem:[#allocation11 + $0x10] sm:$0xff] %vm2417, -inf
        %2421 = vst.msk [vmem:[#allocation11 + $0x18] sm:$0xff] %vm2417, -inf
        %2422 = vst.msk [vmem:[#allocation11 + $0x20] sm:$0xff] %vm2417, -inf
        %2423 = vst.msk [vmem:[#allocation11 + $0x28] sm:$0xff] %vm2417, -inf
        %2424 = vst.msk [vmem:[#allocation11 + $0x30] sm:$0xff] %vm2417, -inf
        %2425 = vst.msk [vmem:[#allocation11 + $0x38] sm:$0xff] %vm2417, -inf
        %2426 = vst.msk [vmem:[#allocation11 + $0x40] sm:$0xff] %vm2417, -inf
        %2427 = vst.msk [vmem:[#allocation11 + $0x48] sm:$0xff] %vm2417, -inf
        %2428 = vst.msk [vmem:[#allocation11 + $0x50] sm:$0xff] %vm2417, -inf
        %2429 = vst.msk [vmem:[#allocation11 + $0x58] sm:$0xff] %vm2417, -inf
        %2430 = vst.msk [vmem:[#allocation11 + $0x60] sm:$0xff] %vm2417, -inf
        %v2431 = vld [vmem:[#allocation5] sm:$0x3f]
        %v2432 = vld [vmem:[#allocation5 + $0x8] sm:$0x3f]
        %v2433 = vld [vmem:[#allocation5 + $0x10] sm:$0x3f]
        %v2434 = vld [vmem:[#allocation5 + $0x18] sm:$0x3f]
        %v2435 = vld [vmem:[#allocation5 + $0x20] sm:$0x3f]
        %v2436 = vld [vmem:[#allocation5 + $0x28] sm:$0x3f]
        %v2437 = vld [vmem:[#allocation5 + $0x30] sm:$0x3f]
        %v2438 = vld [vmem:[#allocation5 + $0x38] sm:$0x3f]
        %v2439 = vld [vmem:[#allocation5 + $0x40] sm:$0x3f]
        %v2440 = vld [vmem:[#allocation5 + $0x48] sm:$0x3f]
        %v2441 = vld [vmem:[#allocation5 + $0x50] sm:$0x3f]
        %2453 = vrot.lane.b32.xlu0 %v2431, 1
        %v2454 = vpop.permute.xlu0 %2453
        %2455 = vrot.lane.b32.xlu0 %v2432, 1
        %v2456 = vpop.permute.xlu0 %2455
        %2457 = vrot.lane.b32.xlu0 %v2433, 1
        %v2458 = vpop.permute.xlu0 %2457
        %2459 = vrot.lane.b32.xlu0 %v2434, 1
        %v2460 = vpop.permute.xlu0 %2459
        %2461 = vrot.lane.b32.xlu0 %v2435, 1
        %v2462 = vpop.permute.xlu0 %2461
        %2463 = vrot.lane.b32.xlu0 %v2436, 1
        %v2464 = vpop.permute.xlu0 %2463
        %2465 = vrot.lane.b32.xlu0 %v2437, 1
        %v2466 = vpop.permute.xlu0 %2465
        %2467 = vrot.lane.b32.xlu0 %v2438, 1
        %v2468 = vpop.permute.xlu0 %2467
        %2469 = vrot.lane.b32.xlu0 %v2439, 1
        %v2470 = vpop.permute.xlu0 %2469
        %2471 = vrot.lane.b32.xlu0 %v2440, 1
        %v2472 = vpop.permute.xlu0 %2471
        %2473 = vrot.lane.b32.xlu0 %v2441, 1
        %v2474 = vpop.permute.xlu0 %2473
        %s2486 = scalar_lea.vmem [#allocation11], 8
        %vm2487 = vcmask 54280
        %2488 = vst.msk [vmem:[%s2486 + $0x1] sm:$0x3f] %vm2487, %v2454
        %2489 = vst.msk [vmem:[%s2486 + $0x9] sm:$0x3f] %vm2487, %v2456
        %2490 = vst.msk [vmem:[%s2486 + $0x11] sm:$0x3f] %vm2487, %v2458
        %2491 = vst.msk [vmem:[%s2486 + $0x19] sm:$0x3f] %vm2487, %v2460
        %2492 = vst.msk [vmem:[%s2486 + $0x21] sm:$0x3f] %vm2487, %v2462
        %2493 = vst.msk [vmem:[%s2486 + $0x29] sm:$0x3f] %vm2487, %v2464
        %2494 = vst.msk [vmem:[%s2486 + $0x31] sm:$0x3f] %vm2487, %v2466
        %2495 = vst.msk [vmem:[%s2486 + $0x39] sm:$0x3f] %vm2487, %v2468
        %2496 = vst.msk [vmem:[%s2486 + $0x41] sm:$0x3f] %vm2487, %v2470
        %2497 = vst.msk [vmem:[%s2486 + $0x49] sm:$0x3f] %vm2487, %v2472
        %2498 = vst.msk [vmem:[%s2486 + $0x51] sm:$0x3f] %vm2487, %v2474
        loop: start=0, step=1, limit=12
        $region57: #{model_forward.1} parent=23 // loop_pre_header
          _
        $region58: #{model_forward.1} parent=23 // loop_header
          %s2500 = sphi 0, %s2504
          %p2501 = scmp.ge.s32.totalorder %s2500, 12
        $region59: #{model_forward.1} parent=23 // loop_header_branch
          %2503 = sbr.rel (%p2501) target = $region63
        $region60: #{model_forward.1} parent=23 // loop_body
          %s2505 = smul.u32 %s2500, 8
          %s2506 = scalar_lea.vmem [#allocation11], %s2505
          %v2507 = vld [vmem:[%s2506] sm:$0xff]
          %s2508 = sadd.s32 %s2500, 1
          %s2509 = smul.u32 %s2508, 8
          %s2510 = scalar_lea.vmem [#allocation11], %s2509
          %v2511 = vld [vmem:[%s2510] sm:$0xff]
          %v2512 = vmax.f32 %v2507, %v2511
          %2514 = vrot.lane.b32.xlu0 %v2512, 127
          %v2515 = vpop.permute.xlu0 %2514
          %v2517 = vmax.f32 %v2512, %v2515
          %2518 = vrot.lane.b32.xlu0 %v2512, 126
          %v2519 = vpop.permute.xlu0 %2518
          %v2521 = vmax.f32 %v2517, %v2519
          %v2523 = vrot.slane %v2521, 1
          %v2525 = vmax.f32 %v2521, %v2523
          %v2526 = vrot.slane %v2521, 2
          %v2528 = vmax.f32 %v2525, %v2526
          %s2529 = scalar_lea.vmem [#allocation6], %s2505
          %vm2530 = vcmask 46080
          %2531 = vst.msk [vmem:[%s2529] sm:$0x3f] %vm2530, %v2528
        $region61: #{model_forward.1} parent=23 // loop_footer
          %s2504 = sadd.s32 1, %s2500
        $region62: #{model_forward.1} parent=23 // loop_footer_branch
          %2499 = sbr.rel target = $region58
        $region63: #{model_forward.1} parent=23 // loop_exit
          _
        loop: start=0, step=1, limit=11
        $region64: #{model_forward.1} parent=23 // loop_pre_header
          _
        $region65: #{model_forward.1} parent=23 // loop_header
          %s2533 = sphi 0, %s2537
          %p2534 = scmp.ge.s32.totalorder %s2533, 11
        $region66: #{model_forward.1} parent=23 // loop_header_branch
          %2536 = sbr.rel (%p2534) target = $region70
        $region67: #{model_forward.1} parent=23 // loop_body
          %s2538 = smul.u32 %s2533, 8
          %s2539 = scalar_lea.vmem [#allocation6], %s2538
          %v2540 = vld [vmem:[%s2539] sm:$0x3f]
          %s2541 = sadd.s32 %s2533, 1
          %s2542 = smul.u32 %s2541, 8
          %s2543 = scalar_lea.vmem [#allocation6], %s2542
          %v2544 = vld [vmem:[%s2543] sm:$0x3f]
          %v2545 = vmax.f32 %v2540, %v2544
          %2547 = vrot.lane.b32.xlu0 %v2545, 127
          %v2548 = vpop.permute.xlu0 %2547
          %v2550 = vmax.f32 %v2545, %v2548
          %v2552 = vrot.slane %v2550, 1
          %v2554 = vmax.f32 %v2550, %v2552
          %s2555 = scalar_lea.vmem [#allocation7], %s2538
          %vm2556 = vcmask 36864
          %2557 = vst.msk [vmem:[%s2555] sm:$0x1f] %vm2556, %v2554
        $region68: #{model_forward.1} parent=23 // loop_footer
          %s2537 = sadd.s32 1, %s2533
        $region69: #{model_forward.1} parent=23 // loop_footer_branch
          %2532 = sbr.rel target = $region65
        $region70: #{model_forward.1} parent=23 // loop_exit
          _
        %vm2558 = vcmask 72704
        %2559 = vst.msk [vmem:[#allocation12] sm:$0xff] %vm2558, -inf
        %vm2560 = vcmask 65536
        %2561 = vst.msk [vmem:[#allocation12 + $0x8] sm:$0x1] %vm2560, -inf
        %2562 = vst.msk [vmem:[#allocation12 + $0x10] sm:$0xff] %vm2558, -inf
        %2563 = vst.msk [vmem:[#allocation12 + $0x18] sm:$0x1] %vm2560, -inf
        %2564 = vst.msk [vmem:[#allocation12 + $0x20] sm:$0xff] %vm2558, -inf
        %2565 = vst.msk [vmem:[#allocation12 + $0x28] sm:$0x1] %vm2560, -inf
        %2566 = vst.msk [vmem:[#allocation12 + $0x30] sm:$0xff] %vm2558, -inf
        %2567 = vst.msk [vmem:[#allocation12 + $0x38] sm:$0x1] %vm2560, -inf
        %2568 = vst.msk [vmem:[#allocation12 + $0x40] sm:$0xff] %vm2558, -inf
        %2569 = vst.msk [vmem:[#allocation12 + $0x48] sm:$0x1] %vm2560, -inf
        %2570 = vst.msk [vmem:[#allocation12 + $0x50] sm:$0xff] %vm2558, -inf
        %2571 = vst.msk [vmem:[#allocation12 + $0x58] sm:$0x1] %vm2560, -inf
        %2572 = vst.msk [vmem:[#allocation12 + $0x60] sm:$0xff] %vm2558, -inf
        %2573 = vst.msk [vmem:[#allocation12 + $0x68] sm:$0x1] %vm2560, -inf
        %2574 = vst.msk [vmem:[#allocation12 + $0x70] sm:$0xff] %vm2558, -inf
        %2575 = vst.msk [vmem:[#allocation12 + $0x78] sm:$0x1] %vm2560, -inf
        %2576 = vst.msk [vmem:[#allocation12 + $0x80] sm:$0xff] %vm2558, -inf
        %2577 = vst.msk [vmem:[#allocation12 + $0x88] sm:$0x1] %vm2560, -inf
        %2578 = vst.msk [vmem:[#allocation12 + $0x90] sm:$0xff] %vm2558, -inf
        %2579 = vst.msk [vmem:[#allocation12 + $0x98] sm:$0x1] %vm2560, -inf
        %2580 = vst.msk [vmem:[#allocation12 + $0xa0] sm:$0xff] %vm2558, -inf
        %2581 = vst.msk [vmem:[#allocation12 + $0xa8] sm:$0x1] %vm2560, -inf
        %2582 = vst.msk [vmem:[#allocation12 + $0xb0] sm:$0xff] %vm2558, -inf
        %2583 = vst.msk [vmem:[#allocation12 + $0xb8] sm:$0x1] %vm2560, -inf
        %2584 = vst.msk [vmem:[#allocation12 + $0xc0] sm:$0xff] %vm2558, -inf
        %2585 = vst.msk [vmem:[#allocation12 + $0xc8] sm:$0x1] %vm2560, -inf
        %2586 = vst.msk [vmem:[#allocation12 + $0xd0] sm:$0xff] %vm2558, -inf
        %2587 = vst.msk [vmem:[#allocation12 + $0xd8] sm:$0x1] %vm2560, -inf
        %2588 = vst.msk [vmem:[#allocation12 + $0xe0] sm:$0xff] %vm2558, -inf
        %2589 = vst.msk [vmem:[#allocation12 + $0xe8] sm:$0x1] %vm2560, -inf
        %v2590 = vld [vmem:[#allocation7] sm:$0x1f]
        %v2591 = vld [vmem:[#allocation7 + $0x8] sm:$0x1f]
        %v2592 = vld [vmem:[#allocation7 + $0x10] sm:$0x1f]
        %v2593 = vld [vmem:[#allocation7 + $0x18] sm:$0x1f]
        %v2594 = vld [vmem:[#allocation7 + $0x20] sm:$0x1f]
        %v2595 = vld [vmem:[#allocation7 + $0x28] sm:$0x1f]
        %v2596 = vld [vmem:[#allocation7 + $0x30] sm:$0x1f]
        %v2597 = vld [vmem:[#allocation7 + $0x38] sm:$0x1f]
        %v2598 = vld [vmem:[#allocation7 + $0x40] sm:$0x1f]
        %v2599 = vld [vmem:[#allocation7 + $0x48] sm:$0x1f]
        %v2600 = vld [vmem:[#allocation7 + $0x50] sm:$0x1f]
        %2612 = vrot.lane.b32.xlu0 %v2590, 2
        %v2613 = vpop.permute.xlu0 %2612
        %2614 = vrot.lane.b32.xlu0 %v2591, 2
        %v2615 = vpop.permute.xlu0 %2614
        %2616 = vrot.lane.b32.xlu0 %v2592, 2
        %v2617 = vpop.permute.xlu0 %2616
        %2618 = vrot.lane.b32.xlu0 %v2593, 2
        %v2619 = vpop.permute.xlu0 %2618
        %2620 = vrot.lane.b32.xlu0 %v2594, 2
        %v2621 = vpop.permute.xlu0 %2620
        %2622 = vrot.lane.b32.xlu0 %v2595, 2
        %v2623 = vpop.permute.xlu0 %2622
        %2624 = vrot.lane.b32.xlu0 %v2596, 2
        %v2625 = vpop.permute.xlu0 %2624
        %2626 = vrot.lane.b32.xlu0 %v2597, 2
        %v2627 = vpop.permute.xlu0 %2626
        %2628 = vrot.lane.b32.xlu0 %v2598, 2
        %v2629 = vpop.permute.xlu0 %2628
        %2630 = vrot.lane.b32.xlu0 %v2599, 2
        %v2631 = vpop.permute.xlu0 %2630
        %2632 = vrot.lane.b32.xlu0 %v2600, 2
        %v2633 = vpop.permute.xlu0 %2632
        %s2645 = scalar_lea.vmem [#allocation12], 32
        %vm2646 = vcmask 53264
        %2647 = vst.msk [vmem:[%s2645 + $0x2] sm:$0x1f] %vm2646, %v2613
        %2648 = vst.msk [vmem:[%s2645 + $0x12] sm:$0x1f] %vm2646, %v2615
        %2649 = vst.msk [vmem:[%s2645 + $0x22] sm:$0x1f] %vm2646, %v2617
        %2650 = vst.msk [vmem:[%s2645 + $0x32] sm:$0x1f] %vm2646, %v2619
        %2651 = vst.msk [vmem:[%s2645 + $0x42] sm:$0x1f] %vm2646, %v2621
        %2652 = vst.msk [vmem:[%s2645 + $0x52] sm:$0x1f] %vm2646, %v2623
        %2653 = vst.msk [vmem:[%s2645 + $0x62] sm:$0x1f] %vm2646, %v2625
        %2654 = vst.msk [vmem:[%s2645 + $0x72] sm:$0x1f] %vm2646, %v2627
        %2655 = vst.msk [vmem:[%s2645 + $0x82] sm:$0x1f] %vm2646, %v2629
        %2656 = vst.msk [vmem:[%s2645 + $0x92] sm:$0x1f] %vm2646, %v2631
        %2657 = vst.msk [vmem:[%s2645 + $0xa2] sm:$0x1f] %vm2646, %v2633
        loop: start=0, step=1, limit=11
        $region71: #{model_forward.1} parent=23 // loop_pre_header
          _
        $region72: #{model_forward.1} parent=23 // loop_header
          %s2659 = sphi 0, %s2663
          %p2660 = scmp.ge.s32.totalorder %s2659, 11
        $region73: #{model_forward.1} parent=23 // loop_header_branch
          %2662 = sbr.rel (%p2660) target = $region77
        $region74: #{model_forward.1} parent=23 // loop_body
          %s2664 = smul.u32 %s2659, 16
          %s2665 = scalar_lea.vmem [#allocation12], %s2664
          %v2666 = vld [vmem:[%s2665] sm:$0xff]
          %v2667 = vld [vmem:[%s2665 + $0x8] sm:$0x1]
          %s2668 = sadd.s32 %s2659, 1
          %s2669 = smul.u32 %s2668, 16
          %s2670 = scalar_lea.vmem [#allocation12], %s2669
          %v2671 = vld [vmem:[%s2670] sm:$0xff]
          %v2672 = vld [vmem:[%s2670 + $0x8] sm:$0x1]
          %v2673 = vmax.f32 %v2666, %v2671
          %v2674 = vmax.f32 %v2667, %v2672
          %s2675 = sadd.s32 %s2659, 2
          %s2676 = smul.u32 %s2675, 16
          %s2677 = scalar_lea.vmem [#allocation12], %s2676
          %v2678 = vld [vmem:[%s2677] sm:$0xff]
          %v2679 = vld [vmem:[%s2677 + $0x8] sm:$0x1]
          %v2680 = vmax.f32 %v2673, %v2678
          %v2681 = vmax.f32 %v2674, %v2679
          %s2682 = sadd.s32 %s2659, 3
          %s2683 = smul.u32 %s2682, 16
          %s2684 = scalar_lea.vmem [#allocation12], %s2683
          %v2685 = vld [vmem:[%s2684] sm:$0xff]
          %v2686 = vld [vmem:[%s2684 + $0x8] sm:$0x1]
          %v2687 = vmax.f32 %v2680, %v2685
          %v2688 = vmax.f32 %v2681, %v2686
          %s2689 = sadd.s32 %s2659, 4
          %s2690 = smul.u32 %s2689, 16
          %s2691 = scalar_lea.vmem [#allocation12], %s2690
          %v2692 = vld [vmem:[%s2691] sm:$0xff]
          %v2693 = vld [vmem:[%s2691 + $0x8] sm:$0x1]
          %v2694 = vmax.f32 %v2687, %v2692
          %v2695 = vmax.f32 %v2688, %v2693
          %2698 = vrot.lane.b32.xlu0 %v2694, 127
          %v2699 = vpop.permute.xlu0 %2698
          %2700 = vrot.lane.b32.xlu0 %v2695, 127
          %v2701 = vpop.permute.xlu0 %2700
          %v2704 = vmax.f32 %v2694, %v2699
          %v2705 = vmax.f32 %v2695, %v2701
          %2706 = vrot.lane.b32.xlu0 %v2694, 126
          %v2707 = vpop.permute.xlu0 %2706
          %2708 = vrot.lane.b32.xlu0 %v2695, 126
          %v2709 = vpop.permute.xlu0 %2708
          %v2712 = vmax.f32 %v2704, %v2707
          %v2713 = vmax.f32 %v2705, %v2709
          %2714 = vrot.lane.b32.xlu0 %v2694, 125
          %v2715 = vpop.permute.xlu0 %2714
          %2716 = vrot.lane.b32.xlu0 %v2695, 125
          %v2717 = vpop.permute.xlu0 %2716
          %v2720 = vmax.f32 %v2712, %v2715
          %v2721 = vmax.f32 %v2713, %v2717
          %v2723 = vrot.slane %v2720, 1
          %v2725 = vmax.f32 %v2720, %v2723
          %v2726 = vrot.slane %v2720, 2
          %v2728 = vmax.f32 %v2725, %v2726
          %vm2730 = vcmask 1044480
          %v2731 = vrot.slane %v2720, 3
          %v2732 = vrot.slane %v2721, 3
          %v2733 = vsel %vm2730, %v2731, %v2732
          %v2735 = vmax.f32 %v2728, %v2733
          %s2736 = smul.u32 %s2659, 8
          %s2737 = scalar_lea.vmem %s136, %s2736
          %vm2738 = vcmask 46080
          %2739 = vst.msk [vmem:[%s2737] sm:$0x3f] %vm2738, %v2735
        $region75: #{model_forward.1} parent=23 // loop_footer
          %s2663 = sadd.s32 1, %s2659
        $region76: #{model_forward.1} parent=23 // loop_footer_branch
          %2658 = sbr.rel target = $region72
        $region77: #{model_forward.1} parent=23 // loop_exit
          _
        %p2740 = scmp.lt.s32.totalorder %s15, 11
        %s2741 = scalar_select %p2740, %s15, 11
        %s2742 = smul.addr %s2741, 11
        %s2743 = smul.addr %s2742, 8
        %s2744 = scalar_lea.vmem %s1, %s2743
        // Predicated region
        $region78: #{model_forward.1} parent=23 // pred_check
          %p2745 = pneg %p59
        $region79: #{model_forward.1} parent=23 // pred_check_branch
          %2747 = sbr.rel (%p2745) target = $region81
        $region80: #{model_forward.1} parent=23 // pred_region
          _
        $region81: #{model_forward.1} parent=23 // pred_fallthru
          _
      $region24: #{model_forward.1} parent=5 // pred_fallthru
        _
      %p2748 = scmp.le.s32.totalorder 2, %s10
      // Predicated region
      $region82: #{model_forward.1} parent=5 // pred_check
        %p2749 = pneg %p2748
      $region83: #{model_forward.1} parent=5 // pred_check_branch
        %2751 = sbr.rel (%p2749) target = $region85
      $region84: #{model_forward.1} parent=5 // pred_region
        %s2752 = ssub.s32 %s10, 2
        // Predicated region
        $region86: #{model_forward.1} parent=84 // pred_check
          %p2753 = pneg %p65
        $region87: #{model_forward.1} parent=84 // pred_check_branch
          %2755 = sbr.rel (%p2753) target = $region89
        $region88: #{model_forward.1} parent=84 // pred_region
          %p2756 = scmp.lt.s32.totalorder %s16, 11
          %s2757 = scalar_select %p2756, %s16, 11
          %s2758 = smul.addr %s2757, 11
          %s2759 = smul.addr %s2758, 8
          %s2760 = scalar_lea.vmem %s1, %s2759
        $region89: #{model_forward.1} parent=84 // pred_fallthru
          _
      $region85: #{model_forward.1} parent=5 // pred_fallthru
        _
    $region6: #{model_forward.1} parent=1 // loop_footer
      %s14 = sadd.s32 1, %s10
    $region7: #{model_forward.1} parent=1 // loop_footer_branch
      %9 = sbr.rel target = $region3
    $region8: #{model_forward.1} parent=1 // loop_exit
      _
    %2761 = vsyncpa [#allocation15], 1
    %s2762 = scalar_lea.sflag [#allocation15], 1
    %2763 = vsyncpa %s2762, 1

</llo_original>
